<compile_context>
chip_gen: v5e
topology: v5e:2x2
jax: 0.10.0
libtpu: 0.0.40
codegen_flags: <defaults>
</compile_context>

<pallas_src>
import functools

import jax
import jax.numpy as jnp
from jax.experimental import pallas as pl
from jax.experimental.pallas import tpu as pltpu


def _round_up(x, m):
    return (x + m - 1) // m * m


def _tn_cap():
    # v5e's MXU is 4x128^2 -> 256-wide N tiles gain nothing and double the f32
    # accumulator; v6e/v7x (2x256^2 MXU) keep the full-width feed.
    try:
        kind = jax.devices()[0].device_kind.lower()
    except Exception:
        kind = ""
    if "v5 lite" in kind or "v5e" in kind or "v5litepod" in kind:
        return 128
    return 256


def _pick_tm(m):
    """Largest tile dividing M exactly, preferring >=2 tiles (v7x megacore)."""
    cands = (512, 256, 128, 64, 32, 16, 8)
    for c in cands:
        if m % c == 0 and m // c >= 2:
            return c
    for c in cands:
        if m % c == 0:
            return c
    return min(512, _round_up(m, 8))  # fallback: pad M (not hit at these sizes)


def _pick_tk(k):
    if k % 128 == 0:
        for c in (512, 256, 128):
            if k % c == 0:
                return c
    # Full-K block (allowed: block dim equals the array dim).  Only layer 1
    # (K = 16*3 = 48) takes this path; no K padding is ever materialized.
    return k


# ---------------------------------------------------------------------------
# Pallas kernel: tiled (patches @ weight) + folded-BN bias -> activation
# ---------------------------------------------------------------------------
def _fused_matmul_kernel(p_ref, w_ref, b_ref, o_ref, acc_ref, *, act):
    k = pl.program_id(2)

    @pl.when(k == 0)
    def _init():
        acc_ref[...] = jnp.zeros_like(acc_ref)

    acc_ref[...] += jnp.dot(p_ref[...], w_ref[...],
                            preferred_element_type=jnp.float32)

    @pl.when(k == pl.num_programs(2) - 1)
    def _finalize():
        y = acc_ref[...] + b_ref[...]              # folded BatchNorm bias (or 0)
        if act == "leaky":
            y = jnp.maximum(y, 0.2 * y)            # LeakyReLU(0.2)
        elif act == "sigmoid":
            y = pl.reciprocal(1.0 + jnp.exp(-y), approx=True)
        o_ref[...] = y.astype(o_ref.dtype)


def fused_conv_matmul(patches, w2d, bias, act, out_dtype):
    M, K = patches.shape
    K2, Cp = w2d.shape
    assert K == K2 and Cp % 128 == 0

    tm = _pick_tm(M)
    tk = _pick_tk(K)
    tn = 256 if (_tn_cap() >= 256 and Cp % 256 == 0) else 128
    Mp = _round_up(M, tm)
    p = patches if Mp == M else jnp.pad(patches, ((0, Mp - M), (0, 0)))

    grid = (Mp // tm, Cp // tn, K // tk)
    kernel = functools.partial(_fused_matmul_kernel, act=act)
    out_itemsize = jnp.dtype(out_dtype).itemsize

    out = pl.pallas_call(
        kernel,
        out_shape=jax.ShapeDtypeStruct((Mp, Cp), out_dtype),
        grid=grid,
        in_specs=[
            pl.BlockSpec((tm, tk), lambda i, j, k: (i, k)),
            pl.BlockSpec((tk, tn), lambda i, j, k: (k, j)),
            pl.BlockSpec((1, tn), lambda i, j, k: (0, j)),
        ],
        out_specs=pl.BlockSpec((tm, tn), lambda i, j, k: (i, j)),
        scratch_shapes=[pltpu.VMEM((tm, tn), jnp.float32)],
        compiler_params=pltpu.CompilerParams(
            dimension_semantics=("parallel", "parallel", "arbitrary"),
            vmem_limit_bytes=32 * 1024 * 1024,
        ),
        cost_estimate=pl.CostEstimate(
            flops=2 * Mp * K * Cp,
            bytes_accessed=Mp * K * 2 + K * Cp * 2 + Mp * Cp * out_itemsize,
            transcendentals=Mp * Cp if act == "sigmoid" else 0,
        ),
    )(p, w2d, bias)
    return out if Mp == M else out[:M]


# ---------------------------------------------------------------------------
# NHWC im2col (channels stay on the lane axis; tap order = (kh, kw, Cin))
# ---------------------------------------------------------------------------
def _im2col(x, stride, pad, k=4):
    N, H, W, C = x.shape
    Ho = (H + 2 * pad - k) // stride + 1
    Wo = (W + 2 * pad - k) // stride + 1
    xp = jnp.pad(x, ((0, 0), (pad, pad), (pad, pad), (0, 0)))
    cols = [xp[:, i:i + stride * Ho:stride, j:j + stride * Wo:stride, :]
            for i in range(k) for j in range(k)]
    patches = jnp.concatenate(cols, axis=-1).reshape(N * Ho * Wo, k * k * C)
    return patches, N, Ho, Wo


def conv_block(x, w2d, bias, cout):
    """4x4 / stride-2 / pad-1 conv (+folded BN) + LeakyReLU, NHWC in/out."""
    patches, N, Ho, Wo = _im2col(x, stride=2, pad=1)
    out = fused_conv_matmul(patches.astype(jnp.bfloat16), w2d, bias,
                            act="leaky", out_dtype=jnp.bfloat16)
    coutp = w2d.shape[1]
    out = out.reshape(N, Ho, Wo, coutp)
    return out if coutp == cout else out[..., :cout]


# ---------------------------------------------------------------------------
# Fused tail: layer 4 (conv+BN+LeakyReLU) + layer 5 (4x4 valid conv + sigmoid)
# in a single pallas_call.  Layer 5 is just a flatten+dot over layer 4's
# 4x4 x C4 output, evaluated per image with an iota-built selector (no
# in-kernel reshapes).
# ---------------------------------------------------------------------------
def _tail_kernel(p_ref, w4_ref, b4_ref, w5_ref, o_ref, *, n_img, taps):
    y = jnp.dot(p_ref[...], w4_ref[...],
                preferred_element_type=jnp.float32)        # (N*T, Cp4)
    y = y + b4_ref[...]                                    # folded BN bias
    y = jnp.maximum(y, 0.2 * y)                            # LeakyReLU(0.2)
    weighted = y * w5_ref[...]                             # per-tap layer-5 terms

    total = n_img * taps
    rows = jax.lax.broadcasted_iota(jnp.int32, (n_img, total), 1)
    imgs = jax.lax.broadcasted_iota(jnp.int32, (n_img, total), 0)
    lo = imgs * taps
    sel = ((rows >= lo) & (rows < lo + taps)).astype(jnp.float32)  # (N, N*T)

    z = jnp.dot(sel, weighted, preferred_element_type=jnp.float32)  # (N, Cp4)
    z = jnp.sum(z, axis=1, keepdims=True)                           # (N, 1)
    o_ref[...] = pl.reciprocal(1.0 + jnp.exp(-z), approx=True).astype(o_ref.dtype)


def fused_tail(x, w4, b4, w5v):
    patches, N, Ho, Wo = _im2col(x, stride=2, pad=1)       # (N*T, K4)
    T = Ho * Wo
    K4 = patches.shape[1]
    Cp4 = w4.shape[1]
    assert w4.shape[0] == K4 and w5v.shape == (T, Cp4)
    w5_rows = jnp.tile(w5v, (N, 1))                        # row r -> tap r % T

    kernel = functools.partial(_tail_kernel, n_img=N, taps=T)
    return pl.pallas_call(
        kernel,
        out_shape=jax.ShapeDtypeStruct((N, 1), jnp.float32),
        grid=(1,),
        in_specs=[
            pl.BlockSpec((N * T, K4), lambda i: (0, 0)),
            pl.BlockSpec((K4, Cp4), lambda i: (0, 0)),
            pl.BlockSpec((1, Cp4), lambda i: (0, 0)),
            pl.BlockSpec((N * T, Cp4), lambda i: (0, 0)),
        ],
        out_specs=pl.BlockSpec((N, 1), lambda i: (0, 0)),
        compiler_params=pltpu.CompilerParams(
            dimension_semantics=("arbitrary",),
            vmem_limit_bytes=32 * 1024 * 1024,
        ),
    )(patches.astype(jnp.bfloat16), w4, b4, w5_rows)


@functools.partial(jax.jit, static_argnums=(2,))
def netd_forward(x_nchw, params, head_couts):
    head, tail = params
    x = jnp.transpose(x_nchw, (0, 2, 3, 1)).astype(jnp.bfloat16)  # NCHW->NHWC once
    for (w2d, bias), cout in zip(head, head_couts):               # layers 1-3
        x = conv_block(x, w2d, bias, cout)
    return fused_tail(x, *tail)                # (N, 1) == output.view(-1, 1)


# ---------------------------------------------------------------------------
# Parameters: PyTorch-style init, then one-time prep (BN fold, pre-transpose,
# pre-pad to lane-dense Cout, bf16 cast)
# ---------------------------------------------------------------------------
def init_params(key, nc, ndf):
    ks = jax.random.split(key, 8)

    def conv_w(k, cout, cin):
        return 0.02 * jax.random.normal(k, (cout, cin, 4, 4), jnp.float32)

    raw = {
        "w1": conv_w(ks[0], ndf, nc),
        "w2": conv_w(ks[1], ndf * 2, ndf),
        "w3": conv_w(ks[2], ndf * 4, ndf * 2),
        "w4": conv_w(ks[3], ndf * 8, ndf * 4),
        "w5": conv_w(ks[4], 1, ndf * 8),
    }
    for idx, (kk, c) in enumerate(zip(ks[5:8], (ndf * 2, ndf * 4, ndf * 8))):
        i = idx + 2
        raw[f"gamma{i}"] = 1.0 + 0.02 * jax.random.normal(kk, (c,), jnp.float32)
        raw[f"beta{i}"] = jnp.zeros((c,), jnp.float32)
        raw[f"mean{i}"] = jnp.zeros((c,), jnp.float32)
        raw[f"var{i}"] = jnp.ones((c,), jnp.float32)
    return raw


def prepare_params(raw, eps=1e-5):
    def fold(i):
        w = raw[f"w{i}"]                                  # (Cout, Cin, 4, 4)
        cout = w.shape[0]
        coutp = _round_up(cout, 128)
        if f"gamma{i}" in raw:
            scale = raw[f"gamma{i}"] / jnp.sqrt(raw[f"var{i}"] + eps)
            bias = raw[f"beta{i}"] - raw[f"mean{i}"] * scale
        else:
            scale = jnp.ones((cout,), jnp.float32)
            bias = jnp.zeros((cout,), jnp.float32)
        w2d = w.transpose(2, 3, 1, 0).reshape(-1, cout) * scale[None, :]
        w2d = jnp.pad(w2d, ((0, 0), (0, coutp - cout))).astype(jnp.bfloat16)
        b = jnp.pad(bias, (0, coutp - cout)).astype(jnp.float32).reshape(1, coutp)
        return w2d, b, cout

    head = []
    for i in (1, 2, 3):
        w2d, b, _ = fold(i)
        head.append((w2d, b))
    head_couts = tuple(int(raw[f"w{i}"].shape[0]) for i in (1, 2, 3))

    w4, b4, c4 = fold(4)
    c4p = w4.shape[1]
    w5 = raw["w5"]                                        # (1, C4, 4, 4)
    # per-tap rows, tap index t = di*4 + dj, aligned with padded layer-4 lanes
    w5v = w5[0].transpose(1, 2, 0).reshape(16, c4)
    w5v = jnp.pad(w5v, ((0, 0), (0, c4p - c4))).astype(jnp.float32)

    return (tuple(head), (w4, b4, w5v)), head_couts


# ---------------------------------------------------------------------------
# Pure-JAX reference (f32, lax.conv) for correctness checking
# ---------------------------------------------------------------------------
def ref_forward(x, raw, eps=1e-5):
    def conv(h, w, stride, pad):
        return jax.lax.conv_general_dilated(
            h, w, (stride, stride), [(pad, pad), (pad, pad)],
            dimension_numbers=("NCHW", "OIHW", "NCHW"))

    def leaky(h):
        return jnp.where(h > 0, h, 0.2 * h)

    def bn(h, i):
        g, b = raw[f"gamma{i}"], raw[f"beta{i}"]
        m, v = raw[f"mean{i}"], raw[f"var{i}"]
        inv = (g / jnp.sqrt(v + eps))[None, :, None, None]
        return (h - m[None, :, None, None]) * inv + b[None, :, None, None]

    h = leaky(conv(x, raw["w1"], 2, 1))
    h = leaky(bn(conv(h, raw["w2"], 2, 1), 2))
    h = leaky(bn(conv(h, raw["w3"], 2, 1), 3))
    h = leaky(bn(conv(h, raw["w4"], 2, 1), 4))
    h = jax.nn.sigmoid(conv(h, raw["w5"], 1, 0))
    return h.reshape(-1, 1)


if __name__ == "__main__":
    # Architecture requires 64x64 spatial input (4 stride-2 convs -> 4x4, then
    # a 4x4 valid conv -> 1x1).  Keep batch / channel counts small.
    N, nc, ndf = 2, 3, 8
    key = jax.random.PRNGKey(0)
    k_x, k_p = jax.random.split(key)
    x = jax.random.normal(k_x, (N, nc, 64, 64), jnp.float32)
    raw = init_params(k_p, nc, ndf)
    params, head_couts = prepare_params(raw)

    out = jax.block_until_ready(netd_forward(x, params, head_couts))
    assert out.shape == (N, 1), out.shape
    assert bool(jnp.all((out > 0.0) & (out < 1.0)))

    ref = ref_forward(x, raw)
    err = float(jnp.max(jnp.abs(out - ref)))
    assert err < 2e-2, f"mismatch vs f32 reference: {err}"
    print("KERNEL_OK")
</pallas_src>

<mosaic_0001>
module attributes {stable_mosaic.version = 11 : i64} {
  func.func @_fused_matmul_kernel(%arg0: i32, %arg1: i32, %arg2: i32, %arg3: memref<512x48xbf16, #tpu.memory_space<vmem>>, %arg4: memref<48x128xbf16, #tpu.memory_space<vmem>>, %arg5: memref<1x128xf32, #tpu.memory_space<vmem>>, %arg6: memref<512x128xbf16, #tpu.memory_space<vmem>>, %arg7: memref<512x128xf32, #tpu.memory_space<vmem>>) attributes {dimension_semantics = [#tpu.dimension_semantics<parallel>, #tpu.dimension_semantics<parallel>, #tpu.dimension_semantics<arbitrary>], iteration_bounds = array<i64: 4, 1, 1>, scalar_prefetch = 0 : i64, scratch_operands = 1 : i64, tpu.core_type = #tpu.core_type<tc>, window_params = [{transform_indices = @transform_0, window_bounds = array<i64: 512, 48>}, {transform_indices = @transform_1, window_bounds = array<i64: 48, 128>}, {transform_indices = @transform_2, window_bounds = array<i64: 1, 128>}, {transform_indices = @transform_3, window_bounds = array<i64: 512, 128>}]} {
    %c0_i32 = arith.constant 0 : i32
    %0 = arith.cmpi eq, %arg2, %c0_i32 : i32
    %1 = arith.extui %0 : i1 to i32
    %c0_i32_0 = arith.constant 0 : i32
    %2 = arith.cmpi ne, %1, %c0_i32_0 : i32
    scf.if %2 {
      %cst_10 = arith.constant 0.000000e+00 : f32
      %12 = vector.broadcast %cst_10 : f32 to vector<512x128xf32>
      %c0_11 = arith.constant 0 : index
      %c0_12 = arith.constant 0 : index
      %13 = vector.load %arg7[%c0_11, %c0_12] : memref<512x128xf32, #tpu.memory_space<vmem>>, vector<512x128xf32>
      tpu.vector_store %arg7[%c0_11, %c0_12], %12 {strides = array<i32>} : memref<512x128xf32, #tpu.memory_space<vmem>>, vector<512x128xf32>,
    } else {
    }
    %c0 = arith.constant 0 : index
    %c0_1 = arith.constant 0 : index
    %3 = vector.load %arg7[%c0, %c0_1] : memref<512x128xf32, #tpu.memory_space<vmem>>, vector<512x128xf32>
    %c0_2 = arith.constant 0 : index
    %c0_3 = arith.constant 0 : index
    %4 = vector.load %arg3[%c0_2, %c0_3] : memref<512x48xbf16, #tpu.memory_space<vmem>>, vector<512x48xbf16>
    %c0_4 = arith.constant 0 : index
    %c0_5 = arith.constant 0 : index
    %5 = vector.load %arg4[%c0_4, %c0_5] : memref<48x128xbf16, #tpu.memory_space<vmem>>, vector<48x128xbf16>
    %cst = arith.constant dense<0.000000e+00> : vector<512x128xf32>
    %6 = tpu.matmul %4, %5, %cst {dimension_numbers = #tpu.dot_dimension_numbers<[1], [0], [0], [1], [0, 0, 1, 1], [], []>} : vector<512x48xbf16>, vector<48x128xbf16>, vector<512x128xf32> -> vector<512x128xf32>
    %7 = arith.addf %3, %6 : vector<512x128xf32>
    %c0_6 = arith.constant 0 : index
    %c0_7 = arith.constant 0 : index
    %8 = vector.load %arg7[%c0_6, %c0_7] : memref<512x128xf32, #tpu.memory_space<vmem>>, vector<512x128xf32>
    tpu.vector_store %arg7[%c0_6, %c0_7], %7 {strides = array<i32>} : memref<512x128xf32, #tpu.memory_space<vmem>>, vector<512x128xf32>,
    %c0_i32_8 = arith.constant 0 : i32
    %9 = arith.cmpi eq, %arg2, %c0_i32_8 : i32
    %10 = arith.extui %9 : i1 to i32
    %c0_i32_9 = arith.constant 0 : i32
    %11 = arith.cmpi ne, %10, %c0_i32_9 : i32
    scf.if %11 {
      %c0_10 = arith.constant 0 : index
      %c0_11 = arith.constant 0 : index
      %12 = vector.load %arg7[%c0_10, %c0_11] : memref<512x128xf32, #tpu.memory_space<vmem>>, vector<512x128xf32>
      %c0_12 = arith.constant 0 : index
      %c0_13 = arith.constant 0 : index
      %13 = vector.load %arg5[%c0_12, %c0_13] : memref<1x128xf32, #tpu.memory_space<vmem>>, vector<1x128xf32>
      %14 = vector.broadcast %13 : vector<1x128xf32> to vector<512x128xf32>
      %15 = arith.addf %12, %14 : vector<512x128xf32>
      %cst_14 = arith.constant 2.000000e-01 : f32
      %16 = vector.broadcast %cst_14 : f32 to vector<512x128xf32>
      %17 = arith.mulf %16, %15 : vector<512x128xf32>
      %18 = arith.maximumf %15, %17 : vector<512x128xf32>
      %19 = arith.truncf %18 : vector<512x128xf32> to vector<512x128xbf16>
      %c0_15 = arith.constant 0 : index
      %c0_16 = arith.constant 0 : index
      %20 = vector.load %arg6[%c0_15, %c0_16] : memref<512x128xbf16, #tpu.memory_space<vmem>>, vector<512x128xbf16>
      tpu.vector_store %arg6[%c0_15, %c0_16], %19 {strides = array<i32>} : memref<512x128xbf16, #tpu.memory_space<vmem>>, vector<512x128xbf16>,
    } else {
    }
    return
  }
  func.func @transform_0(%arg0: i32, %arg1: i32, %arg2: i32) -> (i32, i32) {
    %c0_i32 = arith.constant 0 : i32
    return %arg0, %arg2 : i32, i32
  }
  func.func @transform_1(%arg0: i32, %arg1: i32, %arg2: i32) -> (i32, i32) {
    %c0_i32 = arith.constant 0 : i32
    return %arg2, %arg1 : i32, i32
  }
  func.func @transform_2(%arg0: i32, %arg1: i32, %arg2: i32) -> (i32, i32) {
    %c0_i32 = arith.constant 0 : i32
    %c0_i32_0 = arith.constant 0 : i32
    return %c0_i32, %arg1 : i32, i32
  }
  func.func @transform_3(%arg0: i32, %arg1: i32, %arg2: i32) -> (i32, i32) {
    %c0_i32 = arith.constant 0 : i32
    return %arg0, %arg1 : i32, i32
  }
}

module attributes {stable_mosaic.version = 11 : i64} {
  func.func @_fused_matmul_kernel(%arg0: i32, %arg1: i32, %arg2: i32, %arg3: memref<256x128xbf16, #tpu.memory_space<vmem>>, %arg4: memref<128x128xbf16, #tpu.memory_space<vmem>>, %arg5: memref<1x128xf32, #tpu.memory_space<vmem>>, %arg6: memref<256x128xbf16, #tpu.memory_space<vmem>>, %arg7: memref<256x128xf32, #tpu.memory_space<vmem>>) attributes {dimension_semantics = [#tpu.dimension_semantics<parallel>, #tpu.dimension_semantics<parallel>, #tpu.dimension_semantics<arbitrary>], iteration_bounds = array<i64: 2, 1, 1>, scalar_prefetch = 0 : i64, scratch_operands = 1 : i64, tpu.core_type = #tpu.core_type<tc>, window_params = [{transform_indices = @transform_0, window_bounds = array<i64: 256, 128>}, {transform_indices = @transform_1, window_bounds = array<i64: 128, 128>}, {transform_indices = @transform_2, window_bounds = array<i64: 1, 128>}, {transform_indices = @transform_3, window_bounds = array<i64: 256, 128>}]} {
    %c0_i32 = arith.constant 0 : i32
    %0 = arith.cmpi eq, %arg2, %c0_i32 : i32
    %1 = arith.extui %0 : i1 to i32
    %c0_i32_0 = arith.constant 0 : i32
    %2 = arith.cmpi ne, %1, %c0_i32_0 : i32
    scf.if %2 {
      %cst_10 = arith.constant 0.000000e+00 : f32
      %12 = vector.broadcast %cst_10 : f32 to vector<256x128xf32>
      %c0_11 = arith.constant 0 : index
      %c0_12 = arith.constant 0 : index
      %13 = vector.load %arg7[%c0_11, %c0_12] : memref<256x128xf32, #tpu.memory_space<vmem>>, vector<256x128xf32>
      tpu.vector_store %arg7[%c0_11, %c0_12], %12 {strides = array<i32>} : memref<256x128xf32, #tpu.memory_space<vmem>>, vector<256x128xf32>,
    } else {
    }
    %c0 = arith.constant 0 : index
    %c0_1 = arith.constant 0 : index
    %3 = vector.load %arg7[%c0, %c0_1] : memref<256x128xf32, #tpu.memory_space<vmem>>, vector<256x128xf32>
    %c0_2 = arith.constant 0 : index
    %c0_3 = arith.constant 0 : index
    %4 = vector.load %arg3[%c0_2, %c0_3] : memref<256x128xbf16, #tpu.memory_space<vmem>>, vector<256x128xbf16>
    %c0_4 = arith.constant 0 : index
    %c0_5 = arith.constant 0 : index
    %5 = vector.load %arg4[%c0_4, %c0_5] : memref<128x128xbf16, #tpu.memory_space<vmem>>, vector<128x128xbf16>
    %cst = arith.constant dense<0.000000e+00> : vector<256x128xf32>
    %6 = tpu.matmul %4, %5, %cst {dimension_numbers = #tpu.dot_dimension_numbers<[1], [0], [0], [1], [0, 0, 1, 1], [], []>} : vector<256x128xbf16>, vector<128x128xbf16>, vector<256x128xf32> -> vector<256x128xf32>
    %7 = arith.addf %3, %6 : vector<256x128xf32>
    %c0_6 = arith.constant 0 : index
    %c0_7 = arith.constant 0 : index
    %8 = vector.load %arg7[%c0_6, %c0_7] : memref<256x128xf32, #tpu.memory_space<vmem>>, vector<256x128xf32>
    tpu.vector_store %arg7[%c0_6, %c0_7], %7 {strides = array<i32>} : memref<256x128xf32, #tpu.memory_space<vmem>>, vector<256x128xf32>,
    %c0_i32_8 = arith.constant 0 : i32
    %9 = arith.cmpi eq, %arg2, %c0_i32_8 : i32
    %10 = arith.extui %9 : i1 to i32
    %c0_i32_9 = arith.constant 0 : i32
    %11 = arith.cmpi ne, %10, %c0_i32_9 : i32
    scf.if %11 {
      %c0_10 = arith.constant 0 : index
      %c0_11 = arith.constant 0 : index
      %12 = vector.load %arg7[%c0_10, %c0_11] : memref<256x128xf32, #tpu.memory_space<vmem>>, vector<256x128xf32>
      %c0_12 = arith.constant 0 : index
      %c0_13 = arith.constant 0 : index
      %13 = vector.load %arg5[%c0_12, %c0_13] : memref<1x128xf32, #tpu.memory_space<vmem>>, vector<1x128xf32>
      %14 = vector.broadcast %13 : vector<1x128xf32> to vector<256x128xf32>
      %15 = arith.addf %12, %14 : vector<256x128xf32>
      %cst_14 = arith.constant 2.000000e-01 : f32
      %16 = vector.broadcast %cst_14 : f32 to vector<256x128xf32>
      %17 = arith.mulf %16, %15 : vector<256x128xf32>
      %18 = arith.maximumf %15, %17 : vector<256x128xf32>
      %19 = arith.truncf %18 : vector<256x128xf32> to vector<256x128xbf16>
      %c0_15 = arith.constant 0 : index
      %c0_16 = arith.constant 0 : index
      %20 = vector.load %arg6[%c0_15, %c0_16] : memref<256x128xbf16, #tpu.memory_space<vmem>>, vector<256x128xbf16>
      tpu.vector_store %arg6[%c0_15, %c0_16], %19 {strides = array<i32>} : memref<256x128xbf16, #tpu.memory_space<vmem>>, vector<256x128xbf16>,
    } else {
    }
    return
  }
  func.func @transform_0(%arg0: i32, %arg1: i32, %arg2: i32) -> (i32, i32) {
    %c0_i32 = arith.constant 0 : i32
    return %arg0, %arg2 : i32, i32
  }
  func.func @transform_1(%arg0: i32, %arg1: i32, %arg2: i32) -> (i32, i32) {
    %c0_i32 = arith.constant 0 : i32
    return %arg2, %arg1 : i32, i32
  }
  func.func @transform_2(%arg0: i32, %arg1: i32, %arg2: i32) -> (i32, i32) {
    %c0_i32 = arith.constant 0 : i32
    %c0_i32_0 = arith.constant 0 : i32
    return %c0_i32, %arg1 : i32, i32
  }
  func.func @transform_3(%arg0: i32, %arg1: i32, %arg2: i32) -> (i32, i32) {
    %c0_i32 = arith.constant 0 : i32
    return %arg0, %arg1 : i32, i32
  }
}

module attributes {stable_mosaic.version = 11 : i64} {
  func.func @_fused_matmul_kernel(%arg0: i32, %arg1: i32, %arg2: i32, %arg3: memref<64x256xbf16, #tpu.memory_space<vmem>>, %arg4: memref<256x128xbf16, #tpu.memory_space<vmem>>, %arg5: memref<1x128xf32, #tpu.memory_space<vmem>>, %arg6: memref<64x128xbf16, #tpu.memory_space<vmem>>, %arg7: memref<64x128xf32, #tpu.memory_space<vmem>>) attributes {dimension_semantics = [#tpu.dimension_semantics<parallel>, #tpu.dimension_semantics<parallel>, #tpu.dimension_semantics<arbitrary>], iteration_bounds = array<i64: 2, 1, 1>, scalar_prefetch = 0 : i64, scratch_operands = 1 : i64, tpu.core_type = #tpu.core_type<tc>, window_params = [{transform_indices = @transform_0, window_bounds = array<i64: 64, 256>}, {transform_indices = @transform_1, window_bounds = array<i64: 256, 128>}, {transform_indices = @transform_2, window_bounds = array<i64: 1, 128>}, {transform_indices = @transform_3, window_bounds = array<i64: 64, 128>}]} {
    %c0_i32 = arith.constant 0 : i32
    %0 = arith.cmpi eq, %arg2, %c0_i32 : i32
    %1 = arith.extui %0 : i1 to i32
    %c0_i32_0 = arith.constant 0 : i32
    %2 = arith.cmpi ne, %1, %c0_i32_0 : i32
    scf.if %2 {
      %cst_10 = arith.constant 0.000000e+00 : f32
      %12 = vector.broadcast %cst_10 : f32 to vector<64x128xf32>
      %c0_11 = arith.constant 0 : index
      %c0_12 = arith.constant 0 : index
      %13 = vector.load %arg7[%c0_11, %c0_12] : memref<64x128xf32, #tpu.memory_space<vmem>>, vector<64x128xf32>
      tpu.vector_store %arg7[%c0_11, %c0_12], %12 {strides = array<i32>} : memref<64x128xf32, #tpu.memory_space<vmem>>, vector<64x128xf32>,
    } else {
    }
    %c0 = arith.constant 0 : index
    %c0_1 = arith.constant 0 : index
    %3 = vector.load %arg7[%c0, %c0_1] : memref<64x128xf32, #tpu.memory_space<vmem>>, vector<64x128xf32>
    %c0_2 = arith.constant 0 : index
    %c0_3 = arith.constant 0 : index
    %4 = vector.load %arg3[%c0_2, %c0_3] : memref<64x256xbf16, #tpu.memory_space<vmem>>, vector<64x256xbf16>
    %c0_4 = arith.constant 0 : index
    %c0_5 = arith.constant 0 : index
    %5 = vector.load %arg4[%c0_4, %c0_5] : memref<256x128xbf16, #tpu.memory_space<vmem>>, vector<256x128xbf16>
    %cst = arith.constant dense<0.000000e+00> : vector<64x128xf32>
    %6 = tpu.matmul %4, %5, %cst {dimension_numbers = #tpu.dot_dimension_numbers<[1], [0], [0], [1], [0, 0, 1, 1], [], []>} : vector<64x256xbf16>, vector<256x128xbf16>, vector<64x128xf32> -> vector<64x128xf32>
    %7 = arith.addf %3, %6 : vector<64x128xf32>
    %c0_6 = arith.constant 0 : index
    %c0_7 = arith.constant 0 : index
    %8 = vector.load %arg7[%c0_6, %c0_7] : memref<64x128xf32, #tpu.memory_space<vmem>>, vector<64x128xf32>
    tpu.vector_store %arg7[%c0_6, %c0_7], %7 {strides = array<i32>} : memref<64x128xf32, #tpu.memory_space<vmem>>, vector<64x128xf32>,
    %c0_i32_8 = arith.constant 0 : i32
    %9 = arith.cmpi eq, %arg2, %c0_i32_8 : i32
    %10 = arith.extui %9 : i1 to i32
    %c0_i32_9 = arith.constant 0 : i32
    %11 = arith.cmpi ne, %10, %c0_i32_9 : i32
    scf.if %11 {
      %c0_10 = arith.constant 0 : index
      %c0_11 = arith.constant 0 : index
      %12 = vector.load %arg7[%c0_10, %c0_11] : memref<64x128xf32, #tpu.memory_space<vmem>>, vector<64x128xf32>
      %c0_12 = arith.constant 0 : index
      %c0_13 = arith.constant 0 : index
      %13 = vector.load %arg5[%c0_12, %c0_13] : memref<1x128xf32, #tpu.memory_space<vmem>>, vector<1x128xf32>
      %14 = vector.broadcast %13 : vector<1x128xf32> to vector<64x128xf32>
      %15 = arith.addf %12, %14 : vector<64x128xf32>
      %cst_14 = arith.constant 2.000000e-01 : f32
      %16 = vector.broadcast %cst_14 : f32 to vector<64x128xf32>
      %17 = arith.mulf %16, %15 : vector<64x128xf32>
      %18 = arith.maximumf %15, %17 : vector<64x128xf32>
      %19 = arith.truncf %18 : vector<64x128xf32> to vector<64x128xbf16>
      %c0_15 = arith.constant 0 : index
      %c0_16 = arith.constant 0 : index
      %20 = vector.load %arg6[%c0_15, %c0_16] : memref<64x128xbf16, #tpu.memory_space<vmem>>, vector<64x128xbf16>
      tpu.vector_store %arg6[%c0_15, %c0_16], %19 {strides = array<i32>} : memref<64x128xbf16, #tpu.memory_space<vmem>>, vector<64x128xbf16>,
    } else {
    }
    return
  }
  func.func @transform_0(%arg0: i32, %arg1: i32, %arg2: i32) -> (i32, i32) {
    %c0_i32 = arith.constant 0 : i32
    return %arg0, %arg2 : i32, i32
  }
  func.func @transform_1(%arg0: i32, %arg1: i32, %arg2: i32) -> (i32, i32) {
    %c0_i32 = arith.constant 0 : i32
    return %arg2, %arg1 : i32, i32
  }
  func.func @transform_2(%arg0: i32, %arg1: i32, %arg2: i32) -> (i32, i32) {
    %c0_i32 = arith.constant 0 : i32
    %c0_i32_0 = arith.constant 0 : i32
    return %c0_i32, %arg1 : i32, i32
  }
  func.func @transform_3(%arg0: i32, %arg1: i32, %arg2: i32) -> (i32, i32) {
    %c0_i32 = arith.constant 0 : i32
    return %arg0, %arg1 : i32, i32
  }
}

module attributes {stable_mosaic.version = 11 : i64} {
  func.func @_tail_kernel(%arg0: i32, %arg1: memref<32x512xbf16, #tpu.memory_space<vmem>>, %arg2: memref<512x128xbf16, #tpu.memory_space<vmem>>, %arg3: memref<1x128xf32, #tpu.memory_space<vmem>>, %arg4: memref<32x128xf32, #tpu.memory_space<vmem>>, %arg5: memref<2x1xf32, #tpu.memory_space<vmem>>) attributes {dimension_semantics = [#tpu.dimension_semantics<arbitrary>], iteration_bounds = array<i64: 1>, scalar_prefetch = 0 : i64, scratch_operands = 0 : i64, tpu.core_type = #tpu.core_type<tc>, window_params = [{pipeline_mode = #tpu.pipeline_mode<synchronous>, transform_indices = @transform_0, window_bounds = array<i64: 32, 512>}, {pipeline_mode = #tpu.pipeline_mode<synchronous>, transform_indices = @transform_1, window_bounds = array<i64: 512, 128>}, {pipeline_mode = #tpu.pipeline_mode<synchronous>, transform_indices = @transform_2, window_bounds = array<i64: 1, 128>}, {pipeline_mode = #tpu.pipeline_mode<synchronous>, transform_indices = @transform_3, window_bounds = array<i64: 32, 128>}, {pipeline_mode = #tpu.pipeline_mode<synchronous>, transform_indices = @transform_4, window_bounds = array<i64: 2, 1>}]} {
    %c0 = arith.constant 0 : index
    %c0_0 = arith.constant 0 : index
    %0 = vector.load %arg1[%c0, %c0_0] : memref<32x512xbf16, #tpu.memory_space<vmem>>, vector<32x512xbf16>
    %c0_1 = arith.constant 0 : index
    %c0_2 = arith.constant 0 : index
    %1 = vector.load %arg2[%c0_1, %c0_2] : memref<512x128xbf16, #tpu.memory_space<vmem>>, vector<512x128xbf16>
    %cst = arith.constant dense<0.000000e+00> : vector<32x128xf32>
    %2 = tpu.matmul %0, %1, %cst {dimension_numbers = #tpu.dot_dimension_numbers<[1], [0], [0], [1], [0, 0, 1, 1], [], []>} : vector<32x512xbf16>, vector<512x128xbf16>, vector<32x128xf32> -> vector<32x128xf32>
    %c0_3 = arith.constant 0 : index
    %c0_4 = arith.constant 0 : index
    %3 = vector.load %arg3[%c0_3, %c0_4] : memref<1x128xf32, #tpu.memory_space<vmem>>, vector<1x128xf32>
    %4 = vector.broadcast %3 : vector<1x128xf32> to vector<32x128xf32>
    %5 = arith.addf %2, %4 : vector<32x128xf32>
    %cst_5 = arith.constant 2.000000e-01 : f32
    %6 = vector.broadcast %cst_5 : f32 to vector<32x128xf32>
    %7 = arith.mulf %6, %5 : vector<32x128xf32>
    %8 = arith.maximumf %5, %7 : vector<32x128xf32>
    %c0_6 = arith.constant 0 : index
    %c0_7 = arith.constant 0 : index
    %9 = vector.load %arg4[%c0_6, %c0_7] : memref<32x128xf32, #tpu.memory_space<vmem>>, vector<32x128xf32>
    %10 = arith.mulf %8, %9 : vector<32x128xf32>
    %11 = tpu.iota {dimensions = array<i32: 1>} : vector<2x32xi32>
    %12 = tpu.iota {dimensions = array<i32: 0>} : vector<2x32xi32>
    %c16_i32 = arith.constant 16 : i32
    %13 = vector.broadcast %c16_i32 : i32 to vector<2x32xi32>
    %14 = arith.muli %12, %13 : vector<2x32xi32>
    %15 = arith.cmpi sge, %11, %14 : vector<2x32xi32>
    %c16_i32_8 = arith.constant 16 : i32
    %16 = vector.broadcast %c16_i32_8 : i32 to vector<2x32xi32>
    %17 = arith.addi %14, %16 : vector<2x32xi32>
    %18 = arith.cmpi slt, %11, %17 : vector<2x32xi32>
    %19 = arith.andi %15, %18 : vector<2x32xi1>
    %20 = arith.extui %19 : vector<2x32xi1> to vector<2x32xi32>
    %21 = arith.sitofp %20 : vector<2x32xi32> to vector<2x32xf32>
    %cst_9 = arith.constant dense<0.000000e+00> : vector<2x128xf32>
    %22 = tpu.matmul %21, %10, %cst_9 {dimension_numbers = #tpu.dot_dimension_numbers<[1], [0], [0], [1], [0, 0, 1, 1], [], []>} : vector<2x32xf32>, vector<32x128xf32>, vector<2x128xf32> -> vector<2x128xf32>
    %cst_10 = arith.constant dense<0.000000e+00> : vector<2xf32>
    %23 = vector.multi_reduction <add>, %22, %cst_10 [1] : vector<2x128xf32> to vector<2xf32>
    %24 = vector.shape_cast %23 : vector<2xf32> to vector<2x1xf32>
    %cst_11 = arith.constant 0.000000e+00 : f32
    %25 = vector.broadcast %cst_11 : f32 to vector<2x1xf32>
    %26 = arith.subf %25, %24 : vector<2x1xf32>
    %27 = math.exp %26 : vector<2x1xf32>
    %cst_12 = arith.constant 1.000000e+00 : f32
    %28 = vector.broadcast %cst_12 : f32 to vector<2x1xf32>
    %29 = arith.addf %28, %27 : vector<2x1xf32>
    %30 = tpu.reciprocal %29 {approx = true} : vector<2x1xf32> -> vector<2x1xf32>
    %c0_13 = arith.constant 0 : index
    %c0_14 = arith.constant 0 : index
    %31 = vector.load %arg5[%c0_13, %c0_14] : memref<2x1xf32, #tpu.memory_space<vmem>>, vector<2x1xf32>
    tpu.vector_store %arg5[%c0_13, %c0_14], %30 {strides = array<i32>} : memref<2x1xf32, #tpu.memory_space<vmem>>, vector<2x1xf32>,
    return
  }
  func.func @transform_0(%arg0: i32) -> (i32, i32) {
    %c0_i32 = arith.constant 0 : i32
    %c0_i32_0 = arith.constant 0 : i32
    %c0_i32_1 = arith.constant 0 : i32
    return %c0_i32, %c0_i32_0 : i32, i32
  }
  func.func @transform_1(%arg0: i32) -> (i32, i32) {
    %c0_i32 = arith.constant 0 : i32
    %c0_i32_0 = arith.constant 0 : i32
    %c0_i32_1 = arith.constant 0 : i32
    return %c0_i32, %c0_i32_0 : i32, i32
  }
  func.func @transform_2(%arg0: i32) -> (i32, i32) {
    %c0_i32 = arith.constant 0 : i32
    %c0_i32_0 = arith.constant 0 : i32
    %c0_i32_1 = arith.constant 0 : i32
    return %c0_i32, %c0_i32_0 : i32, i32
  }
  func.func @transform_3(%arg0: i32) -> (i32, i32) {
    %c0_i32 = arith.constant 0 : i32
    %c0_i32_0 = arith.constant 0 : i32
    %c0_i32_1 = arith.constant 0 : i32
    return %c0_i32, %c0_i32_0 : i32, i32
  }
  func.func @transform_4(%arg0: i32) -> (i32, i32) {
    %c0_i32 = arith.constant 0 : i32
    %c0_i32_0 = arith.constant 0 : i32
    %c0_i32_1 = arith.constant 0 : i32
    return %c0_i32, %c0_i32_0 : i32, i32
  }
}

</mosaic_0001>

<llo_original>
// kernel: netd_forward.4
$region0: #{netd_forward.4}
  #allocation0 [shape = 'u32[]', space=smem, size = 0x4, offset = 0x4, fixed_abs, tag = 'smem constant byte address 0x4 - core index']
  #allocation1 [shape = 'u32[72,128]{1,0:T(1,128)}', space=vmem, size = 0x9000, scoped, tag = 'internal scratch']
  #allocation2 [shape = 'f32[512,128]{1,0:T(8,128)}', space=vmem, size = 0x40000, scoped, tag = 'scratch operand']
  %s0 = inlined_call_operand.vmem [shape: bf16[2048,48], index: 0, kind: input, shape index: {}]
  %s1 = inlined_call_operand.vmem [shape: bf16[48,128], index: 1, kind: input, shape index: {}]
  %s2 = inlined_call_operand.vmem [shape: f32[1,128], index: 2, kind: input, shape index: {}]
  %s3 = inlined_call_operand.vmem [shape: bf16[2048,128], index: 3, kind: output, shape index: {}]
  %s4 = sld [smem:[#allocation0]]
  $region53: #{netd_forward.4} parent=0
    _
  %s6 = ssub.s32 1, %s4
  %s7 = scalar_select 0, %s6, %s4
  loop: start=0, step=1, limit=6
  $region2: #{netd_forward.4} parent=0 // loop_pre_header
    _
  $region3: #{netd_forward.4} parent=0 // loop_header
    %s9 = sphi 0, %s13
    %p10 = scmp.ge.s32.totalorder %s9, 6
    %s16 = sphi 0, %s35
    %s17 = sphi 0, %s31
    %s18 = sphi 0, %s27
    %s19 = sphi 0, %s16
    %s20 = sphi 0, %s17
    %s21 = sphi 0, %s18
    %s22 = sphi 0, %s19
    %s23 = sphi 0, %s20
    %s24 = sphi 0, %s21
    %s40 = sphi 0, %s42
    %s43 = sphi 0, %s40
    %s44 = sphi 0, %s43
    %s60 = sphi 0, %s44
    %s68 = sphi 0, %s70
    %s71 = sphi 0, %s68
    %s72 = sphi 0, %s71
    %s88 = sphi 0, %s72
    %s94 = sphi 0, %s96
    %s97 = sphi 0, %s94
    %s98 = sphi 0, %s97
    %s114 = sphi 0, %s98
    %s122 = sphi 0, %s124
    %s125 = sphi 0, %s122
    %s126 = sphi 0, %s125
    %s142 = sphi 0, %s126
  $region4: #{netd_forward.4} parent=0 // loop_header_branch
    %12 = sbr.rel (%p10) target = $region8
  $region5: #{netd_forward.4} parent=0 // loop_body
    %s14 = ssub.s32 %s9, 1
    %s15 = ssub.s32 %s9, 2
    %s25 = sadd.s32 1, %s18
    %p26 = scmp.ge.s32.totalorder %s25, 1
    %s27 = scalar_select %p26, 0, %s25
    %s28 = sadd.s32 1, %s17
    %s29 = scalar_select %p26, %s28, %s17
    %p30 = scmp.ge.s32.totalorder %s29, 1
    %s31 = scalar_select %p30, 0, %s29
    %s32 = sadd.s32 1, %s16
    %s33 = scalar_select %p30, %s32, %s16
    %p34 = scmp.ge.s32.totalorder %s33, 4
    %s35 = scalar_select %p34, 0, %s33
    %s36 = ssub.s32 %s16, %s35
    %s37 = ssub.s32 %s18, %s27
    %s38 = sor.u32 %s36, %s37
    %p39 = scmp.eq.s32.totalorder %s38, 0
    %s41 = sadd.s32 %s40, 1
    %s42 = scalar_select %p39, %s40, %s41
    %p45 = pneg %p39
    %p46 = scmp.eq.s32.totalorder %s9, 3
    %p47 = por %p45, %p46
    %p48 = scmp.ne.s32.totalorder %s40, %s43
    %p49 = scmp.eq.s32.totalorder %s9, 0
    %p50 = por %p48, %p49
    %p51 = scmp.ne.s32.totalorder %s40, %s43
    %p52 = scmp.eq.s32.totalorder %s14, 3
    %p53 = por %p51, %p52
    %p54 = scmp.ne.s32.totalorder %s43, %s44
    %p55 = scmp.eq.s32.totalorder %s14, 0
    %p56 = por %p54, %p55
    %p57 = scmp.ne.s32.totalorder %s43, %s44
    %p58 = scmp.eq.s32.totalorder %s15, 3
    %p59 = por %p57, %p58
    %p61 = scmp.ne.s32.totalorder %s44, %s60
    %p62 = scmp.eq.s32.totalorder %s15, 0
    %p63 = por %p61, %p62
    %s64 = ssub.s32 %s18, %s27
    %s65 = ssub.s32 %s17, %s31
    %s66 = sor.u32 %s64, %s65
    %p67 = scmp.eq.s32.totalorder %s66, 0
    %s69 = sadd.s32 %s68, 1
    %s70 = scalar_select %p67, %s68, %s69
    %p73 = pneg %p67
    %p74 = scmp.eq.s32.totalorder %s9, 3
    %p75 = por %p73, %p74
    %p76 = scmp.ne.s32.totalorder %s68, %s71
    %p77 = scmp.eq.s32.totalorder %s9, 0
    %p78 = por %p76, %p77
    %p79 = scmp.ne.s32.totalorder %s68, %s71
    %p80 = scmp.eq.s32.totalorder %s14, 3
    %p81 = por %p79, %p80
    %p82 = scmp.ne.s32.totalorder %s71, %s72
    %p83 = scmp.eq.s32.totalorder %s14, 0
    %p84 = por %p82, %p83
    %p85 = scmp.ne.s32.totalorder %s71, %s72
    %p86 = scmp.eq.s32.totalorder %s15, 3
    %p87 = por %p85, %p86
    %p89 = scmp.ne.s32.totalorder %s72, %s88
    %p90 = scmp.eq.s32.totalorder %s15, 0
    %p91 = por %p89, %p90
    %s92 = ssub.s32 %s17, %s31
    %p93 = scmp.eq.s32.totalorder %s92, 0
    %s95 = sadd.s32 %s94, 1
    %s96 = scalar_select %p93, %s94, %s95
    %p99 = pneg %p93
    %p100 = scmp.eq.s32.totalorder %s9, 3
    %p101 = por %p99, %p100
    %p102 = scmp.ne.s32.totalorder %s94, %s97
    %p103 = scmp.eq.s32.totalorder %s9, 0
    %p104 = por %p102, %p103
    %p105 = scmp.ne.s32.totalorder %s94, %s97
    %p106 = scmp.eq.s32.totalorder %s14, 3
    %p107 = por %p105, %p106
    %p108 = scmp.ne.s32.totalorder %s97, %s98
    %p109 = scmp.eq.s32.totalorder %s14, 0
    %p110 = por %p108, %p109
    %p111 = scmp.ne.s32.totalorder %s97, %s98
    %p112 = scmp.eq.s32.totalorder %s15, 3
    %p113 = por %p111, %p112
    %p115 = scmp.ne.s32.totalorder %s98, %s114
    %p116 = scmp.eq.s32.totalorder %s15, 0
    %p117 = por %p115, %p116
    %s118 = ssub.s32 %s16, %s35
    %s119 = ssub.s32 %s17, %s31
    %s120 = sor.u32 %s118, %s119
    %p121 = scmp.eq.s32.totalorder %s120, 0
    %s123 = sadd.s32 %s122, 1
    %s124 = scalar_select %p121, %s122, %s123
    %p127 = pneg %p121
    %p128 = scmp.eq.s32.totalorder %s9, 3
    %p129 = por %p127, %p128
    %p130 = scmp.ne.s32.totalorder %s122, %s125
    %p131 = scmp.eq.s32.totalorder %s9, 0
    %p132 = por %p130, %p131
    %p133 = scmp.ne.s32.totalorder %s122, %s125
    %p134 = scmp.eq.s32.totalorder %s14, 3
    %p135 = por %p133, %p134
    %p136 = scmp.ne.s32.totalorder %s125, %s126
    %p137 = scmp.eq.s32.totalorder %s14, 0
    %p138 = por %p136, %p137
    %p139 = scmp.ne.s32.totalorder %s125, %s126
    %p140 = scmp.eq.s32.totalorder %s15, 3
    %p141 = por %p139, %p140
    %p143 = scmp.ne.s32.totalorder %s126, %s142
    %p144 = scmp.eq.s32.totalorder %s15, 0
    %p145 = por %p143, %p144
    %p146 = scmp.le.s32.totalorder 1, %s9
    %p147 = scmp.lt.s32.totalorder %s9, 5
    %p148 = pnand %p146, %p147
    %p149 = pneg %p148
    // Predicated region
    $region9: #{netd_forward.4} parent=5 // pred_check
      _
    $region10: #{netd_forward.4} parent=5 // pred_check_branch
      %151 = sbr.rel (%p148) target = $region12
    $region11: #{netd_forward.4} parent=5 // pred_region
      %s152 = ssub.s32 %s9, 1
      // Predicated region
      $region13: #{netd_forward.4} parent=11 // pred_check
        %p153 = pneg %p84
      $region14: #{netd_forward.4} parent=11 // pred_check_branch
        %155 = sbr.rel (%p153) target = $region16
      $region15: #{netd_forward.4} parent=11 // pred_region
        %s156 = smul.u32 6, %s21
        %p157 = scmp.lt.s32.totalorder %s156, 5
        %s158 = scalar_select %p157, %s156, 5
        %p159 = scmp.lt.s32.totalorder %s20, 0
        %s160 = scalar_select %p159, %s20, 0
        %s161 = sadd.s32 %s160, %s158
        %s162 = smul.addr %s161, 4
        %s163 = scalar_lea.vmem %s1, %s162
        %s164 = smul.u32 6, %s21
      $region16: #{netd_forward.4} parent=11 // pred_fallthru
        _
      // Predicated region
      $region17: #{netd_forward.4} parent=11 // pred_check
        %p165 = pneg %p110
      $region18: #{netd_forward.4} parent=11 // pred_check_branch
        %167 = sbr.rel (%p165) target = $region20
      $region19: #{netd_forward.4} parent=11 // pred_region
        %p168 = scmp.lt.s32.totalorder %s20, 0
        %s169 = scalar_select %p168, %s20, 0
        %s170 = scalar_lea.vmem %s2, %s169
      $region20: #{netd_forward.4} parent=11 // pred_fallthru
        _
    $region12: #{netd_forward.4} parent=5 // pred_fallthru
      _
    %p171 = scmp.lt.s32.totalorder %s9, 4
    // Predicated region
    $region21: #{netd_forward.4} parent=5 // pred_check
      %p172 = pneg %p171
    $region22: #{netd_forward.4} parent=5 // pred_check_branch
      %174 = sbr.rel (%p172) target = $region24
    $region23: #{netd_forward.4} parent=5 // pred_region
      // Predicated region
      $region25: #{netd_forward.4} parent=23 // pred_check
        %p175 = pneg %p50
      $region26: #{netd_forward.4} parent=23 // pred_check_branch
        %177 = sbr.rel (%p175) target = $region28
      $region27: #{netd_forward.4} parent=23 // pred_region
        %s178 = smul.u32 64, %s16
        %p179 = scmp.lt.s32.totalorder %s178, 255
        %s180 = scalar_select %p179, %s178, 255
        %p181 = scmp.lt.s32.totalorder %s18, 0
        %s182 = scalar_select %p181, %s18, 0
        %s183 = sadd.s32 %s182, %s180
        %s184 = smul.addr %s183, 4
        %s185 = scalar_lea.vmem %s0, %s184
        %s186 = smul.u32 64, %s16
      $region28: #{netd_forward.4} parent=23 // pred_fallthru
        _
    $region24: #{netd_forward.4} parent=5 // pred_fallthru
      _
    %p187 = scmp.le.s32.totalorder 1, %s9
    %p188 = scmp.lt.s32.totalorder %s9, 5
    %p189 = pnand %p187, %p188
    %p190 = pneg %p189
    // Predicated region
    $region29: #{netd_forward.4} parent=5 // pred_check
      _
    $region30: #{netd_forward.4} parent=5 // pred_check_branch
      %192 = sbr.rel (%p189) target = $region32
    $region31: #{netd_forward.4} parent=5 // pred_region
      %s193 = ssub.s32 %s9, 1
      %s194 = smul.u32 64, %s19
      %p195 = scmp.lt.s32.totalorder %s194, 255
      %s196 = scalar_select %p195, %s194, 255
      %p197 = scmp.lt.s32.totalorder %s21, 0
      %s198 = scalar_select %p197, %s21, 0
      %s199 = sadd.s32 %s198, %s196
      %s200 = smul.addr %s199, 4
      %s201 = scalar_lea.vmem %s0, %s200
      %p202 = pneg %p56
      %p203 = pneg %p53
      %s204 = smul.u32 6, %s21
      %p205 = scmp.lt.s32.totalorder %s204, 5
      %s206 = scalar_select %p205, %s204, 5
      %p207 = scmp.lt.s32.totalorder %s20, 0
      %s208 = scalar_select %p207, %s20, 0
      %s209 = sadd.s32 %s208, %s206
      %s210 = smul.addr %s209, 4
      %s211 = scalar_lea.vmem %s1, %s210
      %p212 = pneg %p84
      %p213 = pneg %p81
      %p214 = scmp.lt.s32.totalorder %s20, 0
      %s215 = scalar_select %p214, %s20, 0
      %s216 = scalar_lea.vmem %s2, %s215
      %p217 = pneg %p110
      %p218 = pneg %p107
      %p219 = pneg %p138
      %p220 = pneg %p135
      %s221 = smul.u32 64, %s19
      %p222 = scmp.lt.s32.totalorder %s221, 255
      %s223 = scalar_select %p222, %s221, 255
      %p224 = scmp.lt.s32.totalorder %s20, 0
      %s225 = scalar_select %p224, %s20, 0
      %s226 = sadd.s32 %s225, %s223
      %s227 = smul.addr %s226, 4
      %s228 = scalar_lea.vmem %s3, %s227
      %s229 = smul.u32 64, %s19
      %p230 = scmp.lt.s32.totalorder %s229, 255
      %s231 = scalar_select %p230, %s229, 255
      %p232 = scmp.lt.s32.totalorder %s21, 0
      %s233 = scalar_select %p232, %s21, 0
      %s234 = sadd.s32 %s233, %s231
      %s235 = smul.addr %s234, 4
      %s236 = scalar_lea.vmem %s0, %s235
      %s237 = smul.u32 64, %s19
      %s238 = smul.u32 6, %s21
      %p239 = scmp.lt.s32.totalorder %s238, 5
      %s240 = scalar_select %p239, %s238, 5
      %p241 = scmp.lt.s32.totalorder %s20, 0
      %s242 = scalar_select %p241, %s20, 0
      %s243 = sadd.s32 %s242, %s240
      %s244 = smul.addr %s243, 4
      %s245 = scalar_lea.vmem %s1, %s244
      %s246 = smul.u32 6, %s21
      %p247 = scmp.lt.s32.totalorder %s20, 0
      %s248 = scalar_select %p247, %s20, 0
      %s249 = scalar_lea.vmem %s2, %s248
      %s250 = smul.u32 64, %s19
      %p251 = scmp.lt.s32.totalorder %s250, 255
      %s252 = scalar_select %p251, %s250, 255
      %p253 = scmp.lt.s32.totalorder %s20, 0
      %s254 = scalar_select %p253, %s20, 0
      %s255 = sadd.s32 %s254, %s252
      %s256 = smul.addr %s255, 4
      %s257 = scalar_lea.vmem %s3, %s256
      %s258 = smul.u32 64, %s19
      %p260 = scmp.eq.s32.totalorder %s21, 0
      // Predicated region
      $region33: #{netd_forward.4} parent=31 // pred_check
        %p261 = pneg %p260
      $region34: #{netd_forward.4} parent=31 // pred_check_branch
        %263 = sbr.rel (%p261) target = $region36
      $region35: #{netd_forward.4} parent=31 // pred_region
        %264 = vst [vmem:[#allocation2] sm:$0xff] 0.0
        %265 = vst [vmem:[#allocation2 + $0x8] sm:$0xff] 0.0
        %266 = vst [vmem:[#allocation2 + $0x10] sm:$0xff] 0.0
        %267 = vst [vmem:[#allocation2 + $0x18] sm:$0xff] 0.0
        %268 = vst [vmem:[#allocation2 + $0x20] sm:$0xff] 0.0
        %269 = vst [vmem:[#allocation2 + $0x28] sm:$0xff] 0.0
        %270 = vst [vmem:[#allocation2 + $0x30] sm:$0xff] 0.0
        %271 = vst [vmem:[#allocation2 + $0x38] sm:$0xff] 0.0
        %272 = vst [vmem:[#allocation2 + $0x40] sm:$0xff] 0.0
        %273 = vst [vmem:[#allocation2 + $0x48] sm:$0xff] 0.0
        %274 = vst [vmem:[#allocation2 + $0x50] sm:$0xff] 0.0
        %275 = vst [vmem:[#allocation2 + $0x58] sm:$0xff] 0.0
        %276 = vst [vmem:[#allocation2 + $0x60] sm:$0xff] 0.0
        %277 = vst [vmem:[#allocation2 + $0x68] sm:$0xff] 0.0
        %278 = vst [vmem:[#allocation2 + $0x70] sm:$0xff] 0.0
        %279 = vst [vmem:[#allocation2 + $0x78] sm:$0xff] 0.0
        %280 = vst [vmem:[#allocation2 + $0x80] sm:$0xff] 0.0
        %281 = vst [vmem:[#allocation2 + $0x88] sm:$0xff] 0.0
        %282 = vst [vmem:[#allocation2 + $0x90] sm:$0xff] 0.0
        %283 = vst [vmem:[#allocation2 + $0x98] sm:$0xff] 0.0
        %284 = vst [vmem:[#allocation2 + $0xa0] sm:$0xff] 0.0
        %285 = vst [vmem:[#allocation2 + $0xa8] sm:$0xff] 0.0
        %286 = vst [vmem:[#allocation2 + $0xb0] sm:$0xff] 0.0
        %287 = vst [vmem:[#allocation2 + $0xb8] sm:$0xff] 0.0
        %288 = vst [vmem:[#allocation2 + $0xc0] sm:$0xff] 0.0
        %289 = vst [vmem:[#allocation2 + $0xc8] sm:$0xff] 0.0
        %290 = vst [vmem:[#allocation2 + $0xd0] sm:$0xff] 0.0
        %291 = vst [vmem:[#allocation2 + $0xd8] sm:$0xff] 0.0
        %292 = vst [vmem:[#allocation2 + $0xe0] sm:$0xff] 0.0
        %293 = vst [vmem:[#allocation2 + $0xe8] sm:$0xff] 0.0
        %294 = vst [vmem:[#allocation2 + $0xf0] sm:$0xff] 0.0
        %295 = vst [vmem:[#allocation2 + $0xf8] sm:$0xff] 0.0
        %296 = vst [vmem:[#allocation2 + $0x100] sm:$0xff] 0.0
        %297 = vst [vmem:[#allocation2 + $0x108] sm:$0xff] 0.0
        %298 = vst [vmem:[#allocation2 + $0x110] sm:$0xff] 0.0
        %299 = vst [vmem:[#allocation2 + $0x118] sm:$0xff] 0.0
        %300 = vst [vmem:[#allocation2 + $0x120] sm:$0xff] 0.0
        %301 = vst [vmem:[#allocation2 + $0x128] sm:$0xff] 0.0
        %302 = vst [vmem:[#allocation2 + $0x130] sm:$0xff] 0.0
        %303 = vst [vmem:[#allocation2 + $0x138] sm:$0xff] 0.0
        %304 = vst [vmem:[#allocation2 + $0x140] sm:$0xff] 0.0
        %305 = vst [vmem:[#allocation2 + $0x148] sm:$0xff] 0.0
        %306 = vst [vmem:[#allocation2 + $0x150] sm:$0xff] 0.0
        %307 = vst [vmem:[#allocation2 + $0x158] sm:$0xff] 0.0
        %308 = vst [vmem:[#allocation2 + $0x160] sm:$0xff] 0.0
        %309 = vst [vmem:[#allocation2 + $0x168] sm:$0xff] 0.0
        %310 = vst [vmem:[#allocation2 + $0x170] sm:$0xff] 0.0
        %311 = vst [vmem:[#allocation2 + $0x178] sm:$0xff] 0.0
        %312 = vst [vmem:[#allocation2 + $0x180] sm:$0xff] 0.0
        %313 = vst [vmem:[#allocation2 + $0x188] sm:$0xff] 0.0
        %314 = vst [vmem:[#allocation2 + $0x190] sm:$0xff] 0.0
        %315 = vst [vmem:[#allocation2 + $0x198] sm:$0xff] 0.0
        %316 = vst [vmem:[#allocation2 + $0x1a0] sm:$0xff] 0.0
        %317 = vst [vmem:[#allocation2 + $0x1a8] sm:$0xff] 0.0
        %318 = vst [vmem:[#allocation2 + $0x1b0] sm:$0xff] 0.0
        %319 = vst [vmem:[#allocation2 + $0x1b8] sm:$0xff] 0.0
        %320 = vst [vmem:[#allocation2 + $0x1c0] sm:$0xff] 0.0
        %321 = vst [vmem:[#allocation2 + $0x1c8] sm:$0xff] 0.0
        %322 = vst [vmem:[#allocation2 + $0x1d0] sm:$0xff] 0.0
        %323 = vst [vmem:[#allocation2 + $0x1d8] sm:$0xff] 0.0
        %324 = vst [vmem:[#allocation2 + $0x1e0] sm:$0xff] 0.0
        %325 = vst [vmem:[#allocation2 + $0x1e8] sm:$0xff] 0.0
        %326 = vst [vmem:[#allocation2 + $0x1f0] sm:$0xff] 0.0
        %327 = vst [vmem:[#allocation2 + $0x1f8] sm:$0xff] 0.0
      $region36: #{netd_forward.4} parent=31 // pred_fallthru
        _
      %v328 = vld [vmem:[#allocation2] sm:$0xff]
      %v329 = vld [vmem:[#allocation2 + $0x8] sm:$0xff]
      %v330 = vld [vmem:[#allocation2 + $0x10] sm:$0xff]
      %v331 = vld [vmem:[#allocation2 + $0x18] sm:$0xff]
      %v332 = vld [vmem:[#allocation2 + $0x20] sm:$0xff]
      %v333 = vld [vmem:[#allocation2 + $0x28] sm:$0xff]
      %v334 = vld [vmem:[#allocation2 + $0x30] sm:$0xff]
      %v335 = vld [vmem:[#allocation2 + $0x38] sm:$0xff]
      %v336 = vld [vmem:[#allocation2 + $0x40] sm:$0xff]
      %v337 = vld [vmem:[#allocation2 + $0x48] sm:$0xff]
      %v338 = vld [vmem:[#allocation2 + $0x50] sm:$0xff]
      %v339 = vld [vmem:[#allocation2 + $0x58] sm:$0xff]
      %v340 = vld [vmem:[#allocation2 + $0x60] sm:$0xff]
      %v341 = vld [vmem:[#allocation2 + $0x68] sm:$0xff]
      %v342 = vld [vmem:[#allocation2 + $0x70] sm:$0xff]
      %v343 = vld [vmem:[#allocation2 + $0x78] sm:$0xff]
      %v344 = vld [vmem:[#allocation2 + $0x80] sm:$0xff]
      %v345 = vld [vmem:[#allocation2 + $0x88] sm:$0xff]
      %v346 = vld [vmem:[#allocation2 + $0x90] sm:$0xff]
      %v347 = vld [vmem:[#allocation2 + $0x98] sm:$0xff]
      %v348 = vld [vmem:[#allocation2 + $0xa0] sm:$0xff]
      %v349 = vld [vmem:[#allocation2 + $0xa8] sm:$0xff]
      %v350 = vld [vmem:[#allocation2 + $0xb0] sm:$0xff]
      %v351 = vld [vmem:[#allocation2 + $0xb8] sm:$0xff]
      %v352 = vld [vmem:[#allocation2 + $0xc0] sm:$0xff]
      %v353 = vld [vmem:[#allocation2 + $0xc8] sm:$0xff]
      %v354 = vld [vmem:[#allocation2 + $0xd0] sm:$0xff]
      %v355 = vld [vmem:[#allocation2 + $0xd8] sm:$0xff]
      %v356 = vld [vmem:[#allocation2 + $0xe0] sm:$0xff]
      %v357 = vld [vmem:[#allocation2 + $0xe8] sm:$0xff]
      %v358 = vld [vmem:[#allocation2 + $0xf0] sm:$0xff]
      %v359 = vld [vmem:[#allocation2 + $0xf8] sm:$0xff]
      %v360 = vld [vmem:[#allocation2 + $0x100] sm:$0xff]
      %v361 = vld [vmem:[#allocation2 + $0x108] sm:$0xff]
      %v362 = vld [vmem:[#allocation2 + $0x110] sm:$0xff]
      %v363 = vld [vmem:[#allocation2 + $0x118] sm:$0xff]
      %v364 = vld [vmem:[#allocation2 + $0x120] sm:$0xff]
      %v365 = vld [vmem:[#allocation2 + $0x128] sm:$0xff]
      %v366 = vld [vmem:[#allocation2 + $0x130] sm:$0xff]
      %v367 = vld [vmem:[#allocation2 + $0x138] sm:$0xff]
      %v368 = vld [vmem:[#allocation2 + $0x140] sm:$0xff]
      %v369 = vld [vmem:[#allocation2 + $0x148] sm:$0xff]
      %v370 = vld [vmem:[#allocation2 + $0x150] sm:$0xff]
      %v371 = vld [vmem:[#allocation2 + $0x158] sm:$0xff]
      %v372 = vld [vmem:[#allocation2 + $0x160] sm:$0xff]
      %v373 = vld [vmem:[#allocation2 + $0x168] sm:$0xff]
      %v374 = vld [vmem:[#allocation2 + $0x170] sm:$0xff]
      %v375 = vld [vmem:[#allocation2 + $0x178] sm:$0xff]
      %v376 = vld [vmem:[#allocation2 + $0x180] sm:$0xff]
      %v377 = vld [vmem:[#allocation2 + $0x188] sm:$0xff]
      %v378 = vld [vmem:[#allocation2 + $0x190] sm:$0xff]
      %v379 = vld [vmem:[#allocation2 + $0x198] sm:$0xff]
      %v380 = vld [vmem:[#allocation2 + $0x1a0] sm:$0xff]
      %v381 = vld [vmem:[#allocation2 + $0x1a8] sm:$0xff]
      %v382 = vld [vmem:[#allocation2 + $0x1b0] sm:$0xff]
      %v383 = vld [vmem:[#allocation2 + $0x1b8] sm:$0xff]
      %v384 = vld [vmem:[#allocation2 + $0x1c0] sm:$0xff]
      %v385 = vld [vmem:[#allocation2 + $0x1c8] sm:$0xff]
      %v386 = vld [vmem:[#allocation2 + $0x1d0] sm:$0xff]
      %v387 = vld [vmem:[#allocation2 + $0x1d8] sm:$0xff]
      %v388 = vld [vmem:[#allocation2 + $0x1e0] sm:$0xff]
      %v389 = vld [vmem:[#allocation2 + $0x1e8] sm:$0xff]
      %v390 = vld [vmem:[#allocation2 + $0x1f0] sm:$0xff]
      %v391 = vld [vmem:[#allocation2 + $0x1f8] sm:$0xff]
      %v392 = vld [vmem:[%s236] sm:$0xf]
      %v393 = vld [vmem:[%s236 + $0x4] sm:$0xf]
      %v394 = vld [vmem:[%s236 + $0x8] sm:$0xf]
      %v395 = vld [vmem:[%s236 + $0xc] sm:$0xf]
      %v396 = vld [vmem:[%s236 + $0x10] sm:$0xf]
      %v397 = vld [vmem:[%s236 + $0x14] sm:$0xf]
      %v398 = vld [vmem:[%s236 + $0x18] sm:$0xf]
      %v399 = vld [vmem:[%s236 + $0x1c] sm:$0xf]
      %v400 = vld [vmem:[%s236 + $0x20] sm:$0xf]
      %v401 = vld [vmem:[%s236 + $0x24] sm:$0xf]
      %v402 = vld [vmem:[%s236 + $0x28] sm:$0xf]
      %v403 = vld [vmem:[%s236 + $0x2c] sm:$0xf]
      %v404 = vld [vmem:[%s236 + $0x30] sm:$0xf]
      %v405 = vld [vmem:[%s236 + $0x34] sm:$0xf]
      %v406 = vld [vmem:[%s236 + $0x38] sm:$0xf]
      %v407 = vld [vmem:[%s236 + $0x3c] sm:$0xf]
      %v408 = vld [vmem:[%s236 + $0x40] sm:$0xf]
      %v409 = vld [vmem:[%s236 + $0x44] sm:$0xf]
      %v410 = vld [vmem:[%s236 + $0x48] sm:$0xf]
      %v411 = vld [vmem:[%s236 + $0x4c] sm:$0xf]
      %v412 = vld [vmem:[%s236 + $0x50] sm:$0xf]
      %v413 = vld [vmem:[%s236 + $0x54] sm:$0xf]
      %v414 = vld [vmem:[%s236 + $0x58] sm:$0xf]
      %v415 = vld [vmem:[%s236 + $0x5c] sm:$0xf]
      %v416 = vld [vmem:[%s236 + $0x60] sm:$0xf]
      %v417 = vld [vmem:[%s236 + $0x64] sm:$0xf]
      %v418 = vld [vmem:[%s236 + $0x68] sm:$0xf]
      %v419 = vld [vmem:[%s236 + $0x6c] sm:$0xf]
      %v420 = vld [vmem:[%s236 + $0x70] sm:$0xf]
      %v421 = vld [vmem:[%s236 + $0x74] sm:$0xf]
      %v422 = vld [vmem:[%s236 + $0x78] sm:$0xf]
      %v423 = vld [vmem:[%s236 + $0x7c] sm:$0xf]
      %v424 = vld [vmem:[%s236 + $0x80] sm:$0xf]
      %v425 = vld [vmem:[%s236 + $0x84] sm:$0xf]
      %v426 = vld [vmem:[%s236 + $0x88] sm:$0xf]
      %v427 = vld [vmem:[%s236 + $0x8c] sm:$0xf]
      %v428 = vld [vmem:[%s236 + $0x90] sm:$0xf]
      %v429 = vld [vmem:[%s236 + $0x94] sm:$0xf]
      %v430 = vld [vmem:[%s236 + $0x98] sm:$0xf]
      %v431 = vld [vmem:[%s236 + $0x9c] sm:$0xf]
      %v432 = vld [vmem:[%s236 + $0xa0] sm:$0xf]
      %v433 = vld [vmem:[%s236 + $0xa4] sm:$0xf]
      %v434 = vld [vmem:[%s236 + $0xa8] sm:$0xf]
      %v435 = vld [vmem:[%s236 + $0xac] sm:$0xf]
      %v436 = vld [vmem:[%s236 + $0xb0] sm:$0xf]
      %v437 = vld [vmem:[%s236 + $0xb4] sm:$0xf]
      %v438 = vld [vmem:[%s236 + $0xb8] sm:$0xf]
      %v439 = vld [vmem:[%s236 + $0xbc] sm:$0xf]
      %v440 = vld [vmem:[%s236 + $0xc0] sm:$0xf]
      %v441 = vld [vmem:[%s236 + $0xc4] sm:$0xf]
      %v442 = vld [vmem:[%s236 + $0xc8] sm:$0xf]
      %v443 = vld [vmem:[%s236 + $0xcc] sm:$0xf]
      %v444 = vld [vmem:[%s236 + $0xd0] sm:$0xf]
      %v445 = vld [vmem:[%s236 + $0xd4] sm:$0xf]
      %v446 = vld [vmem:[%s236 + $0xd8] sm:$0xf]
      %v447 = vld [vmem:[%s236 + $0xdc] sm:$0xf]
      %v448 = vld [vmem:[%s236 + $0xe0] sm:$0xf]
      %v449 = vld [vmem:[%s236 + $0xe4] sm:$0xf]
      %v450 = vld [vmem:[%s236 + $0xe8] sm:$0xf]
      %v451 = vld [vmem:[%s236 + $0xec] sm:$0xf]
      %v452 = vld [vmem:[%s236 + $0xf0] sm:$0xf]
      %v453 = vld [vmem:[%s236 + $0xf4] sm:$0xf]
      %v454 = vld [vmem:[%s236 + $0xf8] sm:$0xf]
      %v455 = vld [vmem:[%s236 + $0xfc] sm:$0xf]
      %v456 = vld [vmem:[%s245] sm:$0xf]
      %v457 = vld [vmem:[%s245 + $0x4] sm:$0xf]
      %v458 = vld [vmem:[%s245 + $0x8] sm:$0xf]
      %v459 = vld [vmem:[%s245 + $0xc] sm:$0xf]
      %v460 = vld [vmem:[%s245 + $0x10] sm:$0xf]
      %v461 = vld [vmem:[%s245 + $0x14] sm:$0xf]
      %v526 = vunpack.c.l.b16 %v392
      %v527 = vunpack.c.l.b16 %v393
      %v528 = vunpack.c.l.b16 %v394
      %v529 = vunpack.c.l.b16 %v395
      %v530 = vunpack.c.l.b16 %v396
      %v531 = vunpack.c.l.b16 %v397
      %v532 = vunpack.c.l.b16 %v398
      %v533 = vunpack.c.l.b16 %v399
      %v534 = vunpack.c.l.b16 %v400
      %v535 = vunpack.c.l.b16 %v401
      %v536 = vunpack.c.l.b16 %v402
      %v537 = vunpack.c.l.b16 %v403
      %v538 = vunpack.c.l.b16 %v404
      %v539 = vunpack.c.l.b16 %v405
      %v540 = vunpack.c.l.b16 %v406
      %v541 = vunpack.c.l.b16 %v407
      %v542 = vunpack.c.l.b16 %v408
      %v543 = vunpack.c.l.b16 %v409
      %v544 = vunpack.c.l.b16 %v410
      %v545 = vunpack.c.l.b16 %v411
      %v546 = vunpack.c.l.b16 %v412
      %v547 = vunpack.c.l.b16 %v413
      %v548 = vunpack.c.l.b16 %v414
      %v549 = vunpack.c.l.b16 %v415
      %v550 = vunpack.c.l.b16 %v416
      %v551 = vunpack.c.l.b16 %v417
      %v552 = vunpack.c.l.b16 %v418
      %v553 = vunpack.c.l.b16 %v419
      %v554 = vunpack.c.l.b16 %v420
      %v555 = vunpack.c.l.b16 %v421
      %v556 = vunpack.c.l.b16 %v422
      %v557 = vunpack.c.l.b16 %v423
      %v558 = vunpack.c.l.b16 %v424
      %v559 = vunpack.c.l.b16 %v425
      %v560 = vunpack.c.l.b16 %v426
      %v561 = vunpack.c.l.b16 %v427
      %v562 = vunpack.c.l.b16 %v428
      %v563 = vunpack.c.l.b16 %v429
      %v564 = vunpack.c.l.b16 %v430
      %v565 = vunpack.c.l.b16 %v431
      %v566 = vunpack.c.l.b16 %v432
      %v567 = vunpack.c.l.b16 %v433
      %v568 = vunpack.c.l.b16 %v434
      %v569 = vunpack.c.l.b16 %v435
      %v570 = vunpack.c.l.b16 %v436
      %v571 = vunpack.c.l.b16 %v437
      %v572 = vunpack.c.l.b16 %v438
      %v573 = vunpack.c.l.b16 %v439
      %v574 = vunpack.c.l.b16 %v440
      %v575 = vunpack.c.l.b16 %v441
      %v576 = vunpack.c.l.b16 %v442
      %v577 = vunpack.c.l.b16 %v443
      %v578 = vunpack.c.l.b16 %v444
      %v579 = vunpack.c.l.b16 %v445
      %v580 = vunpack.c.l.b16 %v446
      %v581 = vunpack.c.l.b16 %v447
      %v582 = vunpack.c.l.b16 %v448
      %v583 = vunpack.c.l.b16 %v449
      %v584 = vunpack.c.l.b16 %v450
      %v585 = vunpack.c.l.b16 %v451
      %v586 = vunpack.c.l.b16 %v452
      %v587 = vunpack.c.l.b16 %v453
      %v588 = vunpack.c.l.b16 %v454
      %v589 = vunpack.c.l.b16 %v455
      %v590 = vpack.c.b16 %v527, %v526
      %v591 = vpack.c.b16 %v529, %v528
      %v592 = vpack.c.b16 %v531, %v530
      %v593 = vpack.c.b16 %v533, %v532
      %v594 = vpack.c.b16 %v535, %v534
      %v595 = vpack.c.b16 %v537, %v536
      %v596 = vpack.c.b16 %v539, %v538
      %v597 = vpack.c.b16 %v541, %v540
      %v598 = vpack.c.b16 %v543, %v542
      %v599 = vpack.c.b16 %v545, %v544
      %v600 = vpack.c.b16 %v547, %v546
      %v601 = vpack.c.b16 %v549, %v548
      %v602 = vpack.c.b16 %v551, %v550
      %v603 = vpack.c.b16 %v553, %v552
      %v604 = vpack.c.b16 %v555, %v554
      %v605 = vpack.c.b16 %v557, %v556
      %v606 = vpack.c.b16 %v559, %v558
      %v607 = vpack.c.b16 %v561, %v560
      %v608 = vpack.c.b16 %v563, %v562
      %v609 = vpack.c.b16 %v565, %v564
      %v610 = vpack.c.b16 %v567, %v566
      %v611 = vpack.c.b16 %v569, %v568
      %v612 = vpack.c.b16 %v571, %v570
      %v613 = vpack.c.b16 %v573, %v572
      %v614 = vpack.c.b16 %v575, %v574
      %v615 = vpack.c.b16 %v577, %v576
      %v616 = vpack.c.b16 %v579, %v578
      %v617 = vpack.c.b16 %v581, %v580
      %v618 = vpack.c.b16 %v583, %v582
      %v619 = vpack.c.b16 %v585, %v584
      %v620 = vpack.c.b16 %v587, %v586
      %v621 = vpack.c.b16 %v589, %v588
      %v628 = vunpack.c.l.b16 %v456
      %v629 = vunpack.c.l.b16 %v457
      %v630 = vunpack.c.l.b16 %v458
      %v631 = vunpack.c.l.b16 %v459
      %v632 = vunpack.c.l.b16 %v460
      %v633 = vunpack.c.l.b16 %v461
      %v634 = vpack.c.b16 %v629, %v628
      %v635 = vpack.c.b16 %v631, %v630
      %v636 = vpack.c.b16 %v633, %v632
      %vm640 = vcmask 392192
      %v642 = vsel %vm640, %v590, 0
      %v645 = vsel %vm640, %v591, 0
      %v648 = vsel %vm640, %v592, 0
      %v651 = vsel %vm640, %v593, 0
      %v654 = vsel %vm640, %v594, 0
      %v657 = vsel %vm640, %v595, 0
      %v660 = vsel %vm640, %v596, 0
      %v663 = vsel %vm640, %v597, 0
      %v666 = vsel %vm640, %v598, 0
      %v669 = vsel %vm640, %v599, 0
      %v672 = vsel %vm640, %v600, 0
      %v675 = vsel %vm640, %v601, 0
      %v678 = vsel %vm640, %v602, 0
      %v681 = vsel %vm640, %v603, 0
      %v684 = vsel %vm640, %v604, 0
      %v687 = vsel %vm640, %v605, 0
      %v690 = vsel %vm640, %v606, 0
      %v693 = vsel %vm640, %v607, 0
      %v696 = vsel %vm640, %v608, 0
      %v699 = vsel %vm640, %v609, 0
      %v702 = vsel %vm640, %v610, 0
      %v705 = vsel %vm640, %v611, 0
      %v708 = vsel %vm640, %v612, 0
      %v711 = vsel %vm640, %v613, 0
      %v714 = vsel %vm640, %v614, 0
      %v717 = vsel %vm640, %v615, 0
      %v720 = vsel %vm640, %v616, 0
      %v723 = vsel %vm640, %v617, 0
      %v726 = vsel %vm640, %v618, 0
      %v729 = vsel %vm640, %v619, 0
      %v732 = vsel %vm640, %v620, 0
      %v735 = vsel %vm640, %v621, 0
      %737 = vmatpush.bf16.msra.mxu0 0
      %738 = vmatpush.bf16.msra.mxu0 0
      %739 = vmatpush.bf16.msra.mxu0 0
      %740 = vmatpush.bf16.msra.mxu0 0
      %741 = vmatpush.bf16.msra.mxu0 0
      %742 = vmatpush.bf16.msra.mxu0 %v636
      %743 = vmatpush.bf16.msra.mxu0 %v635
      %744 = vmatpush.bf16.msra.mxu0 %v634
      %745 = vmatmul.bf16.gmra.mxu0 %v642
      %v746 = vpop.f32.mrf.mxu0
      %v747 = vadd.f32 0.0, %v746
      %v748 = vpop.f32.mrf.mxu0
      %v749 = vadd.f32 0.0, %v748
      %750 = vmatmul.bf16.gmra.mxu0 %v645
      %v751 = vpop.f32.mrf.mxu0
      %v752 = vadd.f32 0.0, %v751
      %v753 = vpop.f32.mrf.mxu0
      %v754 = vadd.f32 0.0, %v753
      %755 = vmatmul.bf16.gmra.mxu0 %v648
      %v756 = vpop.f32.mrf.mxu0
      %v757 = vadd.f32 0.0, %v756
      %v758 = vpop.f32.mrf.mxu0
      %v759 = vadd.f32 0.0, %v758
      %760 = vmatmul.bf16.gmra.mxu0 %v651
      %v761 = vpop.f32.mrf.mxu0
      %v762 = vadd.f32 0.0, %v761
      %v763 = vpop.f32.mrf.mxu0
      %v764 = vadd.f32 0.0, %v763
      %765 = vmatmul.bf16.gmra.mxu0 %v654
      %v766 = vpop.f32.mrf.mxu0
      %v767 = vadd.f32 0.0, %v766
      %v768 = vpop.f32.mrf.mxu0
      %v769 = vadd.f32 0.0, %v768
      %770 = vmatmul.bf16.gmra.mxu0 %v657
      %v771 = vpop.f32.mrf.mxu0
      %v772 = vadd.f32 0.0, %v771
      %v773 = vpop.f32.mrf.mxu0
      %v774 = vadd.f32 0.0, %v773
      %775 = vmatmul.bf16.gmra.mxu0 %v660
      %v776 = vpop.f32.mrf.mxu0
      %v777 = vadd.f32 0.0, %v776
      %v778 = vpop.f32.mrf.mxu0
      %v779 = vadd.f32 0.0, %v778
      %780 = vmatmul.bf16.gmra.mxu0 %v663
      %v781 = vpop.f32.mrf.mxu0
      %v782 = vadd.f32 0.0, %v781
      %v783 = vpop.f32.mrf.mxu0
      %v784 = vadd.f32 0.0, %v783
      %785 = vmatmul.bf16.gmra.mxu0 %v666
      %v786 = vpop.f32.mrf.mxu0
      %v787 = vadd.f32 0.0, %v786
      %v788 = vpop.f32.mrf.mxu0
      %v789 = vadd.f32 0.0, %v788
      %790 = vmatmul.bf16.gmra.mxu0 %v669
      %v791 = vpop.f32.mrf.mxu0
      %v792 = vadd.f32 0.0, %v791
      %v793 = vpop.f32.mrf.mxu0
      %v794 = vadd.f32 0.0, %v793
      %795 = vmatmul.bf16.gmra.mxu0 %v672
      %v796 = vpop.f32.mrf.mxu0
      %v797 = vadd.f32 0.0, %v796
      %v798 = vpop.f32.mrf.mxu0
      %v799 = vadd.f32 0.0, %v798
      %800 = vmatmul.bf16.gmra.mxu0 %v675
      %v801 = vpop.f32.mrf.mxu0
      %v802 = vadd.f32 0.0, %v801
      %v803 = vpop.f32.mrf.mxu0
      %v804 = vadd.f32 0.0, %v803
      %805 = vmatmul.bf16.gmra.mxu0 %v678
      %v806 = vpop.f32.mrf.mxu0
      %v807 = vadd.f32 0.0, %v806
      %v808 = vpop.f32.mrf.mxu0
      %v809 = vadd.f32 0.0, %v808
      %810 = vmatmul.bf16.gmra.mxu0 %v681
      %v811 = vpop.f32.mrf.mxu0
      %v812 = vadd.f32 0.0, %v811
      %v813 = vpop.f32.mrf.mxu0
      %v814 = vadd.f32 0.0, %v813
      %815 = vmatmul.bf16.gmra.mxu0 %v684
      %v816 = vpop.f32.mrf.mxu0
      %v817 = vadd.f32 0.0, %v816
      %v818 = vpop.f32.mrf.mxu0
      %v819 = vadd.f32 0.0, %v818
      %820 = vmatmul.bf16.gmra.mxu0 %v687
      %v821 = vpop.f32.mrf.mxu0
      %v822 = vadd.f32 0.0, %v821
      %v823 = vpop.f32.mrf.mxu0
      %v824 = vadd.f32 0.0, %v823
      %825 = vmatmul.bf16.gmra.mxu0 %v690
      %v826 = vpop.f32.mrf.mxu0
      %v827 = vadd.f32 0.0, %v826
      %v828 = vpop.f32.mrf.mxu0
      %v829 = vadd.f32 0.0, %v828
      %830 = vmatmul.bf16.gmra.mxu0 %v693
      %v831 = vpop.f32.mrf.mxu0
      %v832 = vadd.f32 0.0, %v831
      %v833 = vpop.f32.mrf.mxu0
      %v834 = vadd.f32 0.0, %v833
      %835 = vmatmul.bf16.gmra.mxu0 %v696
      %v836 = vpop.f32.mrf.mxu0
      %v837 = vadd.f32 0.0, %v836
      %v838 = vpop.f32.mrf.mxu0
      %v839 = vadd.f32 0.0, %v838
      %840 = vmatmul.bf16.gmra.mxu0 %v699
      %v841 = vpop.f32.mrf.mxu0
      %v842 = vadd.f32 0.0, %v841
      %v843 = vpop.f32.mrf.mxu0
      %v844 = vadd.f32 0.0, %v843
      %845 = vmatmul.bf16.gmra.mxu0 %v702
      %v846 = vpop.f32.mrf.mxu0
      %v847 = vadd.f32 0.0, %v846
      %v848 = vpop.f32.mrf.mxu0
      %v849 = vadd.f32 0.0, %v848
      %850 = vmatmul.bf16.gmra.mxu0 %v705
      %v851 = vpop.f32.mrf.mxu0
      %v852 = vadd.f32 0.0, %v851
      %v853 = vpop.f32.mrf.mxu0
      %v854 = vadd.f32 0.0, %v853
      %855 = vmatmul.bf16.gmra.mxu0 %v708
      %v856 = vpop.f32.mrf.mxu0
      %v857 = vadd.f32 0.0, %v856
      %v858 = vpop.f32.mrf.mxu0
      %v859 = vadd.f32 0.0, %v858
      %860 = vmatmul.bf16.gmra.mxu0 %v711
      %v861 = vpop.f32.mrf.mxu0
      %v862 = vadd.f32 0.0, %v861
      %v863 = vpop.f32.mrf.mxu0
      %v864 = vadd.f32 0.0, %v863
      %865 = vmatmul.bf16.gmra.mxu0 %v714
      %v866 = vpop.f32.mrf.mxu0
      %v867 = vadd.f32 0.0, %v866
      %v868 = vpop.f32.mrf.mxu0
      %v869 = vadd.f32 0.0, %v868
      %870 = vmatmul.bf16.gmra.mxu0 %v717
      %v871 = vpop.f32.mrf.mxu0
      %v872 = vadd.f32 0.0, %v871
      %v873 = vpop.f32.mrf.mxu0
      %v874 = vadd.f32 0.0, %v873
      %875 = vmatmul.bf16.gmra.mxu0 %v720
      %v876 = vpop.f32.mrf.mxu0
      %v877 = vadd.f32 0.0, %v876
      %v878 = vpop.f32.mrf.mxu0
      %v879 = vadd.f32 0.0, %v878
      %880 = vmatmul.bf16.gmra.mxu0 %v723
      %v881 = vpop.f32.mrf.mxu0
      %v882 = vadd.f32 0.0, %v881
      %v883 = vpop.f32.mrf.mxu0
      %v884 = vadd.f32 0.0, %v883
      %885 = vmatmul.bf16.gmra.mxu0 %v726
      %v886 = vpop.f32.mrf.mxu0
      %v887 = vadd.f32 0.0, %v886
      %v888 = vpop.f32.mrf.mxu0
      %v889 = vadd.f32 0.0, %v888
      %890 = vmatmul.bf16.gmra.mxu0 %v729
      %v891 = vpop.f32.mrf.mxu0
      %v892 = vadd.f32 0.0, %v891
      %v893 = vpop.f32.mrf.mxu0
      %v894 = vadd.f32 0.0, %v893
      %895 = vmatmul.bf16.gmra.mxu0 %v732
      %v896 = vpop.f32.mrf.mxu0
      %v897 = vadd.f32 0.0, %v896
      %v898 = vpop.f32.mrf.mxu0
      %v899 = vadd.f32 0.0, %v898
      %900 = vmatmul.bf16.gmra.mxu0 %v735
      %v901 = vpop.f32.mrf.mxu0
      %v902 = vadd.f32 0.0, %v901
      %v903 = vpop.f32.mrf.mxu0
      %v904 = vadd.f32 0.0, %v903
      %905 = vdwg.mxu0
      %v906 = vadd.f32 %v328, %v747
      %v907 = vadd.f32 %v329, %v749
      %v908 = vadd.f32 %v330, %v752
      %v909 = vadd.f32 %v331, %v754
      %v910 = vadd.f32 %v332, %v757
      %v911 = vadd.f32 %v333, %v759
      %v912 = vadd.f32 %v334, %v762
      %v913 = vadd.f32 %v335, %v764
      %v914 = vadd.f32 %v336, %v767
      %v915 = vadd.f32 %v337, %v769
      %v916 = vadd.f32 %v338, %v772
      %v917 = vadd.f32 %v339, %v774
      %v918 = vadd.f32 %v340, %v777
      %v919 = vadd.f32 %v341, %v779
      %v920 = vadd.f32 %v342, %v782
      %v921 = vadd.f32 %v343, %v784
      %v922 = vadd.f32 %v344, %v787
      %v923 = vadd.f32 %v345, %v789
      %v924 = vadd.f32 %v346, %v792
      %v925 = vadd.f32 %v347, %v794
      %v926 = vadd.f32 %v348, %v797
      %v927 = vadd.f32 %v349, %v799
      %v928 = vadd.f32 %v350, %v802
      %v929 = vadd.f32 %v351, %v804
      %v930 = vadd.f32 %v352, %v807
      %v931 = vadd.f32 %v353, %v809
      %v932 = vadd.f32 %v354, %v812
      %v933 = vadd.f32 %v355, %v814
      %v934 = vadd.f32 %v356, %v817
      %v935 = vadd.f32 %v357, %v819
      %v936 = vadd.f32 %v358, %v822
      %v937 = vadd.f32 %v359, %v824
      %v938 = vadd.f32 %v360, %v827
      %v939 = vadd.f32 %v361, %v829
      %v940 = vadd.f32 %v362, %v832
      %v941 = vadd.f32 %v363, %v834
      %v942 = vadd.f32 %v364, %v837
      %v943 = vadd.f32 %v365, %v839
      %v944 = vadd.f32 %v366, %v842
      %v945 = vadd.f32 %v367, %v844
      %v946 = vadd.f32 %v368, %v847
      %v947 = vadd.f32 %v369, %v849
      %v948 = vadd.f32 %v370, %v852
      %v949 = vadd.f32 %v371, %v854
      %v950 = vadd.f32 %v372, %v857
      %v951 = vadd.f32 %v373, %v859
      %v952 = vadd.f32 %v374, %v862
      %v953 = vadd.f32 %v375, %v864
      %v954 = vadd.f32 %v376, %v867
      %v955 = vadd.f32 %v377, %v869
      %v956 = vadd.f32 %v378, %v872
      %v957 = vadd.f32 %v379, %v874
      %v958 = vadd.f32 %v380, %v877
      %v959 = vadd.f32 %v381, %v879
      %v960 = vadd.f32 %v382, %v882
      %v961 = vadd.f32 %v383, %v884
      %v962 = vadd.f32 %v384, %v887
      %v963 = vadd.f32 %v385, %v889
      %v964 = vadd.f32 %v386, %v892
      %v965 = vadd.f32 %v387, %v894
      %v966 = vadd.f32 %v388, %v897
      %v967 = vadd.f32 %v389, %v899
      %v968 = vadd.f32 %v390, %v902
      %v969 = vadd.f32 %v391, %v904
      %970 = vst [vmem:[#allocation2] sm:$0xff] %v906
      %971 = vst [vmem:[#allocation2 + $0x8] sm:$0xff] %v907
      %972 = vst [vmem:[#allocation2 + $0x10] sm:$0xff] %v908
      %973 = vst [vmem:[#allocation2 + $0x18] sm:$0xff] %v909
      %974 = vst [vmem:[#allocation2 + $0x20] sm:$0xff] %v910
      %975 = vst [vmem:[#allocation2 + $0x28] sm:$0xff] %v911
      %976 = vst [vmem:[#allocation2 + $0x30] sm:$0xff] %v912
      %977 = vst [vmem:[#allocation2 + $0x38] sm:$0xff] %v913
      %978 = vst [vmem:[#allocation2 + $0x40] sm:$0xff] %v914
      %979 = vst [vmem:[#allocation2 + $0x48] sm:$0xff] %v915
      %980 = vst [vmem:[#allocation2 + $0x50] sm:$0xff] %v916
      %981 = vst [vmem:[#allocation2 + $0x58] sm:$0xff] %v917
      %982 = vst [vmem:[#allocation2 + $0x60] sm:$0xff] %v918
      %983 = vst [vmem:[#allocation2 + $0x68] sm:$0xff] %v919
      %984 = vst [vmem:[#allocation2 + $0x70] sm:$0xff] %v920
      %985 = vst [vmem:[#allocation2 + $0x78] sm:$0xff] %v921
      %986 = vst [vmem:[#allocation2 + $0x80] sm:$0xff] %v922
      %987 = vst [vmem:[#allocation2 + $0x88] sm:$0xff] %v923
      %988 = vst [vmem:[#allocation2 + $0x90] sm:$0xff] %v924
      %989 = vst [vmem:[#allocation2 + $0x98] sm:$0xff] %v925
      %990 = vst [vmem:[#allocation2 + $0xa0] sm:$0xff] %v926
      %991 = vst [vmem:[#allocation2 + $0xa8] sm:$0xff] %v927
      %992 = vst [vmem:[#allocation2 + $0xb0] sm:$0xff] %v928
      %993 = vst [vmem:[#allocation2 + $0xb8] sm:$0xff] %v929
      %994 = vst [vmem:[#allocation2 + $0xc0] sm:$0xff] %v930
      %995 = vst [vmem:[#allocation2 + $0xc8] sm:$0xff] %v931
      %996 = vst [vmem:[#allocation2 + $0xd0] sm:$0xff] %v932
      %997 = vst [vmem:[#allocation2 + $0xd8] sm:$0xff] %v933
      %998 = vst [vmem:[#allocation2 + $0xe0] sm:$0xff] %v934
      %999 = vst [vmem:[#allocation2 + $0xe8] sm:$0xff] %v935
      %1000 = vst [vmem:[#allocation2 + $0xf0] sm:$0xff] %v936
      %1001 = vst [vmem:[#allocation2 + $0xf8] sm:$0xff] %v937
      %1002 = vst [vmem:[#allocation2 + $0x100] sm:$0xff] %v938
      %1003 = vst [vmem:[#allocation2 + $0x108] sm:$0xff] %v939
      %1004 = vst [vmem:[#allocation2 + $0x110] sm:$0xff] %v940
      %1005 = vst [vmem:[#allocation2 + $0x118] sm:$0xff] %v941
      %1006 = vst [vmem:[#allocation2 + $0x120] sm:$0xff] %v942
      %1007 = vst [vmem:[#allocation2 + $0x128] sm:$0xff] %v943
      %1008 = vst [vmem:[#allocation2 + $0x130] sm:$0xff] %v944
      %1009 = vst [vmem:[#allocation2 + $0x138] sm:$0xff] %v945
      %1010 = vst [vmem:[#allocation2 + $0x140] sm:$0xff] %v946
      %1011 = vst [vmem:[#allocation2 + $0x148] sm:$0xff] %v947
      %1012 = vst [vmem:[#allocation2 + $0x150] sm:$0xff] %v948
      %1013 = vst [vmem:[#allocation2 + $0x158] sm:$0xff] %v949
      %1014 = vst [vmem:[#allocation2 + $0x160] sm:$0xff] %v950
      %1015 = vst [vmem:[#allocation2 + $0x168] sm:$0xff] %v951
      %1016 = vst [vmem:[#allocation2 + $0x170] sm:$0xff] %v952
      %1017 = vst [vmem:[#allocation2 + $0x178] sm:$0xff] %v953
      %1018 = vst [vmem:[#allocation2 + $0x180] sm:$0xff] %v954
      %1019 = vst [vmem:[#allocation2 + $0x188] sm:$0xff] %v955
      %1020 = vst [vmem:[#allocation2 + $0x190] sm:$0xff] %v956
      %1021 = vst [vmem:[#allocation2 + $0x198] sm:$0xff] %v957
      %1022 = vst [vmem:[#allocation2 + $0x1a0] sm:$0xff] %v958
      %1023 = vst [vmem:[#allocation2 + $0x1a8] sm:$0xff] %v959
      %1024 = vst [vmem:[#allocation2 + $0x1b0] sm:$0xff] %v960
      %1025 = vst [vmem:[#allocation2 + $0x1b8] sm:$0xff] %v961
      %1026 = vst [vmem:[#allocation2 + $0x1c0] sm:$0xff] %v962
      %1027 = vst [vmem:[#allocation2 + $0x1c8] sm:$0xff] %v963
      %1028 = vst [vmem:[#allocation2 + $0x1d0] sm:$0xff] %v964
      %1029 = vst [vmem:[#allocation2 + $0x1d8] sm:$0xff] %v965
      %1030 = vst [vmem:[#allocation2 + $0x1e0] sm:$0xff] %v966
      %1031 = vst [vmem:[#allocation2 + $0x1e8] sm:$0xff] %v967
      %1032 = vst [vmem:[#allocation2 + $0x1f0] sm:$0xff] %v968
      %1033 = vst [vmem:[#allocation2 + $0x1f8] sm:$0xff] %v969
      // Predicated region
      $region37: #{netd_forward.4} parent=31 // pred_check
        %p1034 = pneg %p260
      $region38: #{netd_forward.4} parent=31 // pred_check_branch
        %1036 = sbr.rel (%p1034) target = $region40
      $region39: #{netd_forward.4} parent=31 // pred_region
        %v1037 = vld [vmem:[#allocation2] sm:$0xff]
        %v1038 = vld [vmem:[#allocation2 + $0x8] sm:$0xff]
        %v1039 = vld [vmem:[#allocation2 + $0x10] sm:$0xff]
        %v1040 = vld [vmem:[#allocation2 + $0x18] sm:$0xff]
        %v1041 = vld [vmem:[#allocation2 + $0x20] sm:$0xff]
        %v1042 = vld [vmem:[#allocation2 + $0x28] sm:$0xff]
        %v1043 = vld [vmem:[#allocation2 + $0x30] sm:$0xff]
        %v1044 = vld [vmem:[#allocation2 + $0x38] sm:$0xff]
        %v1045 = vld [vmem:[#allocation2 + $0x40] sm:$0xff]
        %v1046 = vld [vmem:[#allocation2 + $0x48] sm:$0xff]
        %v1047 = vld [vmem:[#allocation2 + $0x50] sm:$0xff]
        %v1048 = vld [vmem:[#allocation2 + $0x58] sm:$0xff]
        %v1049 = vld [vmem:[#allocation2 + $0x60] sm:$0xff]
        %v1050 = vld [vmem:[#allocation2 + $0x68] sm:$0xff]
        %v1051 = vld [vmem:[#allocation2 + $0x70] sm:$0xff]
        %v1052 = vld [vmem:[#allocation2 + $0x78] sm:$0xff]
        %v1053 = vld [vmem:[#allocation2 + $0x80] sm:$0xff]
        %v1054 = vld [vmem:[#allocation2 + $0x88] sm:$0xff]
        %v1055 = vld [vmem:[#allocation2 + $0x90] sm:$0xff]
        %v1056 = vld [vmem:[#allocation2 + $0x98] sm:$0xff]
        %v1057 = vld [vmem:[#allocation2 + $0xa0] sm:$0xff]
        %v1058 = vld [vmem:[#allocation2 + $0xa8] sm:$0xff]
        %v1059 = vld [vmem:[#allocation2 + $0xb0] sm:$0xff]
        %v1060 = vld [vmem:[#allocation2 + $0xb8] sm:$0xff]
        %v1061 = vld [vmem:[#allocation2 + $0xc0] sm:$0xff]
        %v1062 = vld [vmem:[#allocation2 + $0xc8] sm:$0xff]
        %v1063 = vld [vmem:[#allocation2 + $0xd0] sm:$0xff]
        %v1064 = vld [vmem:[#allocation2 + $0xd8] sm:$0xff]
        %v1065 = vld [vmem:[#allocation2 + $0xe0] sm:$0xff]
        %v1066 = vld [vmem:[#allocation2 + $0xe8] sm:$0xff]
        %v1067 = vld [vmem:[#allocation2 + $0xf0] sm:$0xff]
        %v1068 = vld [vmem:[#allocation2 + $0xf8] sm:$0xff]
        %v1069 = vld [vmem:[#allocation2 + $0x100] sm:$0xff]
        %v1070 = vld [vmem:[#allocation2 + $0x108] sm:$0xff]
        %v1071 = vld [vmem:[#allocation2 + $0x110] sm:$0xff]
        %v1072 = vld [vmem:[#allocation2 + $0x118] sm:$0xff]
        %v1073 = vld [vmem:[#allocation2 + $0x120] sm:$0xff]
        %v1074 = vld [vmem:[#allocation2 + $0x128] sm:$0xff]
        %v1075 = vld [vmem:[#allocation2 + $0x130] sm:$0xff]
        %v1076 = vld [vmem:[#allocation2 + $0x138] sm:$0xff]
        %v1077 = vld [vmem:[#allocation2 + $0x140] sm:$0xff]
        %v1078 = vld [vmem:[#allocation2 + $0x148] sm:$0xff]
        %v1079 = vld [vmem:[#allocation2 + $0x150] sm:$0xff]
        %v1080 = vld [vmem:[#allocation2 + $0x158] sm:$0xff]
        %v1081 = vld [vmem:[#allocation2 + $0x160] sm:$0xff]
        %v1082 = vld [vmem:[#allocation2 + $0x168] sm:$0xff]
        %v1083 = vld [vmem:[#allocation2 + $0x170] sm:$0xff]
        %v1084 = vld [vmem:[#allocation2 + $0x178] sm:$0xff]
        %v1085 = vld [vmem:[#allocation2 + $0x180] sm:$0xff]
        %v1086 = vld [vmem:[#allocation2 + $0x188] sm:$0xff]
        %v1087 = vld [vmem:[#allocation2 + $0x190] sm:$0xff]
        %v1088 = vld [vmem:[#allocation2 + $0x198] sm:$0xff]
        %v1089 = vld [vmem:[#allocation2 + $0x1a0] sm:$0xff]
        %v1090 = vld [vmem:[#allocation2 + $0x1a8] sm:$0xff]
        %v1091 = vld [vmem:[#allocation2 + $0x1b0] sm:$0xff]
        %v1092 = vld [vmem:[#allocation2 + $0x1b8] sm:$0xff]
        %v1093 = vld [vmem:[#allocation2 + $0x1c0] sm:$0xff]
        %v1094 = vld [vmem:[#allocation2 + $0x1c8] sm:$0xff]
        %v1095 = vld [vmem:[#allocation2 + $0x1d0] sm:$0xff]
        %v1096 = vld [vmem:[#allocation2 + $0x1d8] sm:$0xff]
        %v1097 = vld [vmem:[#allocation2 + $0x1e0] sm:$0xff]
        %v1098 = vld [vmem:[#allocation2 + $0x1e8] sm:$0xff]
        %v1099 = vld [vmem:[#allocation2 + $0x1f0] sm:$0xff]
        %v1100 = vld [vmem:[#allocation2 + $0x1f8] sm:$0xff]
        %v1101 = vld [vmem:[%s249] sm:$0x1]
        %v1103 = vperm.slane %v1101, 0
        %v1105 = vadd.f32 %v1037, %v1103
        %v1106 = vadd.f32 %v1038, %v1103
        %v1107 = vadd.f32 %v1039, %v1103
        %v1108 = vadd.f32 %v1040, %v1103
        %v1109 = vadd.f32 %v1041, %v1103
        %v1110 = vadd.f32 %v1042, %v1103
        %v1111 = vadd.f32 %v1043, %v1103
        %v1112 = vadd.f32 %v1044, %v1103
        %v1113 = vadd.f32 %v1045, %v1103
        %v1114 = vadd.f32 %v1046, %v1103
        %v1115 = vadd.f32 %v1047, %v1103
        %v1116 = vadd.f32 %v1048, %v1103
        %v1117 = vadd.f32 %v1049, %v1103
        %v1118 = vadd.f32 %v1050, %v1103
        %v1119 = vadd.f32 %v1051, %v1103
        %v1120 = vadd.f32 %v1052, %v1103
        %v1121 = vadd.f32 %v1053, %v1103
        %v1122 = vadd.f32 %v1054, %v1103
        %v1123 = vadd.f32 %v1055, %v1103
        %v1124 = vadd.f32 %v1056, %v1103
        %v1125 = vadd.f32 %v1057, %v1103
        %v1126 = vadd.f32 %v1058, %v1103
        %v1127 = vadd.f32 %v1059, %v1103
        %v1128 = vadd.f32 %v1060, %v1103
        %v1129 = vadd.f32 %v1061, %v1103
        %v1130 = vadd.f32 %v1062, %v1103
        %v1131 = vadd.f32 %v1063, %v1103
        %v1132 = vadd.f32 %v1064, %v1103
        %v1133 = vadd.f32 %v1065, %v1103
        %v1134 = vadd.f32 %v1066, %v1103
        %v1135 = vadd.f32 %v1067, %v1103
        %v1136 = vadd.f32 %v1068, %v1103
        %v1137 = vadd.f32 %v1069, %v1103
        %v1138 = vadd.f32 %v1070, %v1103
        %v1139 = vadd.f32 %v1071, %v1103
        %v1140 = vadd.f32 %v1072, %v1103
        %v1141 = vadd.f32 %v1073, %v1103
        %v1142 = vadd.f32 %v1074, %v1103
        %v1143 = vadd.f32 %v1075, %v1103
        %v1144 = vadd.f32 %v1076, %v1103
        %v1145 = vadd.f32 %v1077, %v1103
        %v1146 = vadd.f32 %v1078, %v1103
        %v1147 = vadd.f32 %v1079, %v1103
        %v1148 = vadd.f32 %v1080, %v1103
        %v1149 = vadd.f32 %v1081, %v1103
        %v1150 = vadd.f32 %v1082, %v1103
        %v1151 = vadd.f32 %v1083, %v1103
        %v1152 = vadd.f32 %v1084, %v1103
        %v1153 = vadd.f32 %v1085, %v1103
        %v1154 = vadd.f32 %v1086, %v1103
        %v1155 = vadd.f32 %v1087, %v1103
        %v1156 = vadd.f32 %v1088, %v1103
        %v1157 = vadd.f32 %v1089, %v1103
        %v1158 = vadd.f32 %v1090, %v1103
        %v1159 = vadd.f32 %v1091, %v1103
        %v1160 = vadd.f32 %v1092, %v1103
        %v1161 = vadd.f32 %v1093, %v1103
        %v1162 = vadd.f32 %v1094, %v1103
        %v1163 = vadd.f32 %v1095, %v1103
        %v1164 = vadd.f32 %v1096, %v1103
        %v1165 = vadd.f32 %v1097, %v1103
        %v1166 = vadd.f32 %v1098, %v1103
        %v1167 = vadd.f32 %v1099, %v1103
        %v1168 = vadd.f32 %v1100, %v1103
        %v1169 = vmul.f32 %v1105, 0.2
        %v1170 = vmul.f32 %v1106, 0.2
        %v1171 = vmul.f32 %v1107, 0.2
        %v1172 = vmul.f32 %v1108, 0.2
        %v1173 = vmul.f32 %v1109, 0.2
        %v1174 = vmul.f32 %v1110, 0.2
        %v1175 = vmul.f32 %v1111, 0.2
        %v1176 = vmul.f32 %v1112, 0.2
        %v1177 = vmul.f32 %v1113, 0.2
        %v1178 = vmul.f32 %v1114, 0.2
        %v1179 = vmul.f32 %v1115, 0.2
        %v1180 = vmul.f32 %v1116, 0.2
        %v1181 = vmul.f32 %v1117, 0.2
        %v1182 = vmul.f32 %v1118, 0.2
        %v1183 = vmul.f32 %v1119, 0.2
        %v1184 = vmul.f32 %v1120, 0.2
        %v1185 = vmul.f32 %v1121, 0.2
        %v1186 = vmul.f32 %v1122, 0.2
        %v1187 = vmul.f32 %v1123, 0.2
        %v1188 = vmul.f32 %v1124, 0.2
        %v1189 = vmul.f32 %v1125, 0.2
        %v1190 = vmul.f32 %v1126, 0.2
        %v1191 = vmul.f32 %v1127, 0.2
        %v1192 = vmul.f32 %v1128, 0.2
        %v1193 = vmul.f32 %v1129, 0.2
        %v1194 = vmul.f32 %v1130, 0.2
        %v1195 = vmul.f32 %v1131, 0.2
        %v1196 = vmul.f32 %v1132, 0.2
        %v1197 = vmul.f32 %v1133, 0.2
        %v1198 = vmul.f32 %v1134, 0.2
        %v1199 = vmul.f32 %v1135, 0.2
        %v1200 = vmul.f32 %v1136, 0.2
        %v1201 = vmul.f32 %v1137, 0.2
        %v1202 = vmul.f32 %v1138, 0.2
        %v1203 = vmul.f32 %v1139, 0.2
        %v1204 = vmul.f32 %v1140, 0.2
        %v1205 = vmul.f32 %v1141, 0.2
        %v1206 = vmul.f32 %v1142, 0.2
        %v1207 = vmul.f32 %v1143, 0.2
        %v1208 = vmul.f32 %v1144, 0.2
        %v1209 = vmul.f32 %v1145, 0.2
        %v1210 = vmul.f32 %v1146, 0.2
        %v1211 = vmul.f32 %v1147, 0.2
        %v1212 = vmul.f32 %v1148, 0.2
        %v1213 = vmul.f32 %v1149, 0.2
        %v1214 = vmul.f32 %v1150, 0.2
        %v1215 = vmul.f32 %v1151, 0.2
        %v1216 = vmul.f32 %v1152, 0.2
        %v1217 = vmul.f32 %v1153, 0.2
        %v1218 = vmul.f32 %v1154, 0.2
        %v1219 = vmul.f32 %v1155, 0.2
        %v1220 = vmul.f32 %v1156, 0.2
        %v1221 = vmul.f32 %v1157, 0.2
        %v1222 = vmul.f32 %v1158, 0.2
        %v1223 = vmul.f32 %v1159, 0.2
        %v1224 = vmul.f32 %v1160, 0.2
        %v1225 = vmul.f32 %v1161, 0.2
        %v1226 = vmul.f32 %v1162, 0.2
        %v1227 = vmul.f32 %v1163, 0.2
        %v1228 = vmul.f32 %v1164, 0.2
        %v1229 = vmul.f32 %v1165, 0.2
        %v1230 = vmul.f32 %v1166, 0.2
        %v1231 = vmul.f32 %v1167, 0.2
        %v1232 = vmul.f32 %v1168, 0.2
        %v1233 = vmax.f32 %v1105, %v1169
        %v1234 = vmax.f32 %v1106, %v1170
        %v1235 = vmax.f32 %v1107, %v1171
        %v1236 = vmax.f32 %v1108, %v1172
        %v1237 = vmax.f32 %v1109, %v1173
        %v1238 = vmax.f32 %v1110, %v1174
        %v1239 = vmax.f32 %v1111, %v1175
        %v1240 = vmax.f32 %v1112, %v1176
        %v1241 = vmax.f32 %v1113, %v1177
        %v1242 = vmax.f32 %v1114, %v1178
        %v1243 = vmax.f32 %v1115, %v1179
        %v1244 = vmax.f32 %v1116, %v1180
        %v1245 = vmax.f32 %v1117, %v1181
        %v1246 = vmax.f32 %v1118, %v1182
        %v1247 = vmax.f32 %v1119, %v1183
        %v1248 = vmax.f32 %v1120, %v1184
        %v1249 = vmax.f32 %v1121, %v1185
        %v1250 = vmax.f32 %v1122, %v1186
        %v1251 = vmax.f32 %v1123, %v1187
        %v1252 = vmax.f32 %v1124, %v1188
        %v1253 = vmax.f32 %v1125, %v1189
        %v1254 = vmax.f32 %v1126, %v1190
        %v1255 = vmax.f32 %v1127, %v1191
        %v1256 = vmax.f32 %v1128, %v1192
        %v1257 = vmax.f32 %v1129, %v1193
        %v1258 = vmax.f32 %v1130, %v1194
        %v1259 = vmax.f32 %v1131, %v1195
        %v1260 = vmax.f32 %v1132, %v1196
        %v1261 = vmax.f32 %v1133, %v1197
        %v1262 = vmax.f32 %v1134, %v1198
        %v1263 = vmax.f32 %v1135, %v1199
        %v1264 = vmax.f32 %v1136, %v1200
        %v1265 = vmax.f32 %v1137, %v1201
        %v1266 = vmax.f32 %v1138, %v1202
        %v1267 = vmax.f32 %v1139, %v1203
        %v1268 = vmax.f32 %v1140, %v1204
        %v1269 = vmax.f32 %v1141, %v1205
        %v1270 = vmax.f32 %v1142, %v1206
        %v1271 = vmax.f32 %v1143, %v1207
        %v1272 = vmax.f32 %v1144, %v1208
        %v1273 = vmax.f32 %v1145, %v1209
        %v1274 = vmax.f32 %v1146, %v1210
        %v1275 = vmax.f32 %v1147, %v1211
        %v1276 = vmax.f32 %v1148, %v1212
        %v1277 = vmax.f32 %v1149, %v1213
        %v1278 = vmax.f32 %v1150, %v1214
        %v1279 = vmax.f32 %v1151, %v1215
        %v1280 = vmax.f32 %v1152, %v1216
        %v1281 = vmax.f32 %v1153, %v1217
        %v1282 = vmax.f32 %v1154, %v1218
        %v1283 = vmax.f32 %v1155, %v1219
        %v1284 = vmax.f32 %v1156, %v1220
        %v1285 = vmax.f32 %v1157, %v1221
        %v1286 = vmax.f32 %v1158, %v1222
        %v1287 = vmax.f32 %v1159, %v1223
        %v1288 = vmax.f32 %v1160, %v1224
        %v1289 = vmax.f32 %v1161, %v1225
        %v1290 = vmax.f32 %v1162, %v1226
        %v1291 = vmax.f32 %v1163, %v1227
        %v1292 = vmax.f32 %v1164, %v1228
        %v1293 = vmax.f32 %v1165, %v1229
        %v1294 = vmax.f32 %v1166, %v1230
        %v1295 = vmax.f32 %v1167, %v1231
        %v1296 = vmax.f32 %v1168, %v1232
        %v1297 = vpack.c.bf16 %v1233, %v1233
        %v1298 = vpack.c.bf16 %v1234, %v1234
        %v1299 = vpack.c.bf16 %v1235, %v1235
        %v1300 = vpack.c.bf16 %v1236, %v1236
        %v1301 = vpack.c.bf16 %v1237, %v1237
        %v1302 = vpack.c.bf16 %v1238, %v1238
        %v1303 = vpack.c.bf16 %v1239, %v1239
        %v1304 = vpack.c.bf16 %v1240, %v1240
        %v1305 = vpack.c.bf16 %v1241, %v1241
        %v1306 = vpack.c.bf16 %v1242, %v1242
        %v1307 = vpack.c.bf16 %v1243, %v1243
        %v1308 = vpack.c.bf16 %v1244, %v1244
        %v1309 = vpack.c.bf16 %v1245, %v1245
        %v1310 = vpack.c.bf16 %v1246, %v1246
        %v1311 = vpack.c.bf16 %v1247, %v1247
        %v1312 = vpack.c.bf16 %v1248, %v1248
        %v1313 = vpack.c.bf16 %v1249, %v1249
        %v1314 = vpack.c.bf16 %v1250, %v1250
        %v1315 = vpack.c.bf16 %v1251, %v1251
        %v1316 = vpack.c.bf16 %v1252, %v1252
        %v1317 = vpack.c.bf16 %v1253, %v1253
        %v1318 = vpack.c.bf16 %v1254, %v1254
        %v1319 = vpack.c.bf16 %v1255, %v1255
        %v1320 = vpack.c.bf16 %v1256, %v1256
        %v1321 = vpack.c.bf16 %v1257, %v1257
        %v1322 = vpack.c.bf16 %v1258, %v1258
        %v1323 = vpack.c.bf16 %v1259, %v1259
        %v1324 = vpack.c.bf16 %v1260, %v1260
        %v1325 = vpack.c.bf16 %v1261, %v1261
        %v1326 = vpack.c.bf16 %v1262, %v1262
        %v1327 = vpack.c.bf16 %v1263, %v1263
        %v1328 = vpack.c.bf16 %v1264, %v1264
        %v1329 = vpack.c.bf16 %v1265, %v1265
        %v1330 = vpack.c.bf16 %v1266, %v1266
        %v1331 = vpack.c.bf16 %v1267, %v1267
        %v1332 = vpack.c.bf16 %v1268, %v1268
        %v1333 = vpack.c.bf16 %v1269, %v1269
        %v1334 = vpack.c.bf16 %v1270, %v1270
        %v1335 = vpack.c.bf16 %v1271, %v1271
        %v1336 = vpack.c.bf16 %v1272, %v1272
        %v1337 = vpack.c.bf16 %v1273, %v1273
        %v1338 = vpack.c.bf16 %v1274, %v1274
        %v1339 = vpack.c.bf16 %v1275, %v1275
        %v1340 = vpack.c.bf16 %v1276, %v1276
        %v1341 = vpack.c.bf16 %v1277, %v1277
        %v1342 = vpack.c.bf16 %v1278, %v1278
        %v1343 = vpack.c.bf16 %v1279, %v1279
        %v1344 = vpack.c.bf16 %v1280, %v1280
        %v1345 = vpack.c.bf16 %v1281, %v1281
        %v1346 = vpack.c.bf16 %v1282, %v1282
        %v1347 = vpack.c.bf16 %v1283, %v1283
        %v1348 = vpack.c.bf16 %v1284, %v1284
        %v1349 = vpack.c.bf16 %v1285, %v1285
        %v1350 = vpack.c.bf16 %v1286, %v1286
        %v1351 = vpack.c.bf16 %v1287, %v1287
        %v1352 = vpack.c.bf16 %v1288, %v1288
        %v1353 = vpack.c.bf16 %v1289, %v1289
        %v1354 = vpack.c.bf16 %v1290, %v1290
        %v1355 = vpack.c.bf16 %v1291, %v1291
        %v1356 = vpack.c.bf16 %v1292, %v1292
        %v1357 = vpack.c.bf16 %v1293, %v1293
        %v1358 = vpack.c.bf16 %v1294, %v1294
        %v1359 = vpack.c.bf16 %v1295, %v1295
        %v1360 = vpack.c.bf16 %v1296, %v1296
        %1361 = vst [vmem:[%s257] sm:$0xf] %v1297
        %1362 = vst [vmem:[%s257 + $0x4] sm:$0xf] %v1298
        %1363 = vst [vmem:[%s257 + $0x8] sm:$0xf] %v1299
        %1364 = vst [vmem:[%s257 + $0xc] sm:$0xf] %v1300
        %1365 = vst [vmem:[%s257 + $0x10] sm:$0xf] %v1301
        %1366 = vst [vmem:[%s257 + $0x14] sm:$0xf] %v1302
        %1367 = vst [vmem:[%s257 + $0x18] sm:$0xf] %v1303
        %1368 = vst [vmem:[%s257 + $0x1c] sm:$0xf] %v1304
        %1369 = vst [vmem:[%s257 + $0x20] sm:$0xf] %v1305
        %1370 = vst [vmem:[%s257 + $0x24] sm:$0xf] %v1306
        %1371 = vst [vmem:[%s257 + $0x28] sm:$0xf] %v1307
        %1372 = vst [vmem:[%s257 + $0x2c] sm:$0xf] %v1308
        %1373 = vst [vmem:[%s257 + $0x30] sm:$0xf] %v1309
        %1374 = vst [vmem:[%s257 + $0x34] sm:$0xf] %v1310
        %1375 = vst [vmem:[%s257 + $0x38] sm:$0xf] %v1311
        %1376 = vst [vmem:[%s257 + $0x3c] sm:$0xf] %v1312
        %1377 = vst [vmem:[%s257 + $0x40] sm:$0xf] %v1313
        %1378 = vst [vmem:[%s257 + $0x44] sm:$0xf] %v1314
        %1379 = vst [vmem:[%s257 + $0x48] sm:$0xf] %v1315
        %1380 = vst [vmem:[%s257 + $0x4c] sm:$0xf] %v1316
        %1381 = vst [vmem:[%s257 + $0x50] sm:$0xf] %v1317
        %1382 = vst [vmem:[%s257 + $0x54] sm:$0xf] %v1318
        %1383 = vst [vmem:[%s257 + $0x58] sm:$0xf] %v1319
        %1384 = vst [vmem:[%s257 + $0x5c] sm:$0xf] %v1320
        %1385 = vst [vmem:[%s257 + $0x60] sm:$0xf] %v1321
        %1386 = vst [vmem:[%s257 + $0x64] sm:$0xf] %v1322
        %1387 = vst [vmem:[%s257 + $0x68] sm:$0xf] %v1323
        %1388 = vst [vmem:[%s257 + $0x6c] sm:$0xf] %v1324
        %1389 = vst [vmem:[%s257 + $0x70] sm:$0xf] %v1325
        %1390 = vst [vmem:[%s257 + $0x74] sm:$0xf] %v1326
        %1391 = vst [vmem:[%s257 + $0x78] sm:$0xf] %v1327
        %1392 = vst [vmem:[%s257 + $0x7c] sm:$0xf] %v1328
        %1393 = vst [vmem:[%s257 + $0x80] sm:$0xf] %v1329
        %1394 = vst [vmem:[%s257 + $0x84] sm:$0xf] %v1330
        %1395 = vst [vmem:[%s257 + $0x88] sm:$0xf] %v1331
        %1396 = vst [vmem:[%s257 + $0x8c] sm:$0xf] %v1332
        %1397 = vst [vmem:[%s257 + $0x90] sm:$0xf] %v1333
        %1398 = vst [vmem:[%s257 + $0x94] sm:$0xf] %v1334
        %1399 = vst [vmem:[%s257 + $0x98] sm:$0xf] %v1335
        %1400 = vst [vmem:[%s257 + $0x9c] sm:$0xf] %v1336
        %1401 = vst [vmem:[%s257 + $0xa0] sm:$0xf] %v1337
        %1402 = vst [vmem:[%s257 + $0xa4] sm:$0xf] %v1338
        %1403 = vst [vmem:[%s257 + $0xa8] sm:$0xf] %v1339
        %1404 = vst [vmem:[%s257 + $0xac] sm:$0xf] %v1340
        %1405 = vst [vmem:[%s257 + $0xb0] sm:$0xf] %v1341
        %1406 = vst [vmem:[%s257 + $0xb4] sm:$0xf] %v1342
        %1407 = vst [vmem:[%s257 + $0xb8] sm:$0xf] %v1343
        %1408 = vst [vmem:[%s257 + $0xbc] sm:$0xf] %v1344
        %1409 = vst [vmem:[%s257 + $0xc0] sm:$0xf] %v1345
        %1410 = vst [vmem:[%s257 + $0xc4] sm:$0xf] %v1346
        %1411 = vst [vmem:[%s257 + $0xc8] sm:$0xf] %v1347
        %1412 = vst [vmem:[%s257 + $0xcc] sm:$0xf] %v1348
        %1413 = vst [vmem:[%s257 + $0xd0] sm:$0xf] %v1349
        %1414 = vst [vmem:[%s257 + $0xd4] sm:$0xf] %v1350
        %1415 = vst [vmem:[%s257 + $0xd8] sm:$0xf] %v1351
        %1416 = vst [vmem:[%s257 + $0xdc] sm:$0xf] %v1352
        %1417 = vst [vmem:[%s257 + $0xe0] sm:$0xf] %v1353
        %1418 = vst [vmem:[%s257 + $0xe4] sm:$0xf] %v1354
        %1419 = vst [vmem:[%s257 + $0xe8] sm:$0xf] %v1355
        %1420 = vst [vmem:[%s257 + $0xec] sm:$0xf] %v1356
        %1421 = vst [vmem:[%s257 + $0xf0] sm:$0xf] %v1357
        %1422 = vst [vmem:[%s257 + $0xf4] sm:$0xf] %v1358
        %1423 = vst [vmem:[%s257 + $0xf8] sm:$0xf] %v1359
        %1424 = vst [vmem:[%s257 + $0xfc] sm:$0xf] %v1360
      $region40: #{netd_forward.4} parent=31 // pred_fallthru
        _
      %s1425 = smul.u32 64, %s19
      %p1426 = scmp.lt.s32.totalorder %s1425, 255
      %s1427 = scalar_select %p1426, %s1425, 255
      %p1428 = scmp.lt.s32.totalorder %s20, 0
      %s1429 = scalar_select %p1428, %s20, 0
      %s1430 = sadd.s32 %s1429, %s1427
      %s1431 = smul.addr %s1430, 4
      %s1432 = scalar_lea.vmem %s3, %s1431
      // Predicated region
      $region41: #{netd_forward.4} parent=31 // pred_check
        %p1433 = pneg %p135
      $region42: #{netd_forward.4} parent=31 // pred_check_branch
        %1435 = sbr.rel (%p1433) target = $region44
      $region43: #{netd_forward.4} parent=31 // pred_region
        %s1436 = smul.u32 64, %s19
      $region44: #{netd_forward.4} parent=31 // pred_fallthru
        _
    $region32: #{netd_forward.4} parent=5 // pred_fallthru
      _
    %p1437 = scmp.le.s32.totalorder 2, %s9
    // Predicated region
    $region45: #{netd_forward.4} parent=5 // pred_check
      %p1438 = pneg %p1437
    $region46: #{netd_forward.4} parent=5 // pred_check_branch
      %1440 = sbr.rel (%p1438) target = $region48
    $region47: #{netd_forward.4} parent=5 // pred_region
      %s1441 = ssub.s32 %s9, 2
      // Predicated region
      $region49: #{netd_forward.4} parent=47 // pred_check
        %p1442 = pneg %p141
      $region50: #{netd_forward.4} parent=47 // pred_check_branch
        %1444 = sbr.rel (%p1442) target = $region52
      $region51: #{netd_forward.4} parent=47 // pred_region
        %s1445 = smul.u32 64, %s22
        %p1446 = scmp.lt.s32.totalorder %s1445, 255
        %s1447 = scalar_select %p1446, %s1445, 255
        %p1448 = scmp.lt.s32.totalorder %s23, 0
        %s1449 = scalar_select %p1448, %s23, 0
        %s1450 = sadd.s32 %s1449, %s1447
        %s1451 = smul.addr %s1450, 4
        %s1452 = scalar_lea.vmem %s3, %s1451
      $region52: #{netd_forward.4} parent=47 // pred_fallthru
        _
    $region48: #{netd_forward.4} parent=5 // pred_fallthru
      _
  $region6: #{netd_forward.4} parent=0 // loop_footer
    %s13 = sadd.s32 1, %s9
  $region7: #{netd_forward.4} parent=0 // loop_footer_branch
    %8 = sbr.rel target = $region3
  $region8: #{netd_forward.4} parent=0 // loop_exit
    _

// kernel: netd_forward.5
$region0: #{netd_forward.5}
  #allocation0 [shape = 'u32[]', space=smem, size = 0x4, offset = 0x4, fixed_abs, tag = 'smem constant byte address 0x4 - core index']
  #allocation1 [shape = 'u32[72,128]{1,0:T(1,128)}', space=vmem, size = 0x9000, scoped, tag = 'internal scratch']
  #allocation2 [shape = 'f32[256,128]{1,0:T(8,128)}', space=vmem, size = 0x20000, scoped, tag = 'scratch operand']
  %s0 = inlined_call_operand.vmem [shape: bf16[512,128], index: 0, kind: input, shape index: {}]
  %s1 = inlined_call_operand.vmem [shape: bf16[128,128], index: 1, kind: input, shape index: {}]
  %s2 = inlined_call_operand.vmem [shape: f32[1,128], index: 2, kind: input, shape index: {}]
  %s3 = inlined_call_operand.vmem [shape: bf16[512,128], index: 3, kind: output, shape index: {}]
  %s4 = sld [smem:[#allocation0]]
  $region53: #{netd_forward.5} parent=0
    _
  %s6 = ssub.s32 1, %s4
  %s7 = scalar_select 0, %s6, %s4
  loop: start=0, step=1, limit=4
  $region2: #{netd_forward.5} parent=0 // loop_pre_header
    _
  $region3: #{netd_forward.5} parent=0 // loop_header
    %s9 = sphi 0, %s13
    %p10 = scmp.ge.s32.totalorder %s9, 4
    %s16 = sphi 0, %s35
    %s17 = sphi 0, %s31
    %s18 = sphi 0, %s27
    %s19 = sphi 0, %s16
    %s20 = sphi 0, %s17
    %s21 = sphi 0, %s18
    %s22 = sphi 0, %s19
    %s23 = sphi 0, %s20
    %s24 = sphi 0, %s21
    %s40 = sphi 0, %s42
    %s43 = sphi 0, %s40
    %s44 = sphi 0, %s43
    %s60 = sphi 0, %s44
    %s68 = sphi 0, %s70
    %s71 = sphi 0, %s68
    %s72 = sphi 0, %s71
    %s88 = sphi 0, %s72
    %s94 = sphi 0, %s96
    %s97 = sphi 0, %s94
    %s98 = sphi 0, %s97
    %s114 = sphi 0, %s98
    %s122 = sphi 0, %s124
    %s125 = sphi 0, %s122
    %s126 = sphi 0, %s125
    %s142 = sphi 0, %s126
  $region4: #{netd_forward.5} parent=0 // loop_header_branch
    %12 = sbr.rel (%p10) target = $region8
  $region5: #{netd_forward.5} parent=0 // loop_body
    %s14 = ssub.s32 %s9, 1
    %s15 = ssub.s32 %s9, 2
    %s25 = sadd.s32 1, %s18
    %p26 = scmp.ge.s32.totalorder %s25, 1
    %s27 = scalar_select %p26, 0, %s25
    %s28 = sadd.s32 1, %s17
    %s29 = scalar_select %p26, %s28, %s17
    %p30 = scmp.ge.s32.totalorder %s29, 1
    %s31 = scalar_select %p30, 0, %s29
    %s32 = sadd.s32 1, %s16
    %s33 = scalar_select %p30, %s32, %s16
    %p34 = scmp.ge.s32.totalorder %s33, 2
    %s35 = scalar_select %p34, 0, %s33
    %s36 = ssub.s32 %s16, %s35
    %s37 = ssub.s32 %s18, %s27
    %s38 = sor.u32 %s36, %s37
    %p39 = scmp.eq.s32.totalorder %s38, 0
    %s41 = sadd.s32 %s40, 1
    %s42 = scalar_select %p39, %s40, %s41
    %p45 = pneg %p39
    %p46 = scmp.eq.s32.totalorder %s9, 1
    %p47 = por %p45, %p46
    %p48 = scmp.ne.s32.totalorder %s40, %s43
    %p49 = scmp.eq.s32.totalorder %s9, 0
    %p50 = por %p48, %p49
    %p51 = scmp.ne.s32.totalorder %s40, %s43
    %p52 = scmp.eq.s32.totalorder %s14, 1
    %p53 = por %p51, %p52
    %p54 = scmp.ne.s32.totalorder %s43, %s44
    %p55 = scmp.eq.s32.totalorder %s14, 0
    %p56 = por %p54, %p55
    %p57 = scmp.ne.s32.totalorder %s43, %s44
    %p58 = scmp.eq.s32.totalorder %s15, 1
    %p59 = por %p57, %p58
    %p61 = scmp.ne.s32.totalorder %s44, %s60
    %p62 = scmp.eq.s32.totalorder %s15, 0
    %p63 = por %p61, %p62
    %s64 = ssub.s32 %s18, %s27
    %s65 = ssub.s32 %s17, %s31
    %s66 = sor.u32 %s64, %s65
    %p67 = scmp.eq.s32.totalorder %s66, 0
    %s69 = sadd.s32 %s68, 1
    %s70 = scalar_select %p67, %s68, %s69
    %p73 = pneg %p67
    %p74 = scmp.eq.s32.totalorder %s9, 1
    %p75 = por %p73, %p74
    %p76 = scmp.ne.s32.totalorder %s68, %s71
    %p77 = scmp.eq.s32.totalorder %s9, 0
    %p78 = por %p76, %p77
    %p79 = scmp.ne.s32.totalorder %s68, %s71
    %p80 = scmp.eq.s32.totalorder %s14, 1
    %p81 = por %p79, %p80
    %p82 = scmp.ne.s32.totalorder %s71, %s72
    %p83 = scmp.eq.s32.totalorder %s14, 0
    %p84 = por %p82, %p83
    %p85 = scmp.ne.s32.totalorder %s71, %s72
    %p86 = scmp.eq.s32.totalorder %s15, 1
    %p87 = por %p85, %p86
    %p89 = scmp.ne.s32.totalorder %s72, %s88
    %p90 = scmp.eq.s32.totalorder %s15, 0
    %p91 = por %p89, %p90
    %s92 = ssub.s32 %s17, %s31
    %p93 = scmp.eq.s32.totalorder %s92, 0
    %s95 = sadd.s32 %s94, 1
    %s96 = scalar_select %p93, %s94, %s95
    %p99 = pneg %p93
    %p100 = scmp.eq.s32.totalorder %s9, 1
    %p101 = por %p99, %p100
    %p102 = scmp.ne.s32.totalorder %s94, %s97
    %p103 = scmp.eq.s32.totalorder %s9, 0
    %p104 = por %p102, %p103
    %p105 = scmp.ne.s32.totalorder %s94, %s97
    %p106 = scmp.eq.s32.totalorder %s14, 1
    %p107 = por %p105, %p106
    %p108 = scmp.ne.s32.totalorder %s97, %s98
    %p109 = scmp.eq.s32.totalorder %s14, 0
    %p110 = por %p108, %p109
    %p111 = scmp.ne.s32.totalorder %s97, %s98
    %p112 = scmp.eq.s32.totalorder %s15, 1
    %p113 = por %p111, %p112
    %p115 = scmp.ne.s32.totalorder %s98, %s114
    %p116 = scmp.eq.s32.totalorder %s15, 0
    %p117 = por %p115, %p116
    %s118 = ssub.s32 %s16, %s35
    %s119 = ssub.s32 %s17, %s31
    %s120 = sor.u32 %s118, %s119
    %p121 = scmp.eq.s32.totalorder %s120, 0
    %s123 = sadd.s32 %s122, 1
    %s124 = scalar_select %p121, %s122, %s123
    %p127 = pneg %p121
    %p128 = scmp.eq.s32.totalorder %s9, 1
    %p129 = por %p127, %p128
    %p130 = scmp.ne.s32.totalorder %s122, %s125
    %p131 = scmp.eq.s32.totalorder %s9, 0
    %p132 = por %p130, %p131
    %p133 = scmp.ne.s32.totalorder %s122, %s125
    %p134 = scmp.eq.s32.totalorder %s14, 1
    %p135 = por %p133, %p134
    %p136 = scmp.ne.s32.totalorder %s125, %s126
    %p137 = scmp.eq.s32.totalorder %s14, 0
    %p138 = por %p136, %p137
    %p139 = scmp.ne.s32.totalorder %s125, %s126
    %p140 = scmp.eq.s32.totalorder %s15, 1
    %p141 = por %p139, %p140
    %p143 = scmp.ne.s32.totalorder %s126, %s142
    %p144 = scmp.eq.s32.totalorder %s15, 0
    %p145 = por %p143, %p144
    %p146 = scmp.le.s32.totalorder 1, %s9
    %p147 = scmp.lt.s32.totalorder %s9, 3
    %p148 = pnand %p146, %p147
    %p149 = pneg %p148
    // Predicated region
    $region9: #{netd_forward.5} parent=5 // pred_check
      _
    $region10: #{netd_forward.5} parent=5 // pred_check_branch
      %151 = sbr.rel (%p148) target = $region12
    $region11: #{netd_forward.5} parent=5 // pred_region
      %s152 = ssub.s32 %s9, 1
      // Predicated region
      $region13: #{netd_forward.5} parent=11 // pred_check
        %p153 = pneg %p84
      $region14: #{netd_forward.5} parent=11 // pred_check_branch
        %155 = sbr.rel (%p153) target = $region16
      $region15: #{netd_forward.5} parent=11 // pred_region
        %s156 = smul.u32 16, %s21
        %p157 = scmp.lt.s32.totalorder %s156, 15
        %s158 = scalar_select %p157, %s156, 15
        %p159 = scmp.lt.s32.totalorder %s20, 0
        %s160 = scalar_select %p159, %s20, 0
        %s161 = sadd.s32 %s160, %s158
        %s162 = smul.addr %s161, 4
        %s163 = scalar_lea.vmem %s1, %s162
        %s164 = smul.u32 16, %s21
      $region16: #{netd_forward.5} parent=11 // pred_fallthru
        _
      // Predicated region
      $region17: #{netd_forward.5} parent=11 // pred_check
        %p165 = pneg %p110
      $region18: #{netd_forward.5} parent=11 // pred_check_branch
        %167 = sbr.rel (%p165) target = $region20
      $region19: #{netd_forward.5} parent=11 // pred_region
        %p168 = scmp.lt.s32.totalorder %s20, 0
        %s169 = scalar_select %p168, %s20, 0
        %s170 = scalar_lea.vmem %s2, %s169
      $region20: #{netd_forward.5} parent=11 // pred_fallthru
        _
    $region12: #{netd_forward.5} parent=5 // pred_fallthru
      _
    %p171 = scmp.lt.s32.totalorder %s9, 2
    // Predicated region
    $region21: #{netd_forward.5} parent=5 // pred_check
      %p172 = pneg %p171
    $region22: #{netd_forward.5} parent=5 // pred_check_branch
      %174 = sbr.rel (%p172) target = $region24
    $region23: #{netd_forward.5} parent=5 // pred_region
      // Predicated region
      $region25: #{netd_forward.5} parent=23 // pred_check
        %p175 = pneg %p50
      $region26: #{netd_forward.5} parent=23 // pred_check_branch
        %177 = sbr.rel (%p175) target = $region28
      $region27: #{netd_forward.5} parent=23 // pred_region
        %s178 = smul.u32 32, %s16
        %p179 = scmp.lt.s32.totalorder %s178, 63
        %s180 = scalar_select %p179, %s178, 63
        %p181 = scmp.lt.s32.totalorder %s18, 0
        %s182 = scalar_select %p181, %s18, 0
        %s183 = sadd.s32 %s182, %s180
        %s184 = smul.addr %s183, 4
        %s185 = scalar_lea.vmem %s0, %s184
        %s186 = smul.u32 32, %s16
      $region28: #{netd_forward.5} parent=23 // pred_fallthru
        _
    $region24: #{netd_forward.5} parent=5 // pred_fallthru
      _
    %p187 = scmp.le.s32.totalorder 1, %s9
    %p188 = scmp.lt.s32.totalorder %s9, 3
    %p189 = pnand %p187, %p188
    %p190 = pneg %p189
    // Predicated region
    $region29: #{netd_forward.5} parent=5 // pred_check
      _
    $region30: #{netd_forward.5} parent=5 // pred_check_branch
      %192 = sbr.rel (%p189) target = $region32
    $region31: #{netd_forward.5} parent=5 // pred_region
      %s193 = ssub.s32 %s9, 1
      %s194 = smul.u32 32, %s19
      %p195 = scmp.lt.s32.totalorder %s194, 63
      %s196 = scalar_select %p195, %s194, 63
      %p197 = scmp.lt.s32.totalorder %s21, 0
      %s198 = scalar_select %p197, %s21, 0
      %s199 = sadd.s32 %s198, %s196
      %s200 = smul.addr %s199, 4
      %s201 = scalar_lea.vmem %s0, %s200
      %p202 = pneg %p56
      %p203 = pneg %p53
      %s204 = smul.u32 16, %s21
      %p205 = scmp.lt.s32.totalorder %s204, 15
      %s206 = scalar_select %p205, %s204, 15
      %p207 = scmp.lt.s32.totalorder %s20, 0
      %s208 = scalar_select %p207, %s20, 0
      %s209 = sadd.s32 %s208, %s206
      %s210 = smul.addr %s209, 4
      %s211 = scalar_lea.vmem %s1, %s210
      %p212 = pneg %p84
      %p213 = pneg %p81
      %p214 = scmp.lt.s32.totalorder %s20, 0
      %s215 = scalar_select %p214, %s20, 0
      %s216 = scalar_lea.vmem %s2, %s215
      %p217 = pneg %p110
      %p218 = pneg %p107
      %p219 = pneg %p138
      %p220 = pneg %p135
      %s221 = smul.u32 32, %s19
      %p222 = scmp.lt.s32.totalorder %s221, 63
      %s223 = scalar_select %p222, %s221, 63
      %p224 = scmp.lt.s32.totalorder %s20, 0
      %s225 = scalar_select %p224, %s20, 0
      %s226 = sadd.s32 %s225, %s223
      %s227 = smul.addr %s226, 4
      %s228 = scalar_lea.vmem %s3, %s227
      %s229 = smul.u32 32, %s19
      %p230 = scmp.lt.s32.totalorder %s229, 63
      %s231 = scalar_select %p230, %s229, 63
      %p232 = scmp.lt.s32.totalorder %s21, 0
      %s233 = scalar_select %p232, %s21, 0
      %s234 = sadd.s32 %s233, %s231
      %s235 = smul.addr %s234, 4
      %s236 = scalar_lea.vmem %s0, %s235
      %s237 = smul.u32 32, %s19
      %s238 = smul.u32 16, %s21
      %p239 = scmp.lt.s32.totalorder %s238, 15
      %s240 = scalar_select %p239, %s238, 15
      %p241 = scmp.lt.s32.totalorder %s20, 0
      %s242 = scalar_select %p241, %s20, 0
      %s243 = sadd.s32 %s242, %s240
      %s244 = smul.addr %s243, 4
      %s245 = scalar_lea.vmem %s1, %s244
      %s246 = smul.u32 16, %s21
      %p247 = scmp.lt.s32.totalorder %s20, 0
      %s248 = scalar_select %p247, %s20, 0
      %s249 = scalar_lea.vmem %s2, %s248
      %s250 = smul.u32 32, %s19
      %p251 = scmp.lt.s32.totalorder %s250, 63
      %s252 = scalar_select %p251, %s250, 63
      %p253 = scmp.lt.s32.totalorder %s20, 0
      %s254 = scalar_select %p253, %s20, 0
      %s255 = sadd.s32 %s254, %s252
      %s256 = smul.addr %s255, 4
      %s257 = scalar_lea.vmem %s3, %s256
      %s258 = smul.u32 32, %s19
      %p259 = scmp.eq.s32.totalorder %s21, 0
      // Predicated region
      $region33: #{netd_forward.5} parent=31 // pred_check
        %p260 = pneg %p259
      $region34: #{netd_forward.5} parent=31 // pred_check_branch
        %262 = sbr.rel (%p260) target = $region36
      $region35: #{netd_forward.5} parent=31 // pred_region
        %263 = vst [vmem:[#allocation2] sm:$0xff] 0.0
        %264 = vst [vmem:[#allocation2 + $0x8] sm:$0xff] 0.0
        %265 = vst [vmem:[#allocation2 + $0x10] sm:$0xff] 0.0
        %266 = vst [vmem:[#allocation2 + $0x18] sm:$0xff] 0.0
        %267 = vst [vmem:[#allocation2 + $0x20] sm:$0xff] 0.0
        %268 = vst [vmem:[#allocation2 + $0x28] sm:$0xff] 0.0
        %269 = vst [vmem:[#allocation2 + $0x30] sm:$0xff] 0.0
        %270 = vst [vmem:[#allocation2 + $0x38] sm:$0xff] 0.0
        %271 = vst [vmem:[#allocation2 + $0x40] sm:$0xff] 0.0
        %272 = vst [vmem:[#allocation2 + $0x48] sm:$0xff] 0.0
        %273 = vst [vmem:[#allocation2 + $0x50] sm:$0xff] 0.0
        %274 = vst [vmem:[#allocation2 + $0x58] sm:$0xff] 0.0
        %275 = vst [vmem:[#allocation2 + $0x60] sm:$0xff] 0.0
        %276 = vst [vmem:[#allocation2 + $0x68] sm:$0xff] 0.0
        %277 = vst [vmem:[#allocation2 + $0x70] sm:$0xff] 0.0
        %278 = vst [vmem:[#allocation2 + $0x78] sm:$0xff] 0.0
        %279 = vst [vmem:[#allocation2 + $0x80] sm:$0xff] 0.0
        %280 = vst [vmem:[#allocation2 + $0x88] sm:$0xff] 0.0
        %281 = vst [vmem:[#allocation2 + $0x90] sm:$0xff] 0.0
        %282 = vst [vmem:[#allocation2 + $0x98] sm:$0xff] 0.0
        %283 = vst [vmem:[#allocation2 + $0xa0] sm:$0xff] 0.0
        %284 = vst [vmem:[#allocation2 + $0xa8] sm:$0xff] 0.0
        %285 = vst [vmem:[#allocation2 + $0xb0] sm:$0xff] 0.0
        %286 = vst [vmem:[#allocation2 + $0xb8] sm:$0xff] 0.0
        %287 = vst [vmem:[#allocation2 + $0xc0] sm:$0xff] 0.0
        %288 = vst [vmem:[#allocation2 + $0xc8] sm:$0xff] 0.0
        %289 = vst [vmem:[#allocation2 + $0xd0] sm:$0xff] 0.0
        %290 = vst [vmem:[#allocation2 + $0xd8] sm:$0xff] 0.0
        %291 = vst [vmem:[#allocation2 + $0xe0] sm:$0xff] 0.0
        %292 = vst [vmem:[#allocation2 + $0xe8] sm:$0xff] 0.0
        %293 = vst [vmem:[#allocation2 + $0xf0] sm:$0xff] 0.0
        %294 = vst [vmem:[#allocation2 + $0xf8] sm:$0xff] 0.0
      $region36: #{netd_forward.5} parent=31 // pred_fallthru
        _
      %v295 = vld [vmem:[#allocation2] sm:$0xff]
      %v296 = vld [vmem:[#allocation2 + $0x8] sm:$0xff]
      %v297 = vld [vmem:[#allocation2 + $0x10] sm:$0xff]
      %v298 = vld [vmem:[#allocation2 + $0x18] sm:$0xff]
      %v299 = vld [vmem:[#allocation2 + $0x20] sm:$0xff]
      %v300 = vld [vmem:[#allocation2 + $0x28] sm:$0xff]
      %v301 = vld [vmem:[#allocation2 + $0x30] sm:$0xff]
      %v302 = vld [vmem:[#allocation2 + $0x38] sm:$0xff]
      %v303 = vld [vmem:[#allocation2 + $0x40] sm:$0xff]
      %v304 = vld [vmem:[#allocation2 + $0x48] sm:$0xff]
      %v305 = vld [vmem:[#allocation2 + $0x50] sm:$0xff]
      %v306 = vld [vmem:[#allocation2 + $0x58] sm:$0xff]
      %v307 = vld [vmem:[#allocation2 + $0x60] sm:$0xff]
      %v308 = vld [vmem:[#allocation2 + $0x68] sm:$0xff]
      %v309 = vld [vmem:[#allocation2 + $0x70] sm:$0xff]
      %v310 = vld [vmem:[#allocation2 + $0x78] sm:$0xff]
      %v311 = vld [vmem:[#allocation2 + $0x80] sm:$0xff]
      %v312 = vld [vmem:[#allocation2 + $0x88] sm:$0xff]
      %v313 = vld [vmem:[#allocation2 + $0x90] sm:$0xff]
      %v314 = vld [vmem:[#allocation2 + $0x98] sm:$0xff]
      %v315 = vld [vmem:[#allocation2 + $0xa0] sm:$0xff]
      %v316 = vld [vmem:[#allocation2 + $0xa8] sm:$0xff]
      %v317 = vld [vmem:[#allocation2 + $0xb0] sm:$0xff]
      %v318 = vld [vmem:[#allocation2 + $0xb8] sm:$0xff]
      %v319 = vld [vmem:[#allocation2 + $0xc0] sm:$0xff]
      %v320 = vld [vmem:[#allocation2 + $0xc8] sm:$0xff]
      %v321 = vld [vmem:[#allocation2 + $0xd0] sm:$0xff]
      %v322 = vld [vmem:[#allocation2 + $0xd8] sm:$0xff]
      %v323 = vld [vmem:[#allocation2 + $0xe0] sm:$0xff]
      %v324 = vld [vmem:[#allocation2 + $0xe8] sm:$0xff]
      %v325 = vld [vmem:[#allocation2 + $0xf0] sm:$0xff]
      %v326 = vld [vmem:[#allocation2 + $0xf8] sm:$0xff]
      %v327 = vld [vmem:[%s236] sm:$0xf]
      %v328 = vld [vmem:[%s236 + $0x4] sm:$0xf]
      %v329 = vld [vmem:[%s236 + $0x8] sm:$0xf]
      %v330 = vld [vmem:[%s236 + $0xc] sm:$0xf]
      %v331 = vld [vmem:[%s236 + $0x10] sm:$0xf]
      %v332 = vld [vmem:[%s236 + $0x14] sm:$0xf]
      %v333 = vld [vmem:[%s236 + $0x18] sm:$0xf]
      %v334 = vld [vmem:[%s236 + $0x1c] sm:$0xf]
      %v335 = vld [vmem:[%s236 + $0x20] sm:$0xf]
      %v336 = vld [vmem:[%s236 + $0x24] sm:$0xf]
      %v337 = vld [vmem:[%s236 + $0x28] sm:$0xf]
      %v338 = vld [vmem:[%s236 + $0x2c] sm:$0xf]
      %v339 = vld [vmem:[%s236 + $0x30] sm:$0xf]
      %v340 = vld [vmem:[%s236 + $0x34] sm:$0xf]
      %v341 = vld [vmem:[%s236 + $0x38] sm:$0xf]
      %v342 = vld [vmem:[%s236 + $0x3c] sm:$0xf]
      %v343 = vld [vmem:[%s236 + $0x40] sm:$0xf]
      %v344 = vld [vmem:[%s236 + $0x44] sm:$0xf]
      %v345 = vld [vmem:[%s236 + $0x48] sm:$0xf]
      %v346 = vld [vmem:[%s236 + $0x4c] sm:$0xf]
      %v347 = vld [vmem:[%s236 + $0x50] sm:$0xf]
      %v348 = vld [vmem:[%s236 + $0x54] sm:$0xf]
      %v349 = vld [vmem:[%s236 + $0x58] sm:$0xf]
      %v350 = vld [vmem:[%s236 + $0x5c] sm:$0xf]
      %v351 = vld [vmem:[%s236 + $0x60] sm:$0xf]
      %v352 = vld [vmem:[%s236 + $0x64] sm:$0xf]
      %v353 = vld [vmem:[%s236 + $0x68] sm:$0xf]
      %v354 = vld [vmem:[%s236 + $0x6c] sm:$0xf]
      %v355 = vld [vmem:[%s236 + $0x70] sm:$0xf]
      %v356 = vld [vmem:[%s236 + $0x74] sm:$0xf]
      %v357 = vld [vmem:[%s236 + $0x78] sm:$0xf]
      %v358 = vld [vmem:[%s236 + $0x7c] sm:$0xf]
      %v359 = vld [vmem:[%s245] sm:$0xf]
      %v360 = vld [vmem:[%s245 + $0x4] sm:$0xf]
      %v361 = vld [vmem:[%s245 + $0x8] sm:$0xf]
      %v362 = vld [vmem:[%s245 + $0xc] sm:$0xf]
      %v363 = vld [vmem:[%s245 + $0x10] sm:$0xf]
      %v364 = vld [vmem:[%s245 + $0x14] sm:$0xf]
      %v365 = vld [vmem:[%s245 + $0x18] sm:$0xf]
      %v366 = vld [vmem:[%s245 + $0x1c] sm:$0xf]
      %v367 = vld [vmem:[%s245 + $0x20] sm:$0xf]
      %v368 = vld [vmem:[%s245 + $0x24] sm:$0xf]
      %v369 = vld [vmem:[%s245 + $0x28] sm:$0xf]
      %v370 = vld [vmem:[%s245 + $0x2c] sm:$0xf]
      %v371 = vld [vmem:[%s245 + $0x30] sm:$0xf]
      %v372 = vld [vmem:[%s245 + $0x34] sm:$0xf]
      %v373 = vld [vmem:[%s245 + $0x38] sm:$0xf]
      %v374 = vld [vmem:[%s245 + $0x3c] sm:$0xf]
      %v407 = vunpack.c.l.b16 %v327
      %v408 = vunpack.c.l.b16 %v328
      %v409 = vunpack.c.l.b16 %v329
      %v410 = vunpack.c.l.b16 %v330
      %v411 = vunpack.c.l.b16 %v331
      %v412 = vunpack.c.l.b16 %v332
      %v413 = vunpack.c.l.b16 %v333
      %v414 = vunpack.c.l.b16 %v334
      %v415 = vunpack.c.l.b16 %v335
      %v416 = vunpack.c.l.b16 %v336
      %v417 = vunpack.c.l.b16 %v337
      %v418 = vunpack.c.l.b16 %v338
      %v419 = vunpack.c.l.b16 %v339
      %v420 = vunpack.c.l.b16 %v340
      %v421 = vunpack.c.l.b16 %v341
      %v422 = vunpack.c.l.b16 %v342
      %v423 = vunpack.c.l.b16 %v343
      %v424 = vunpack.c.l.b16 %v344
      %v425 = vunpack.c.l.b16 %v345
      %v426 = vunpack.c.l.b16 %v346
      %v427 = vunpack.c.l.b16 %v347
      %v428 = vunpack.c.l.b16 %v348
      %v429 = vunpack.c.l.b16 %v349
      %v430 = vunpack.c.l.b16 %v350
      %v431 = vunpack.c.l.b16 %v351
      %v432 = vunpack.c.l.b16 %v352
      %v433 = vunpack.c.l.b16 %v353
      %v434 = vunpack.c.l.b16 %v354
      %v435 = vunpack.c.l.b16 %v355
      %v436 = vunpack.c.l.b16 %v356
      %v437 = vunpack.c.l.b16 %v357
      %v438 = vunpack.c.l.b16 %v358
      %v439 = vpack.c.b16 %v408, %v407
      %v440 = vpack.c.b16 %v410, %v409
      %v441 = vpack.c.b16 %v412, %v411
      %v442 = vpack.c.b16 %v414, %v413
      %v443 = vpack.c.b16 %v416, %v415
      %v444 = vpack.c.b16 %v418, %v417
      %v445 = vpack.c.b16 %v420, %v419
      %v446 = vpack.c.b16 %v422, %v421
      %v447 = vpack.c.b16 %v424, %v423
      %v448 = vpack.c.b16 %v426, %v425
      %v449 = vpack.c.b16 %v428, %v427
      %v450 = vpack.c.b16 %v430, %v429
      %v451 = vpack.c.b16 %v432, %v431
      %v452 = vpack.c.b16 %v434, %v433
      %v453 = vpack.c.b16 %v436, %v435
      %v454 = vpack.c.b16 %v438, %v437
      %v487 = vunpack.c.l.b16 %v359
      %v488 = vunpack.c.l.b16 %v360
      %v489 = vunpack.c.l.b16 %v361
      %v490 = vunpack.c.l.b16 %v362
      %v491 = vunpack.c.l.b16 %v363
      %v492 = vunpack.c.l.b16 %v364
      %v493 = vunpack.c.l.b16 %v365
      %v494 = vunpack.c.l.b16 %v366
      %v495 = vunpack.c.l.b16 %v367
      %v496 = vunpack.c.l.b16 %v368
      %v497 = vunpack.c.l.b16 %v369
      %v498 = vunpack.c.l.b16 %v370
      %v499 = vunpack.c.l.b16 %v371
      %v500 = vunpack.c.l.b16 %v372
      %v501 = vunpack.c.l.b16 %v373
      %v502 = vunpack.c.l.b16 %v374
      %v503 = vpack.c.b16 %v488, %v487
      %v504 = vpack.c.b16 %v490, %v489
      %v505 = vpack.c.b16 %v492, %v491
      %v506 = vpack.c.b16 %v494, %v493
      %v507 = vpack.c.b16 %v496, %v495
      %v508 = vpack.c.b16 %v498, %v497
      %v509 = vpack.c.b16 %v500, %v499
      %v510 = vpack.c.b16 %v502, %v501
      %519 = vmatpush.bf16.msra.mxu0 %v510
      %520 = vmatpush.bf16.msra.mxu0 %v509
      %521 = vmatpush.bf16.msra.mxu0 %v508
      %522 = vmatpush.bf16.msra.mxu0 %v507
      %523 = vmatpush.bf16.msra.mxu0 %v506
      %524 = vmatpush.bf16.msra.mxu0 %v505
      %525 = vmatpush.bf16.msra.mxu0 %v504
      %526 = vmatpush.bf16.msra.mxu0 %v503
      %527 = vmatmul.bf16.gmra.mxu0 %v439
      %v528 = vpop.f32.mrf.mxu0
      %v529 = vadd.f32 0.0, %v528
      %v530 = vpop.f32.mrf.mxu0
      %v531 = vadd.f32 0.0, %v530
      %532 = vmatmul.bf16.gmra.mxu0 %v440
      %v533 = vpop.f32.mrf.mxu0
      %v534 = vadd.f32 0.0, %v533
      %v535 = vpop.f32.mrf.mxu0
      %v536 = vadd.f32 0.0, %v535
      %537 = vmatmul.bf16.gmra.mxu0 %v441
      %v538 = vpop.f32.mrf.mxu0
      %v539 = vadd.f32 0.0, %v538
      %v540 = vpop.f32.mrf.mxu0
      %v541 = vadd.f32 0.0, %v540
      %542 = vmatmul.bf16.gmra.mxu0 %v442
      %v543 = vpop.f32.mrf.mxu0
      %v544 = vadd.f32 0.0, %v543
      %v545 = vpop.f32.mrf.mxu0
      %v546 = vadd.f32 0.0, %v545
      %547 = vmatmul.bf16.gmra.mxu0 %v443
      %v548 = vpop.f32.mrf.mxu0
      %v549 = vadd.f32 0.0, %v548
      %v550 = vpop.f32.mrf.mxu0
      %v551 = vadd.f32 0.0, %v550
      %552 = vmatmul.bf16.gmra.mxu0 %v444
      %v553 = vpop.f32.mrf.mxu0
      %v554 = vadd.f32 0.0, %v553
      %v555 = vpop.f32.mrf.mxu0
      %v556 = vadd.f32 0.0, %v555
      %557 = vmatmul.bf16.gmra.mxu0 %v445
      %v558 = vpop.f32.mrf.mxu0
      %v559 = vadd.f32 0.0, %v558
      %v560 = vpop.f32.mrf.mxu0
      %v561 = vadd.f32 0.0, %v560
      %562 = vmatmul.bf16.gmra.mxu0 %v446
      %v563 = vpop.f32.mrf.mxu0
      %v564 = vadd.f32 0.0, %v563
      %v565 = vpop.f32.mrf.mxu0
      %v566 = vadd.f32 0.0, %v565
      %567 = vmatmul.bf16.gmra.mxu0 %v447
      %v568 = vpop.f32.mrf.mxu0
      %v569 = vadd.f32 0.0, %v568
      %v570 = vpop.f32.mrf.mxu0
      %v571 = vadd.f32 0.0, %v570
      %572 = vmatmul.bf16.gmra.mxu0 %v448
      %v573 = vpop.f32.mrf.mxu0
      %v574 = vadd.f32 0.0, %v573
      %v575 = vpop.f32.mrf.mxu0
      %v576 = vadd.f32 0.0, %v575
      %577 = vmatmul.bf16.gmra.mxu0 %v449
      %v578 = vpop.f32.mrf.mxu0
      %v579 = vadd.f32 0.0, %v578
      %v580 = vpop.f32.mrf.mxu0
      %v581 = vadd.f32 0.0, %v580
      %582 = vmatmul.bf16.gmra.mxu0 %v450
      %v583 = vpop.f32.mrf.mxu0
      %v584 = vadd.f32 0.0, %v583
      %v585 = vpop.f32.mrf.mxu0
      %v586 = vadd.f32 0.0, %v585
      %587 = vmatmul.bf16.gmra.mxu0 %v451
      %v588 = vpop.f32.mrf.mxu0
      %v589 = vadd.f32 0.0, %v588
      %v590 = vpop.f32.mrf.mxu0
      %v591 = vadd.f32 0.0, %v590
      %592 = vmatmul.bf16.gmra.mxu0 %v452
      %v593 = vpop.f32.mrf.mxu0
      %v594 = vadd.f32 0.0, %v593
      %v595 = vpop.f32.mrf.mxu0
      %v596 = vadd.f32 0.0, %v595
      %597 = vmatmul.bf16.gmra.mxu0 %v453
      %v598 = vpop.f32.mrf.mxu0
      %v599 = vadd.f32 0.0, %v598
      %v600 = vpop.f32.mrf.mxu0
      %v601 = vadd.f32 0.0, %v600
      %602 = vmatmul.bf16.gmra.mxu0 %v454
      %v603 = vpop.f32.mrf.mxu0
      %v604 = vadd.f32 0.0, %v603
      %v605 = vpop.f32.mrf.mxu0
      %v606 = vadd.f32 0.0, %v605
      %607 = vdwg.mxu0
      %v608 = vadd.f32 %v295, %v529
      %v609 = vadd.f32 %v296, %v531
      %v610 = vadd.f32 %v297, %v534
      %v611 = vadd.f32 %v298, %v536
      %v612 = vadd.f32 %v299, %v539
      %v613 = vadd.f32 %v300, %v541
      %v614 = vadd.f32 %v301, %v544
      %v615 = vadd.f32 %v302, %v546
      %v616 = vadd.f32 %v303, %v549
      %v617 = vadd.f32 %v304, %v551
      %v618 = vadd.f32 %v305, %v554
      %v619 = vadd.f32 %v306, %v556
      %v620 = vadd.f32 %v307, %v559
      %v621 = vadd.f32 %v308, %v561
      %v622 = vadd.f32 %v309, %v564
      %v623 = vadd.f32 %v310, %v566
      %v624 = vadd.f32 %v311, %v569
      %v625 = vadd.f32 %v312, %v571
      %v626 = vadd.f32 %v313, %v574
      %v627 = vadd.f32 %v314, %v576
      %v628 = vadd.f32 %v315, %v579
      %v629 = vadd.f32 %v316, %v581
      %v630 = vadd.f32 %v317, %v584
      %v631 = vadd.f32 %v318, %v586
      %v632 = vadd.f32 %v319, %v589
      %v633 = vadd.f32 %v320, %v591
      %v634 = vadd.f32 %v321, %v594
      %v635 = vadd.f32 %v322, %v596
      %v636 = vadd.f32 %v323, %v599
      %v637 = vadd.f32 %v324, %v601
      %v638 = vadd.f32 %v325, %v604
      %v639 = vadd.f32 %v326, %v606
      %640 = vst [vmem:[#allocation2] sm:$0xff] %v608
      %641 = vst [vmem:[#allocation2 + $0x8] sm:$0xff] %v609
      %642 = vst [vmem:[#allocation2 + $0x10] sm:$0xff] %v610
      %643 = vst [vmem:[#allocation2 + $0x18] sm:$0xff] %v611
      %644 = vst [vmem:[#allocation2 + $0x20] sm:$0xff] %v612
      %645 = vst [vmem:[#allocation2 + $0x28] sm:$0xff] %v613
      %646 = vst [vmem:[#allocation2 + $0x30] sm:$0xff] %v614
      %647 = vst [vmem:[#allocation2 + $0x38] sm:$0xff] %v615
      %648 = vst [vmem:[#allocation2 + $0x40] sm:$0xff] %v616
      %649 = vst [vmem:[#allocation2 + $0x48] sm:$0xff] %v617
      %650 = vst [vmem:[#allocation2 + $0x50] sm:$0xff] %v618
      %651 = vst [vmem:[#allocation2 + $0x58] sm:$0xff] %v619
      %652 = vst [vmem:[#allocation2 + $0x60] sm:$0xff] %v620
      %653 = vst [vmem:[#allocation2 + $0x68] sm:$0xff] %v621
      %654 = vst [vmem:[#allocation2 + $0x70] sm:$0xff] %v622
      %655 = vst [vmem:[#allocation2 + $0x78] sm:$0xff] %v623
      %656 = vst [vmem:[#allocation2 + $0x80] sm:$0xff] %v624
      %657 = vst [vmem:[#allocation2 + $0x88] sm:$0xff] %v625
      %658 = vst [vmem:[#allocation2 + $0x90] sm:$0xff] %v626
      %659 = vst [vmem:[#allocation2 + $0x98] sm:$0xff] %v627
      %660 = vst [vmem:[#allocation2 + $0xa0] sm:$0xff] %v628
      %661 = vst [vmem:[#allocation2 + $0xa8] sm:$0xff] %v629
      %662 = vst [vmem:[#allocation2 + $0xb0] sm:$0xff] %v630
      %663 = vst [vmem:[#allocation2 + $0xb8] sm:$0xff] %v631
      %664 = vst [vmem:[#allocation2 + $0xc0] sm:$0xff] %v632
      %665 = vst [vmem:[#allocation2 + $0xc8] sm:$0xff] %v633
      %666 = vst [vmem:[#allocation2 + $0xd0] sm:$0xff] %v634
      %667 = vst [vmem:[#allocation2 + $0xd8] sm:$0xff] %v635
      %668 = vst [vmem:[#allocation2 + $0xe0] sm:$0xff] %v636
      %669 = vst [vmem:[#allocation2 + $0xe8] sm:$0xff] %v637
      %670 = vst [vmem:[#allocation2 + $0xf0] sm:$0xff] %v638
      %671 = vst [vmem:[#allocation2 + $0xf8] sm:$0xff] %v639
      // Predicated region
      $region37: #{netd_forward.5} parent=31 // pred_check
        %p672 = pneg %p259
      $region38: #{netd_forward.5} parent=31 // pred_check_branch
        %674 = sbr.rel (%p672) target = $region40
      $region39: #{netd_forward.5} parent=31 // pred_region
        %v675 = vld [vmem:[#allocation2] sm:$0xff]
        %v676 = vld [vmem:[#allocation2 + $0x8] sm:$0xff]
        %v677 = vld [vmem:[#allocation2 + $0x10] sm:$0xff]
        %v678 = vld [vmem:[#allocation2 + $0x18] sm:$0xff]
        %v679 = vld [vmem:[#allocation2 + $0x20] sm:$0xff]
        %v680 = vld [vmem:[#allocation2 + $0x28] sm:$0xff]
        %v681 = vld [vmem:[#allocation2 + $0x30] sm:$0xff]
        %v682 = vld [vmem:[#allocation2 + $0x38] sm:$0xff]
        %v683 = vld [vmem:[#allocation2 + $0x40] sm:$0xff]
        %v684 = vld [vmem:[#allocation2 + $0x48] sm:$0xff]
        %v685 = vld [vmem:[#allocation2 + $0x50] sm:$0xff]
        %v686 = vld [vmem:[#allocation2 + $0x58] sm:$0xff]
        %v687 = vld [vmem:[#allocation2 + $0x60] sm:$0xff]
        %v688 = vld [vmem:[#allocation2 + $0x68] sm:$0xff]
        %v689 = vld [vmem:[#allocation2 + $0x70] sm:$0xff]
        %v690 = vld [vmem:[#allocation2 + $0x78] sm:$0xff]
        %v691 = vld [vmem:[#allocation2 + $0x80] sm:$0xff]
        %v692 = vld [vmem:[#allocation2 + $0x88] sm:$0xff]
        %v693 = vld [vmem:[#allocation2 + $0x90] sm:$0xff]
        %v694 = vld [vmem:[#allocation2 + $0x98] sm:$0xff]
        %v695 = vld [vmem:[#allocation2 + $0xa0] sm:$0xff]
        %v696 = vld [vmem:[#allocation2 + $0xa8] sm:$0xff]
        %v697 = vld [vmem:[#allocation2 + $0xb0] sm:$0xff]
        %v698 = vld [vmem:[#allocation2 + $0xb8] sm:$0xff]
        %v699 = vld [vmem:[#allocation2 + $0xc0] sm:$0xff]
        %v700 = vld [vmem:[#allocation2 + $0xc8] sm:$0xff]
        %v701 = vld [vmem:[#allocation2 + $0xd0] sm:$0xff]
        %v702 = vld [vmem:[#allocation2 + $0xd8] sm:$0xff]
        %v703 = vld [vmem:[#allocation2 + $0xe0] sm:$0xff]
        %v704 = vld [vmem:[#allocation2 + $0xe8] sm:$0xff]
        %v705 = vld [vmem:[#allocation2 + $0xf0] sm:$0xff]
        %v706 = vld [vmem:[#allocation2 + $0xf8] sm:$0xff]
        %v707 = vld [vmem:[%s249] sm:$0x1]
        %v709 = vperm.slane %v707, 0
        %v711 = vadd.f32 %v675, %v709
        %v712 = vadd.f32 %v676, %v709
        %v713 = vadd.f32 %v677, %v709
        %v714 = vadd.f32 %v678, %v709
        %v715 = vadd.f32 %v679, %v709
        %v716 = vadd.f32 %v680, %v709
        %v717 = vadd.f32 %v681, %v709
        %v718 = vadd.f32 %v682, %v709
        %v719 = vadd.f32 %v683, %v709
        %v720 = vadd.f32 %v684, %v709
        %v721 = vadd.f32 %v685, %v709
        %v722 = vadd.f32 %v686, %v709
        %v723 = vadd.f32 %v687, %v709
        %v724 = vadd.f32 %v688, %v709
        %v725 = vadd.f32 %v689, %v709
        %v726 = vadd.f32 %v690, %v709
        %v727 = vadd.f32 %v691, %v709
        %v728 = vadd.f32 %v692, %v709
        %v729 = vadd.f32 %v693, %v709
        %v730 = vadd.f32 %v694, %v709
        %v731 = vadd.f32 %v695, %v709
        %v732 = vadd.f32 %v696, %v709
        %v733 = vadd.f32 %v697, %v709
        %v734 = vadd.f32 %v698, %v709
        %v735 = vadd.f32 %v699, %v709
        %v736 = vadd.f32 %v700, %v709
        %v737 = vadd.f32 %v701, %v709
        %v738 = vadd.f32 %v702, %v709
        %v739 = vadd.f32 %v703, %v709
        %v740 = vadd.f32 %v704, %v709
        %v741 = vadd.f32 %v705, %v709
        %v742 = vadd.f32 %v706, %v709
        %v743 = vmul.f32 %v711, 0.2
        %v744 = vmul.f32 %v712, 0.2
        %v745 = vmul.f32 %v713, 0.2
        %v746 = vmul.f32 %v714, 0.2
        %v747 = vmul.f32 %v715, 0.2
        %v748 = vmul.f32 %v716, 0.2
        %v749 = vmul.f32 %v717, 0.2
        %v750 = vmul.f32 %v718, 0.2
        %v751 = vmul.f32 %v719, 0.2
        %v752 = vmul.f32 %v720, 0.2
        %v753 = vmul.f32 %v721, 0.2
        %v754 = vmul.f32 %v722, 0.2
        %v755 = vmul.f32 %v723, 0.2
        %v756 = vmul.f32 %v724, 0.2
        %v757 = vmul.f32 %v725, 0.2
        %v758 = vmul.f32 %v726, 0.2
        %v759 = vmul.f32 %v727, 0.2
        %v760 = vmul.f32 %v728, 0.2
        %v761 = vmul.f32 %v729, 0.2
        %v762 = vmul.f32 %v730, 0.2
        %v763 = vmul.f32 %v731, 0.2
        %v764 = vmul.f32 %v732, 0.2
        %v765 = vmul.f32 %v733, 0.2
        %v766 = vmul.f32 %v734, 0.2
        %v767 = vmul.f32 %v735, 0.2
        %v768 = vmul.f32 %v736, 0.2
        %v769 = vmul.f32 %v737, 0.2
        %v770 = vmul.f32 %v738, 0.2
        %v771 = vmul.f32 %v739, 0.2
        %v772 = vmul.f32 %v740, 0.2
        %v773 = vmul.f32 %v741, 0.2
        %v774 = vmul.f32 %v742, 0.2
        %v775 = vmax.f32 %v711, %v743
        %v776 = vmax.f32 %v712, %v744
        %v777 = vmax.f32 %v713, %v745
        %v778 = vmax.f32 %v714, %v746
        %v779 = vmax.f32 %v715, %v747
        %v780 = vmax.f32 %v716, %v748
        %v781 = vmax.f32 %v717, %v749
        %v782 = vmax.f32 %v718, %v750
        %v783 = vmax.f32 %v719, %v751
        %v784 = vmax.f32 %v720, %v752
        %v785 = vmax.f32 %v721, %v753
        %v786 = vmax.f32 %v722, %v754
        %v787 = vmax.f32 %v723, %v755
        %v788 = vmax.f32 %v724, %v756
        %v789 = vmax.f32 %v725, %v757
        %v790 = vmax.f32 %v726, %v758
        %v791 = vmax.f32 %v727, %v759
        %v792 = vmax.f32 %v728, %v760
        %v793 = vmax.f32 %v729, %v761
        %v794 = vmax.f32 %v730, %v762
        %v795 = vmax.f32 %v731, %v763
        %v796 = vmax.f32 %v732, %v764
        %v797 = vmax.f32 %v733, %v765
        %v798 = vmax.f32 %v734, %v766
        %v799 = vmax.f32 %v735, %v767
        %v800 = vmax.f32 %v736, %v768
        %v801 = vmax.f32 %v737, %v769
        %v802 = vmax.f32 %v738, %v770
        %v803 = vmax.f32 %v739, %v771
        %v804 = vmax.f32 %v740, %v772
        %v805 = vmax.f32 %v741, %v773
        %v806 = vmax.f32 %v742, %v774
        %v807 = vpack.c.bf16 %v775, %v775
        %v808 = vpack.c.bf16 %v776, %v776
        %v809 = vpack.c.bf16 %v777, %v777
        %v810 = vpack.c.bf16 %v778, %v778
        %v811 = vpack.c.bf16 %v779, %v779
        %v812 = vpack.c.bf16 %v780, %v780
        %v813 = vpack.c.bf16 %v781, %v781
        %v814 = vpack.c.bf16 %v782, %v782
        %v815 = vpack.c.bf16 %v783, %v783
        %v816 = vpack.c.bf16 %v784, %v784
        %v817 = vpack.c.bf16 %v785, %v785
        %v818 = vpack.c.bf16 %v786, %v786
        %v819 = vpack.c.bf16 %v787, %v787
        %v820 = vpack.c.bf16 %v788, %v788
        %v821 = vpack.c.bf16 %v789, %v789
        %v822 = vpack.c.bf16 %v790, %v790
        %v823 = vpack.c.bf16 %v791, %v791
        %v824 = vpack.c.bf16 %v792, %v792
        %v825 = vpack.c.bf16 %v793, %v793
        %v826 = vpack.c.bf16 %v794, %v794
        %v827 = vpack.c.bf16 %v795, %v795
        %v828 = vpack.c.bf16 %v796, %v796
        %v829 = vpack.c.bf16 %v797, %v797
        %v830 = vpack.c.bf16 %v798, %v798
        %v831 = vpack.c.bf16 %v799, %v799
        %v832 = vpack.c.bf16 %v800, %v800
        %v833 = vpack.c.bf16 %v801, %v801
        %v834 = vpack.c.bf16 %v802, %v802
        %v835 = vpack.c.bf16 %v803, %v803
        %v836 = vpack.c.bf16 %v804, %v804
        %v837 = vpack.c.bf16 %v805, %v805
        %v838 = vpack.c.bf16 %v806, %v806
        %839 = vst [vmem:[%s257] sm:$0xf] %v807
        %840 = vst [vmem:[%s257 + $0x4] sm:$0xf] %v808
        %841 = vst [vmem:[%s257 + $0x8] sm:$0xf] %v809
        %842 = vst [vmem:[%s257 + $0xc] sm:$0xf] %v810
        %843 = vst [vmem:[%s257 + $0x10] sm:$0xf] %v811
        %844 = vst [vmem:[%s257 + $0x14] sm:$0xf] %v812
        %845 = vst [vmem:[%s257 + $0x18] sm:$0xf] %v813
        %846 = vst [vmem:[%s257 + $0x1c] sm:$0xf] %v814
        %847 = vst [vmem:[%s257 + $0x20] sm:$0xf] %v815
        %848 = vst [vmem:[%s257 + $0x24] sm:$0xf] %v816
        %849 = vst [vmem:[%s257 + $0x28] sm:$0xf] %v817
        %850 = vst [vmem:[%s257 + $0x2c] sm:$0xf] %v818
        %851 = vst [vmem:[%s257 + $0x30] sm:$0xf] %v819
        %852 = vst [vmem:[%s257 + $0x34] sm:$0xf] %v820
        %853 = vst [vmem:[%s257 + $0x38] sm:$0xf] %v821
        %854 = vst [vmem:[%s257 + $0x3c] sm:$0xf] %v822
        %855 = vst [vmem:[%s257 + $0x40] sm:$0xf] %v823
        %856 = vst [vmem:[%s257 + $0x44] sm:$0xf] %v824
        %857 = vst [vmem:[%s257 + $0x48] sm:$0xf] %v825
        %858 = vst [vmem:[%s257 + $0x4c] sm:$0xf] %v826
        %859 = vst [vmem:[%s257 + $0x50] sm:$0xf] %v827
        %860 = vst [vmem:[%s257 + $0x54] sm:$0xf] %v828
        %861 = vst [vmem:[%s257 + $0x58] sm:$0xf] %v829
        %862 = vst [vmem:[%s257 + $0x5c] sm:$0xf] %v830
        %863 = vst [vmem:[%s257 + $0x60] sm:$0xf] %v831
        %864 = vst [vmem:[%s257 + $0x64] sm:$0xf] %v832
        %865 = vst [vmem:[%s257 + $0x68] sm:$0xf] %v833
        %866 = vst [vmem:[%s257 + $0x6c] sm:$0xf] %v834
        %867 = vst [vmem:[%s257 + $0x70] sm:$0xf] %v835
        %868 = vst [vmem:[%s257 + $0x74] sm:$0xf] %v836
        %869 = vst [vmem:[%s257 + $0x78] sm:$0xf] %v837
        %870 = vst [vmem:[%s257 + $0x7c] sm:$0xf] %v838
      $region40: #{netd_forward.5} parent=31 // pred_fallthru
        _
      %s871 = smul.u32 32, %s19
      %p872 = scmp.lt.s32.totalorder %s871, 63
      %s873 = scalar_select %p872, %s871, 63
      %p874 = scmp.lt.s32.totalorder %s20, 0
      %s875 = scalar_select %p874, %s20, 0
      %s876 = sadd.s32 %s875, %s873
      %s877 = smul.addr %s876, 4
      %s878 = scalar_lea.vmem %s3, %s877
      // Predicated region
      $region41: #{netd_forward.5} parent=31 // pred_check
        %p879 = pneg %p135
      $region42: #{netd_forward.5} parent=31 // pred_check_branch
        %881 = sbr.rel (%p879) target = $region44
      $region43: #{netd_forward.5} parent=31 // pred_region
        %s882 = smul.u32 32, %s19
      $region44: #{netd_forward.5} parent=31 // pred_fallthru
        _
    $region32: #{netd_forward.5} parent=5 // pred_fallthru
      _
    %p883 = scmp.le.s32.totalorder 2, %s9
    // Predicated region
    $region45: #{netd_forward.5} parent=5 // pred_check
      %p884 = pneg %p883
    $region46: #{netd_forward.5} parent=5 // pred_check_branch
      %886 = sbr.rel (%p884) target = $region48
    $region47: #{netd_forward.5} parent=5 // pred_region
      %s887 = ssub.s32 %s9, 2
      // Predicated region
      $region49: #{netd_forward.5} parent=47 // pred_check
        %p888 = pneg %p141
      $region50: #{netd_forward.5} parent=47 // pred_check_branch
        %890 = sbr.rel (%p888) target = $region52
      $region51: #{netd_forward.5} parent=47 // pred_region
        %s891 = smul.u32 32, %s22
        %p892 = scmp.lt.s32.totalorder %s891, 63
        %s893 = scalar_select %p892, %s891, 63
        %p894 = scmp.lt.s32.totalorder %s23, 0
        %s895 = scalar_select %p894, %s23, 0
        %s896 = sadd.s32 %s895, %s893
        %s897 = smul.addr %s896, 4
        %s898 = scalar_lea.vmem %s3, %s897
      $region52: #{netd_forward.5} parent=47 // pred_fallthru
        _
    $region48: #{netd_forward.5} parent=5 // pred_fallthru
      _
  $region6: #{netd_forward.5} parent=0 // loop_footer
    %s13 = sadd.s32 1, %s9
  $region7: #{netd_forward.5} parent=0 // loop_footer_branch
    %8 = sbr.rel target = $region3
  $region8: #{netd_forward.5} parent=0 // loop_exit
    _

// kernel: netd_forward.6
$region0: #{netd_forward.6}
  #allocation0 [shape = 'u32[]', space=smem, size = 0x4, offset = 0x4, fixed_abs, tag = 'smem constant byte address 0x4 - core index']
  #allocation1 [shape = 'u32[72,128]{1,0:T(1,128)}', space=vmem, size = 0x9000, scoped, tag = 'internal scratch']
  #allocation2 [shape = 'f32[64,128]{1,0:T(8,128)}', space=vmem, size = 0x8000, scoped, tag = 'scratch operand']
  %s0 = inlined_call_operand.vmem [shape: bf16[128,256], index: 0, kind: input, shape index: {}]
  %s1 = inlined_call_operand.vmem [shape: bf16[256,128], index: 1, kind: input, shape index: {}]
  %s2 = inlined_call_operand.vmem [shape: f32[1,128], index: 2, kind: input, shape index: {}]
  %s3 = inlined_call_operand.vmem [shape: bf16[128,128], index: 3, kind: output, shape index: {}]
  %s4 = sld [smem:[#allocation0]]
  $region53: #{netd_forward.6} parent=0
    _
  %s6 = ssub.s32 1, %s4
  %s7 = scalar_select 0, %s6, %s4
  loop: start=0, step=1, limit=4
  $region2: #{netd_forward.6} parent=0 // loop_pre_header
    _
  $region3: #{netd_forward.6} parent=0 // loop_header
    %s9 = sphi 0, %s13
    %p10 = scmp.ge.s32.totalorder %s9, 4
    %s16 = sphi 0, %s35
    %s17 = sphi 0, %s31
    %s18 = sphi 0, %s27
    %s19 = sphi 0, %s16
    %s20 = sphi 0, %s17
    %s21 = sphi 0, %s18
    %s22 = sphi 0, %s19
    %s23 = sphi 0, %s20
    %s24 = sphi 0, %s21
    %s40 = sphi 0, %s42
    %s43 = sphi 0, %s40
    %s44 = sphi 0, %s43
    %s60 = sphi 0, %s44
    %s68 = sphi 0, %s70
    %s71 = sphi 0, %s68
    %s72 = sphi 0, %s71
    %s88 = sphi 0, %s72
    %s94 = sphi 0, %s96
    %s97 = sphi 0, %s94
    %s98 = sphi 0, %s97
    %s114 = sphi 0, %s98
    %s122 = sphi 0, %s124
    %s125 = sphi 0, %s122
    %s126 = sphi 0, %s125
    %s142 = sphi 0, %s126
  $region4: #{netd_forward.6} parent=0 // loop_header_branch
    %12 = sbr.rel (%p10) target = $region8
  $region5: #{netd_forward.6} parent=0 // loop_body
    %s14 = ssub.s32 %s9, 1
    %s15 = ssub.s32 %s9, 2
    %s25 = sadd.s32 1, %s18
    %p26 = scmp.ge.s32.totalorder %s25, 1
    %s27 = scalar_select %p26, 0, %s25
    %s28 = sadd.s32 1, %s17
    %s29 = scalar_select %p26, %s28, %s17
    %p30 = scmp.ge.s32.totalorder %s29, 1
    %s31 = scalar_select %p30, 0, %s29
    %s32 = sadd.s32 1, %s16
    %s33 = scalar_select %p30, %s32, %s16
    %p34 = scmp.ge.s32.totalorder %s33, 2
    %s35 = scalar_select %p34, 0, %s33
    %s36 = ssub.s32 %s16, %s35
    %s37 = ssub.s32 %s18, %s27
    %s38 = sor.u32 %s36, %s37
    %p39 = scmp.eq.s32.totalorder %s38, 0
    %s41 = sadd.s32 %s40, 1
    %s42 = scalar_select %p39, %s40, %s41
    %p45 = pneg %p39
    %p46 = scmp.eq.s32.totalorder %s9, 1
    %p47 = por %p45, %p46
    %p48 = scmp.ne.s32.totalorder %s40, %s43
    %p49 = scmp.eq.s32.totalorder %s9, 0
    %p50 = por %p48, %p49
    %p51 = scmp.ne.s32.totalorder %s40, %s43
    %p52 = scmp.eq.s32.totalorder %s14, 1
    %p53 = por %p51, %p52
    %p54 = scmp.ne.s32.totalorder %s43, %s44
    %p55 = scmp.eq.s32.totalorder %s14, 0
    %p56 = por %p54, %p55
    %p57 = scmp.ne.s32.totalorder %s43, %s44
    %p58 = scmp.eq.s32.totalorder %s15, 1
    %p59 = por %p57, %p58
    %p61 = scmp.ne.s32.totalorder %s44, %s60
    %p62 = scmp.eq.s32.totalorder %s15, 0
    %p63 = por %p61, %p62
    %s64 = ssub.s32 %s18, %s27
    %s65 = ssub.s32 %s17, %s31
    %s66 = sor.u32 %s64, %s65
    %p67 = scmp.eq.s32.totalorder %s66, 0
    %s69 = sadd.s32 %s68, 1
    %s70 = scalar_select %p67, %s68, %s69
    %p73 = pneg %p67
    %p74 = scmp.eq.s32.totalorder %s9, 1
    %p75 = por %p73, %p74
    %p76 = scmp.ne.s32.totalorder %s68, %s71
    %p77 = scmp.eq.s32.totalorder %s9, 0
    %p78 = por %p76, %p77
    %p79 = scmp.ne.s32.totalorder %s68, %s71
    %p80 = scmp.eq.s32.totalorder %s14, 1
    %p81 = por %p79, %p80
    %p82 = scmp.ne.s32.totalorder %s71, %s72
    %p83 = scmp.eq.s32.totalorder %s14, 0
    %p84 = por %p82, %p83
    %p85 = scmp.ne.s32.totalorder %s71, %s72
    %p86 = scmp.eq.s32.totalorder %s15, 1
    %p87 = por %p85, %p86
    %p89 = scmp.ne.s32.totalorder %s72, %s88
    %p90 = scmp.eq.s32.totalorder %s15, 0
    %p91 = por %p89, %p90
    %s92 = ssub.s32 %s17, %s31
    %p93 = scmp.eq.s32.totalorder %s92, 0
    %s95 = sadd.s32 %s94, 1
    %s96 = scalar_select %p93, %s94, %s95
    %p99 = pneg %p93
    %p100 = scmp.eq.s32.totalorder %s9, 1
    %p101 = por %p99, %p100
    %p102 = scmp.ne.s32.totalorder %s94, %s97
    %p103 = scmp.eq.s32.totalorder %s9, 0
    %p104 = por %p102, %p103
    %p105 = scmp.ne.s32.totalorder %s94, %s97
    %p106 = scmp.eq.s32.totalorder %s14, 1
    %p107 = por %p105, %p106
    %p108 = scmp.ne.s32.totalorder %s97, %s98
    %p109 = scmp.eq.s32.totalorder %s14, 0
    %p110 = por %p108, %p109
    %p111 = scmp.ne.s32.totalorder %s97, %s98
    %p112 = scmp.eq.s32.totalorder %s15, 1
    %p113 = por %p111, %p112
    %p115 = scmp.ne.s32.totalorder %s98, %s114
    %p116 = scmp.eq.s32.totalorder %s15, 0
    %p117 = por %p115, %p116
    %s118 = ssub.s32 %s16, %s35
    %s119 = ssub.s32 %s17, %s31
    %s120 = sor.u32 %s118, %s119
    %p121 = scmp.eq.s32.totalorder %s120, 0
    %s123 = sadd.s32 %s122, 1
    %s124 = scalar_select %p121, %s122, %s123
    %p127 = pneg %p121
    %p128 = scmp.eq.s32.totalorder %s9, 1
    %p129 = por %p127, %p128
    %p130 = scmp.ne.s32.totalorder %s122, %s125
    %p131 = scmp.eq.s32.totalorder %s9, 0
    %p132 = por %p130, %p131
    %p133 = scmp.ne.s32.totalorder %s122, %s125
    %p134 = scmp.eq.s32.totalorder %s14, 1
    %p135 = por %p133, %p134
    %p136 = scmp.ne.s32.totalorder %s125, %s126
    %p137 = scmp.eq.s32.totalorder %s14, 0
    %p138 = por %p136, %p137
    %p139 = scmp.ne.s32.totalorder %s125, %s126
    %p140 = scmp.eq.s32.totalorder %s15, 1
    %p141 = por %p139, %p140
    %p143 = scmp.ne.s32.totalorder %s126, %s142
    %p144 = scmp.eq.s32.totalorder %s15, 0
    %p145 = por %p143, %p144
    %p146 = scmp.le.s32.totalorder 1, %s9
    %p147 = scmp.lt.s32.totalorder %s9, 3
    %p148 = pnand %p146, %p147
    %p149 = pneg %p148
    // Predicated region
    $region9: #{netd_forward.6} parent=5 // pred_check
      _
    $region10: #{netd_forward.6} parent=5 // pred_check_branch
      %151 = sbr.rel (%p148) target = $region12
    $region11: #{netd_forward.6} parent=5 // pred_region
      %s152 = ssub.s32 %s9, 1
      // Predicated region
      $region13: #{netd_forward.6} parent=11 // pred_check
        %p153 = pneg %p84
      $region14: #{netd_forward.6} parent=11 // pred_check_branch
        %155 = sbr.rel (%p153) target = $region16
      $region15: #{netd_forward.6} parent=11 // pred_region
        %s156 = smul.u32 32, %s21
        %p157 = scmp.lt.s32.totalorder %s156, 31
        %s158 = scalar_select %p157, %s156, 31
        %p159 = scmp.lt.s32.totalorder %s20, 0
        %s160 = scalar_select %p159, %s20, 0
        %s161 = sadd.s32 %s160, %s158
        %s162 = smul.addr %s161, 4
        %s163 = scalar_lea.vmem %s1, %s162
        %s164 = smul.u32 32, %s21
      $region16: #{netd_forward.6} parent=11 // pred_fallthru
        _
      // Predicated region
      $region17: #{netd_forward.6} parent=11 // pred_check
        %p165 = pneg %p110
      $region18: #{netd_forward.6} parent=11 // pred_check_branch
        %167 = sbr.rel (%p165) target = $region20
      $region19: #{netd_forward.6} parent=11 // pred_region
        %p168 = scmp.lt.s32.totalorder %s20, 0
        %s169 = scalar_select %p168, %s20, 0
        %s170 = scalar_lea.vmem %s2, %s169
      $region20: #{netd_forward.6} parent=11 // pred_fallthru
        _
    $region12: #{netd_forward.6} parent=5 // pred_fallthru
      _
    %p171 = scmp.lt.s32.totalorder %s9, 2
    // Predicated region
    $region21: #{netd_forward.6} parent=5 // pred_check
      %p172 = pneg %p171
    $region22: #{netd_forward.6} parent=5 // pred_check_branch
      %174 = sbr.rel (%p172) target = $region24
    $region23: #{netd_forward.6} parent=5 // pred_region
      // Predicated region
      $region25: #{netd_forward.6} parent=23 // pred_check
        %p175 = pneg %p50
      $region26: #{netd_forward.6} parent=23 // pred_check_branch
        %177 = sbr.rel (%p175) target = $region28
      $region27: #{netd_forward.6} parent=23 // pred_region
        %s178 = smul.u32 8, %s16
        %s179 = smul.u32 2, %s18
        %p180 = scmp.lt.s32.totalorder %s178, 15
        %s181 = scalar_select %p180, %s178, 15
        %p182 = scmp.lt.s32.totalorder %s179, 1
        %s183 = scalar_select %p182, %s179, 1
        %s184 = smul.addr %s181, 2
        %s185 = sadd.s32 %s183, %s184
        %s186 = smul.addr %s185, 4
        %s187 = scalar_lea.vmem %s0, %s186
        %s188 = smul.u32 8, %s16
        %s189 = smul.u32 2, %s18
      $region28: #{netd_forward.6} parent=23 // pred_fallthru
        _
    $region24: #{netd_forward.6} parent=5 // pred_fallthru
      _
    %p190 = scmp.le.s32.totalorder 1, %s9
    %p191 = scmp.lt.s32.totalorder %s9, 3
    %p192 = pnand %p190, %p191
    %p193 = pneg %p192
    // Predicated region
    $region29: #{netd_forward.6} parent=5 // pred_check
      _
    $region30: #{netd_forward.6} parent=5 // pred_check_branch
      %195 = sbr.rel (%p192) target = $region32
    $region31: #{netd_forward.6} parent=5 // pred_region
      %s196 = ssub.s32 %s9, 1
      %s197 = smul.u32 8, %s19
      %s198 = smul.u32 2, %s21
      %p199 = scmp.lt.s32.totalorder %s197, 15
      %s200 = scalar_select %p199, %s197, 15
      %p201 = scmp.lt.s32.totalorder %s198, 1
      %s202 = scalar_select %p201, %s198, 1
      %s203 = smul.addr %s200, 2
      %s204 = sadd.s32 %s202, %s203
      %s205 = smul.addr %s204, 4
      %s206 = scalar_lea.vmem %s0, %s205
      %p207 = pneg %p56
      %p208 = pneg %p53
      %s209 = smul.u32 32, %s21
      %p210 = scmp.lt.s32.totalorder %s209, 31
      %s211 = scalar_select %p210, %s209, 31
      %p212 = scmp.lt.s32.totalorder %s20, 0
      %s213 = scalar_select %p212, %s20, 0
      %s214 = sadd.s32 %s213, %s211
      %s215 = smul.addr %s214, 4
      %s216 = scalar_lea.vmem %s1, %s215
      %p217 = pneg %p84
      %p218 = pneg %p81
      %p219 = scmp.lt.s32.totalorder %s20, 0
      %s220 = scalar_select %p219, %s20, 0
      %s221 = scalar_lea.vmem %s2, %s220
      %p222 = pneg %p110
      %p223 = pneg %p107
      %p224 = pneg %p138
      %p225 = pneg %p135
      %s226 = smul.u32 8, %s19
      %p227 = scmp.lt.s32.totalorder %s226, 15
      %s228 = scalar_select %p227, %s226, 15
      %p229 = scmp.lt.s32.totalorder %s20, 0
      %s230 = scalar_select %p229, %s20, 0
      %s231 = sadd.s32 %s230, %s228
      %s232 = smul.addr %s231, 4
      %s233 = scalar_lea.vmem %s3, %s232
      %s234 = smul.u32 8, %s19
      %s235 = smul.u32 2, %s21
      %p236 = scmp.lt.s32.totalorder %s234, 15
      %s237 = scalar_select %p236, %s234, 15
      %p238 = scmp.lt.s32.totalorder %s235, 1
      %s239 = scalar_select %p238, %s235, 1
      %s240 = smul.addr %s237, 2
      %s241 = sadd.s32 %s239, %s240
      %s242 = smul.addr %s241, 4
      %s243 = scalar_lea.vmem %s0, %s242
      %s244 = smul.u32 8, %s19
      %s245 = smul.u32 2, %s21
      %s246 = smul.u32 32, %s21
      %p247 = scmp.lt.s32.totalorder %s246, 31
      %s248 = scalar_select %p247, %s246, 31
      %p249 = scmp.lt.s32.totalorder %s20, 0
      %s250 = scalar_select %p249, %s20, 0
      %s251 = sadd.s32 %s250, %s248
      %s252 = smul.addr %s251, 4
      %s253 = scalar_lea.vmem %s1, %s252
      %s254 = smul.u32 32, %s21
      %p255 = scmp.lt.s32.totalorder %s20, 0
      %s256 = scalar_select %p255, %s20, 0
      %s257 = scalar_lea.vmem %s2, %s256
      %s258 = smul.u32 8, %s19
      %p259 = scmp.lt.s32.totalorder %s258, 15
      %s260 = scalar_select %p259, %s258, 15
      %p261 = scmp.lt.s32.totalorder %s20, 0
      %s262 = scalar_select %p261, %s20, 0
      %s263 = sadd.s32 %s262, %s260
      %s264 = smul.addr %s263, 4
      %s265 = scalar_lea.vmem %s3, %s264
      %s266 = smul.u32 8, %s19
      %p267 = scmp.eq.s32.totalorder %s21, 0
      // Predicated region
      $region33: #{netd_forward.6} parent=31 // pred_check
        %p268 = pneg %p267
      $region34: #{netd_forward.6} parent=31 // pred_check_branch
        %270 = sbr.rel (%p268) target = $region36
      $region35: #{netd_forward.6} parent=31 // pred_region
        %271 = vst [vmem:[#allocation2] sm:$0xff] 0.0
        %272 = vst [vmem:[#allocation2 + $0x8] sm:$0xff] 0.0
        %273 = vst [vmem:[#allocation2 + $0x10] sm:$0xff] 0.0
        %274 = vst [vmem:[#allocation2 + $0x18] sm:$0xff] 0.0
        %275 = vst [vmem:[#allocation2 + $0x20] sm:$0xff] 0.0
        %276 = vst [vmem:[#allocation2 + $0x28] sm:$0xff] 0.0
        %277 = vst [vmem:[#allocation2 + $0x30] sm:$0xff] 0.0
        %278 = vst [vmem:[#allocation2 + $0x38] sm:$0xff] 0.0
      $region36: #{netd_forward.6} parent=31 // pred_fallthru
        _
      %v279 = vld [vmem:[#allocation2] sm:$0xff]
      %v280 = vld [vmem:[#allocation2 + $0x8] sm:$0xff]
      %v281 = vld [vmem:[#allocation2 + $0x10] sm:$0xff]
      %v282 = vld [vmem:[#allocation2 + $0x18] sm:$0xff]
      %v283 = vld [vmem:[#allocation2 + $0x20] sm:$0xff]
      %v284 = vld [vmem:[#allocation2 + $0x28] sm:$0xff]
      %v285 = vld [vmem:[#allocation2 + $0x30] sm:$0xff]
      %v286 = vld [vmem:[#allocation2 + $0x38] sm:$0xff]
      %v287 = vld [vmem:[%s243] sm:$0xff]
      %v288 = vld [vmem:[%s243 + $0x8] sm:$0xff]
      %v289 = vld [vmem:[%s243 + $0x10] sm:$0xff]
      %v290 = vld [vmem:[%s243 + $0x18] sm:$0xff]
      %v291 = vld [vmem:[%s243 + $0x20] sm:$0xff]
      %v292 = vld [vmem:[%s243 + $0x28] sm:$0xff]
      %v293 = vld [vmem:[%s243 + $0x30] sm:$0xff]
      %v294 = vld [vmem:[%s243 + $0x38] sm:$0xff]
      %v295 = vld [vmem:[%s253] sm:$0xf]
      %v296 = vld [vmem:[%s253 + $0x4] sm:$0xf]
      %v297 = vld [vmem:[%s253 + $0x8] sm:$0xf]
      %v298 = vld [vmem:[%s253 + $0xc] sm:$0xf]
      %v299 = vld [vmem:[%s253 + $0x10] sm:$0xf]
      %v300 = vld [vmem:[%s253 + $0x14] sm:$0xf]
      %v301 = vld [vmem:[%s253 + $0x18] sm:$0xf]
      %v302 = vld [vmem:[%s253 + $0x1c] sm:$0xf]
      %v303 = vld [vmem:[%s253 + $0x20] sm:$0xf]
      %v304 = vld [vmem:[%s253 + $0x24] sm:$0xf]
      %v305 = vld [vmem:[%s253 + $0x28] sm:$0xf]
      %v306 = vld [vmem:[%s253 + $0x2c] sm:$0xf]
      %v307 = vld [vmem:[%s253 + $0x30] sm:$0xf]
      %v308 = vld [vmem:[%s253 + $0x34] sm:$0xf]
      %v309 = vld [vmem:[%s253 + $0x38] sm:$0xf]
      %v310 = vld [vmem:[%s253 + $0x3c] sm:$0xf]
      %v311 = vld [vmem:[%s253 + $0x40] sm:$0xf]
      %v312 = vld [vmem:[%s253 + $0x44] sm:$0xf]
      %v313 = vld [vmem:[%s253 + $0x48] sm:$0xf]
      %v314 = vld [vmem:[%s253 + $0x4c] sm:$0xf]
      %v315 = vld [vmem:[%s253 + $0x50] sm:$0xf]
      %v316 = vld [vmem:[%s253 + $0x54] sm:$0xf]
      %v317 = vld [vmem:[%s253 + $0x58] sm:$0xf]
      %v318 = vld [vmem:[%s253 + $0x5c] sm:$0xf]
      %v319 = vld [vmem:[%s253 + $0x60] sm:$0xf]
      %v320 = vld [vmem:[%s253 + $0x64] sm:$0xf]
      %v321 = vld [vmem:[%s253 + $0x68] sm:$0xf]
      %v322 = vld [vmem:[%s253 + $0x6c] sm:$0xf]
      %v323 = vld [vmem:[%s253 + $0x70] sm:$0xf]
      %v324 = vld [vmem:[%s253 + $0x74] sm:$0xf]
      %v325 = vld [vmem:[%s253 + $0x78] sm:$0xf]
      %v326 = vld [vmem:[%s253 + $0x7c] sm:$0xf]
      %v335 = vunpack.c.l.b16 %v287
      %v336 = vunpack.c.h.b16 %v287
      %v337 = vunpack.c.l.b16 %v288
      %v338 = vunpack.c.h.b16 %v288
      %v339 = vunpack.c.l.b16 %v289
      %v340 = vunpack.c.h.b16 %v289
      %v341 = vunpack.c.l.b16 %v290
      %v342 = vunpack.c.h.b16 %v290
      %v343 = vunpack.c.l.b16 %v291
      %v344 = vunpack.c.h.b16 %v291
      %v345 = vunpack.c.l.b16 %v292
      %v346 = vunpack.c.h.b16 %v292
      %v347 = vunpack.c.l.b16 %v293
      %v348 = vunpack.c.h.b16 %v293
      %v349 = vunpack.c.l.b16 %v294
      %v350 = vunpack.c.h.b16 %v294
      %v351 = vpack.c.b16 %v337, %v335
      %v352 = vpack.c.b16 %v338, %v336
      %v353 = vpack.c.b16 %v341, %v339
      %v354 = vpack.c.b16 %v342, %v340
      %v355 = vpack.c.b16 %v345, %v343
      %v356 = vpack.c.b16 %v346, %v344
      %v357 = vpack.c.b16 %v349, %v347
      %v358 = vpack.c.b16 %v350, %v348
      %v399 = vunpack.c.l.b16 %v295
      %v400 = vunpack.c.l.b16 %v296
      %v401 = vunpack.c.l.b16 %v297
      %v402 = vunpack.c.l.b16 %v298
      %v403 = vunpack.c.l.b16 %v299
      %v404 = vunpack.c.l.b16 %v300
      %v405 = vunpack.c.l.b16 %v301
      %v406 = vunpack.c.l.b16 %v302
      %v407 = vunpack.c.l.b16 %v303
      %v408 = vunpack.c.l.b16 %v304
      %v409 = vunpack.c.l.b16 %v305
      %v410 = vunpack.c.l.b16 %v306
      %v411 = vunpack.c.l.b16 %v307
      %v412 = vunpack.c.l.b16 %v308
      %v413 = vunpack.c.l.b16 %v309
      %v414 = vunpack.c.l.b16 %v310
      %v415 = vunpack.c.l.b16 %v311
      %v416 = vunpack.c.l.b16 %v312
      %v417 = vunpack.c.l.b16 %v313
      %v418 = vunpack.c.l.b16 %v314
      %v419 = vunpack.c.l.b16 %v315
      %v420 = vunpack.c.l.b16 %v316
      %v421 = vunpack.c.l.b16 %v317
      %v422 = vunpack.c.l.b16 %v318
      %v423 = vunpack.c.l.b16 %v319
      %v424 = vunpack.c.l.b16 %v320
      %v425 = vunpack.c.l.b16 %v321
      %v426 = vunpack.c.l.b16 %v322
      %v427 = vunpack.c.l.b16 %v323
      %v428 = vunpack.c.l.b16 %v324
      %v429 = vunpack.c.l.b16 %v325
      %v430 = vunpack.c.l.b16 %v326
      %v431 = vpack.c.b16 %v400, %v399
      %v432 = vpack.c.b16 %v402, %v401
      %v433 = vpack.c.b16 %v404, %v403
      %v434 = vpack.c.b16 %v406, %v405
      %v435 = vpack.c.b16 %v408, %v407
      %v436 = vpack.c.b16 %v410, %v409
      %v437 = vpack.c.b16 %v412, %v411
      %v438 = vpack.c.b16 %v414, %v413
      %v439 = vpack.c.b16 %v416, %v415
      %v440 = vpack.c.b16 %v418, %v417
      %v441 = vpack.c.b16 %v420, %v419
      %v442 = vpack.c.b16 %v422, %v421
      %v443 = vpack.c.b16 %v424, %v423
      %v444 = vpack.c.b16 %v426, %v425
      %v445 = vpack.c.b16 %v428, %v427
      %v446 = vpack.c.b16 %v430, %v429
      %463 = vmatpush.bf16.msra.mxu0 %v438
      %464 = vmatpush.bf16.msra.mxu0 %v437
      %465 = vmatpush.bf16.msra.mxu0 %v436
      %466 = vmatpush.bf16.msra.mxu0 %v435
      %467 = vmatpush.bf16.msra.mxu0 %v434
      %468 = vmatpush.bf16.msra.mxu0 %v433
      %469 = vmatpush.bf16.msra.mxu0 %v432
      %470 = vmatpush.bf16.msra.mxu0 %v431
      %471 = vmatmul.bf16.gmra.mxu0 %v351
      %v472 = vpop.f32.mrf.mxu0
      %v473 = vadd.f32 0.0, %v472
      %v474 = vpop.f32.mrf.mxu0
      %v475 = vadd.f32 0.0, %v474
      %476 = vmatmul.bf16.gmra.mxu0 %v353
      %v477 = vpop.f32.mrf.mxu0
      %v478 = vadd.f32 0.0, %v477
      %v479 = vpop.f32.mrf.mxu0
      %v480 = vadd.f32 0.0, %v479
      %481 = vmatmul.bf16.gmra.mxu0 %v355
      %v482 = vpop.f32.mrf.mxu0
      %v483 = vadd.f32 0.0, %v482
      %v484 = vpop.f32.mrf.mxu0
      %v485 = vadd.f32 0.0, %v484
      %486 = vmatmul.bf16.gmra.mxu0 %v357
      %v487 = vpop.f32.mrf.mxu0
      %v488 = vadd.f32 0.0, %v487
      %v489 = vpop.f32.mrf.mxu0
      %v490 = vadd.f32 0.0, %v489
      %491 = vdwg.mxu0
      %492 = vmatpush.bf16.msra.mxu0 %v446
      %493 = vmatpush.bf16.msra.mxu0 %v445
      %494 = vmatpush.bf16.msra.mxu0 %v444
      %495 = vmatpush.bf16.msra.mxu0 %v443
      %496 = vmatpush.bf16.msra.mxu0 %v442
      %497 = vmatpush.bf16.msra.mxu0 %v441
      %498 = vmatpush.bf16.msra.mxu0 %v440
      %499 = vmatpush.bf16.msra.mxu0 %v439
      %500 = vmatmul.bf16.gmra.mxu0 %v352
      %v501 = vpop.f32.mrf.mxu0
      %v502 = vadd.f32 %v473, %v501
      %v503 = vpop.f32.mrf.mxu0
      %v504 = vadd.f32 %v475, %v503
      %505 = vmatmul.bf16.gmra.mxu0 %v354
      %v506 = vpop.f32.mrf.mxu0
      %v507 = vadd.f32 %v478, %v506
      %v508 = vpop.f32.mrf.mxu0
      %v509 = vadd.f32 %v480, %v508
      %510 = vmatmul.bf16.gmra.mxu0 %v356
      %v511 = vpop.f32.mrf.mxu0
      %v512 = vadd.f32 %v483, %v511
      %v513 = vpop.f32.mrf.mxu0
      %v514 = vadd.f32 %v485, %v513
      %515 = vmatmul.bf16.gmra.mxu0 %v358
      %v516 = vpop.f32.mrf.mxu0
      %v517 = vadd.f32 %v488, %v516
      %v518 = vpop.f32.mrf.mxu0
      %v519 = vadd.f32 %v490, %v518
      %520 = vdwg.mxu0
      %v521 = vadd.f32 %v279, %v502
      %v522 = vadd.f32 %v280, %v504
      %v523 = vadd.f32 %v281, %v507
      %v524 = vadd.f32 %v282, %v509
      %v525 = vadd.f32 %v283, %v512
      %v526 = vadd.f32 %v284, %v514
      %v527 = vadd.f32 %v285, %v517
      %v528 = vadd.f32 %v286, %v519
      %529 = vst [vmem:[#allocation2] sm:$0xff] %v521
      %530 = vst [vmem:[#allocation2 + $0x8] sm:$0xff] %v522
      %531 = vst [vmem:[#allocation2 + $0x10] sm:$0xff] %v523
      %532 = vst [vmem:[#allocation2 + $0x18] sm:$0xff] %v524
      %533 = vst [vmem:[#allocation2 + $0x20] sm:$0xff] %v525
      %534 = vst [vmem:[#allocation2 + $0x28] sm:$0xff] %v526
      %535 = vst [vmem:[#allocation2 + $0x30] sm:$0xff] %v527
      %536 = vst [vmem:[#allocation2 + $0x38] sm:$0xff] %v528
      // Predicated region
      $region37: #{netd_forward.6} parent=31 // pred_check
        %p537 = pneg %p267
      $region38: #{netd_forward.6} parent=31 // pred_check_branch
        %539 = sbr.rel (%p537) target = $region40
      $region39: #{netd_forward.6} parent=31 // pred_region
        %v540 = vld [vmem:[#allocation2] sm:$0xff]
        %v541 = vld [vmem:[#allocation2 + $0x8] sm:$0xff]
        %v542 = vld [vmem:[#allocation2 + $0x10] sm:$0xff]
        %v543 = vld [vmem:[#allocation2 + $0x18] sm:$0xff]
        %v544 = vld [vmem:[#allocation2 + $0x20] sm:$0xff]
        %v545 = vld [vmem:[#allocation2 + $0x28] sm:$0xff]
        %v546 = vld [vmem:[#allocation2 + $0x30] sm:$0xff]
        %v547 = vld [vmem:[#allocation2 + $0x38] sm:$0xff]
        %v548 = vld [vmem:[%s257] sm:$0x1]
        %v550 = vperm.slane %v548, 0
        %v552 = vadd.f32 %v540, %v550
        %v553 = vadd.f32 %v541, %v550
        %v554 = vadd.f32 %v542, %v550
        %v555 = vadd.f32 %v543, %v550
        %v556 = vadd.f32 %v544, %v550
        %v557 = vadd.f32 %v545, %v550
        %v558 = vadd.f32 %v546, %v550
        %v559 = vadd.f32 %v547, %v550
        %v560 = vmul.f32 %v552, 0.2
        %v561 = vmul.f32 %v553, 0.2
        %v562 = vmul.f32 %v554, 0.2
        %v563 = vmul.f32 %v555, 0.2
        %v564 = vmul.f32 %v556, 0.2
        %v565 = vmul.f32 %v557, 0.2
        %v566 = vmul.f32 %v558, 0.2
        %v567 = vmul.f32 %v559, 0.2
        %v568 = vmax.f32 %v552, %v560
        %v569 = vmax.f32 %v553, %v561
        %v570 = vmax.f32 %v554, %v562
        %v571 = vmax.f32 %v555, %v563
        %v572 = vmax.f32 %v556, %v564
        %v573 = vmax.f32 %v557, %v565
        %v574 = vmax.f32 %v558, %v566
        %v575 = vmax.f32 %v559, %v567
        %v576 = vpack.c.bf16 %v568, %v568
        %v577 = vpack.c.bf16 %v569, %v569
        %v578 = vpack.c.bf16 %v570, %v570
        %v579 = vpack.c.bf16 %v571, %v571
        %v580 = vpack.c.bf16 %v572, %v572
        %v581 = vpack.c.bf16 %v573, %v573
        %v582 = vpack.c.bf16 %v574, %v574
        %v583 = vpack.c.bf16 %v575, %v575
        %584 = vst [vmem:[%s265] sm:$0xf] %v576
        %585 = vst [vmem:[%s265 + $0x4] sm:$0xf] %v577
        %586 = vst [vmem:[%s265 + $0x8] sm:$0xf] %v578
        %587 = vst [vmem:[%s265 + $0xc] sm:$0xf] %v579
        %588 = vst [vmem:[%s265 + $0x10] sm:$0xf] %v580
        %589 = vst [vmem:[%s265 + $0x14] sm:$0xf] %v581
        %590 = vst [vmem:[%s265 + $0x18] sm:$0xf] %v582
        %591 = vst [vmem:[%s265 + $0x1c] sm:$0xf] %v583
      $region40: #{netd_forward.6} parent=31 // pred_fallthru
        _
      %s592 = smul.u32 8, %s19
      %p593 = scmp.lt.s32.totalorder %s592, 15
      %s594 = scalar_select %p593, %s592, 15
      %p595 = scmp.lt.s32.totalorder %s20, 0
      %s596 = scalar_select %p595, %s20, 0
      %s597 = sadd.s32 %s596, %s594
      %s598 = smul.addr %s597, 4
      %s599 = scalar_lea.vmem %s3, %s598
      // Predicated region
      $region41: #{netd_forward.6} parent=31 // pred_check
        %p600 = pneg %p135
      $region42: #{netd_forward.6} parent=31 // pred_check_branch
        %602 = sbr.rel (%p600) target = $region44
      $region43: #{netd_forward.6} parent=31 // pred_region
        %s603 = smul.u32 8, %s19
      $region44: #{netd_forward.6} parent=31 // pred_fallthru
        _
    $region32: #{netd_forward.6} parent=5 // pred_fallthru
      _
    %p604 = scmp.le.s32.totalorder 2, %s9
    // Predicated region
    $region45: #{netd_forward.6} parent=5 // pred_check
      %p605 = pneg %p604
    $region46: #{netd_forward.6} parent=5 // pred_check_branch
      %607 = sbr.rel (%p605) target = $region48
    $region47: #{netd_forward.6} parent=5 // pred_region
      %s608 = ssub.s32 %s9, 2
      // Predicated region
      $region49: #{netd_forward.6} parent=47 // pred_check
        %p609 = pneg %p141
      $region50: #{netd_forward.6} parent=47 // pred_check_branch
        %611 = sbr.rel (%p609) target = $region52
      $region51: #{netd_forward.6} parent=47 // pred_region
        %s612 = smul.u32 8, %s22
        %p613 = scmp.lt.s32.totalorder %s612, 15
        %s614 = scalar_select %p613, %s612, 15
        %p615 = scmp.lt.s32.totalorder %s23, 0
        %s616 = scalar_select %p615, %s23, 0
        %s617 = sadd.s32 %s616, %s614
        %s618 = smul.addr %s617, 4
        %s619 = scalar_lea.vmem %s3, %s618
      $region52: #{netd_forward.6} parent=47 // pred_fallthru
        _
    $region48: #{netd_forward.6} parent=5 // pred_fallthru
      _
  $region6: #{netd_forward.6} parent=0 // loop_footer
    %s13 = sadd.s32 1, %s9
  $region7: #{netd_forward.6} parent=0 // loop_footer_branch
    %8 = sbr.rel target = $region3
  $region8: #{netd_forward.6} parent=0 // loop_exit
    _

// kernel: netd_forward.7
$region0: #{netd_forward.7}
  #allocation0 [shape = 'u32[]', space=smem, size = 0x4, offset = 0x4, fixed_abs, tag = 'smem constant byte address 0x4 - core index']
  #allocation1 [shape = 'u32[72,128]{1,0:T(1,128)}', space=vmem, size = 0x9000, scoped, tag = 'internal scratch']
  %s0 = inlined_call_operand.vmem [shape: bf16[32,512], index: 0, kind: input, shape index: {}]
  %s1 = inlined_call_operand.vmem [shape: bf16[512,128], index: 1, kind: input, shape index: {}]
  %s2 = inlined_call_operand.vmem [shape: f32[1,128], index: 2, kind: input, shape index: {}]
  %s3 = inlined_call_operand.vmem [shape: f32[32,128], index: 3, kind: input, shape index: {}]
  %s4 = inlined_call_operand.vmem [shape: f32[2,1], index: 4, kind: output, shape index: {}]
  %s5 = sld [smem:[#allocation0]]
  $region26: #{netd_forward.7} parent=0
    _
  %s7 = ssub.s32 1, %s5
  %s8 = scalar_select 0, %s7, %s5
  // Predicated region
  $region2: #{netd_forward.7} parent=0 // pred_check
    _
  $region3: #{netd_forward.7} parent=0 // pred_check_branch
    %10 = sbr.rel (0) target = $region5
  $region4: #{netd_forward.7} parent=0 // pred_region
    _
  $region5: #{netd_forward.7} parent=0 // pred_fallthru
    _
  // Predicated region
  $region6: #{netd_forward.7} parent=0 // pred_check
    _
  $region7: #{netd_forward.7} parent=0 // pred_check_branch
    %12 = sbr.rel (0) target = $region9
  $region8: #{netd_forward.7} parent=0 // pred_region
    _
  $region9: #{netd_forward.7} parent=0 // pred_fallthru
    _
  // Predicated region
  $region10: #{netd_forward.7} parent=0 // pred_check
    _
  $region11: #{netd_forward.7} parent=0 // pred_check_branch
    %14 = sbr.rel (0) target = $region13
  $region12: #{netd_forward.7} parent=0 // pred_region
    _
  $region13: #{netd_forward.7} parent=0 // pred_fallthru
    _
  // Predicated region
  $region14: #{netd_forward.7} parent=0 // pred_check
    _
  $region15: #{netd_forward.7} parent=0 // pred_check_branch
    %16 = sbr.rel (0) target = $region17
  $region16: #{netd_forward.7} parent=0 // pred_region
    _
  $region17: #{netd_forward.7} parent=0 // pred_fallthru
    _
  %v17 = vld [vmem:[%s0] sm:$0xff]
  %v18 = vld [vmem:[%s0 + $0x8] sm:$0xff]
  %v19 = vld [vmem:[%s0 + $0x10] sm:$0xff]
  %v20 = vld [vmem:[%s0 + $0x18] sm:$0xff]
  %v21 = vld [vmem:[%s0 + $0x20] sm:$0xff]
  %v22 = vld [vmem:[%s0 + $0x28] sm:$0xff]
  %v23 = vld [vmem:[%s0 + $0x30] sm:$0xff]
  %v24 = vld [vmem:[%s0 + $0x38] sm:$0xff]
  %v25 = vld [vmem:[%s1] sm:$0xf]
  %v26 = vld [vmem:[%s1 + $0x4] sm:$0xf]
  %v27 = vld [vmem:[%s1 + $0x8] sm:$0xf]
  %v28 = vld [vmem:[%s1 + $0xc] sm:$0xf]
  %v29 = vld [vmem:[%s1 + $0x10] sm:$0xf]
  %v30 = vld [vmem:[%s1 + $0x14] sm:$0xf]
  %v31 = vld [vmem:[%s1 + $0x18] sm:$0xf]
  %v32 = vld [vmem:[%s1 + $0x1c] sm:$0xf]
  %v33 = vld [vmem:[%s1 + $0x20] sm:$0xf]
  %v34 = vld [vmem:[%s1 + $0x24] sm:$0xf]
  %v35 = vld [vmem:[%s1 + $0x28] sm:$0xf]
  %v36 = vld [vmem:[%s1 + $0x2c] sm:$0xf]
  %v37 = vld [vmem:[%s1 + $0x30] sm:$0xf]
  %v38 = vld [vmem:[%s1 + $0x34] sm:$0xf]
  %v39 = vld [vmem:[%s1 + $0x38] sm:$0xf]
  %v40 = vld [vmem:[%s1 + $0x3c] sm:$0xf]
  %v41 = vld [vmem:[%s1 + $0x40] sm:$0xf]
  %v42 = vld [vmem:[%s1 + $0x44] sm:$0xf]
  %v43 = vld [vmem:[%s1 + $0x48] sm:$0xf]
  %v44 = vld [vmem:[%s1 + $0x4c] sm:$0xf]
  %v45 = vld [vmem:[%s1 + $0x50] sm:$0xf]
  %v46 = vld [vmem:[%s1 + $0x54] sm:$0xf]
  %v47 = vld [vmem:[%s1 + $0x58] sm:$0xf]
  %v48 = vld [vmem:[%s1 + $0x5c] sm:$0xf]
  %v49 = vld [vmem:[%s1 + $0x60] sm:$0xf]
  %v50 = vld [vmem:[%s1 + $0x64] sm:$0xf]
  %v51 = vld [vmem:[%s1 + $0x68] sm:$0xf]
  %v52 = vld [vmem:[%s1 + $0x6c] sm:$0xf]
  %v53 = vld [vmem:[%s1 + $0x70] sm:$0xf]
  %v54 = vld [vmem:[%s1 + $0x74] sm:$0xf]
  %v55 = vld [vmem:[%s1 + $0x78] sm:$0xf]
  %v56 = vld [vmem:[%s1 + $0x7c] sm:$0xf]
  %v57 = vld [vmem:[%s1 + $0x80] sm:$0xf]
  %v58 = vld [vmem:[%s1 + $0x84] sm:$0xf]
  %v59 = vld [vmem:[%s1 + $0x88] sm:$0xf]
  %v60 = vld [vmem:[%s1 + $0x8c] sm:$0xf]
  %v61 = vld [vmem:[%s1 + $0x90] sm:$0xf]
  %v62 = vld [vmem:[%s1 + $0x94] sm:$0xf]
  %v63 = vld [vmem:[%s1 + $0x98] sm:$0xf]
  %v64 = vld [vmem:[%s1 + $0x9c] sm:$0xf]
  %v65 = vld [vmem:[%s1 + $0xa0] sm:$0xf]
  %v66 = vld [vmem:[%s1 + $0xa4] sm:$0xf]
  %v67 = vld [vmem:[%s1 + $0xa8] sm:$0xf]
  %v68 = vld [vmem:[%s1 + $0xac] sm:$0xf]
  %v69 = vld [vmem:[%s1 + $0xb0] sm:$0xf]
  %v70 = vld [vmem:[%s1 + $0xb4] sm:$0xf]
  %v71 = vld [vmem:[%s1 + $0xb8] sm:$0xf]
  %v72 = vld [vmem:[%s1 + $0xbc] sm:$0xf]
  %v73 = vld [vmem:[%s1 + $0xc0] sm:$0xf]
  %v74 = vld [vmem:[%s1 + $0xc4] sm:$0xf]
  %v75 = vld [vmem:[%s1 + $0xc8] sm:$0xf]
  %v76 = vld [vmem:[%s1 + $0xcc] sm:$0xf]
  %v77 = vld [vmem:[%s1 + $0xd0] sm:$0xf]
  %v78 = vld [vmem:[%s1 + $0xd4] sm:$0xf]
  %v79 = vld [vmem:[%s1 + $0xd8] sm:$0xf]
  %v80 = vld [vmem:[%s1 + $0xdc] sm:$0xf]
  %v81 = vld [vmem:[%s1 + $0xe0] sm:$0xf]
  %v82 = vld [vmem:[%s1 + $0xe4] sm:$0xf]
  %v83 = vld [vmem:[%s1 + $0xe8] sm:$0xf]
  %v84 = vld [vmem:[%s1 + $0xec] sm:$0xf]
  %v85 = vld [vmem:[%s1 + $0xf0] sm:$0xf]
  %v86 = vld [vmem:[%s1 + $0xf4] sm:$0xf]
  %v87 = vld [vmem:[%s1 + $0xf8] sm:$0xf]
  %v88 = vld [vmem:[%s1 + $0xfc] sm:$0xf]
  %v89 = vld [vmem:[%s2] sm:$0x1]
  %v91 = vperm.slane %v89, 0
  %v101 = vunpack.c.l.b16 %v17
  %v102 = vunpack.c.h.b16 %v17
  %v103 = vunpack.c.l.b16 %v18
  %v104 = vunpack.c.h.b16 %v18
  %v105 = vunpack.c.l.b16 %v19
  %v106 = vunpack.c.h.b16 %v19
  %v107 = vunpack.c.l.b16 %v20
  %v108 = vunpack.c.h.b16 %v20
  %v109 = vunpack.c.l.b16 %v21
  %v110 = vunpack.c.h.b16 %v21
  %v111 = vunpack.c.l.b16 %v22
  %v112 = vunpack.c.h.b16 %v22
  %v113 = vunpack.c.l.b16 %v23
  %v114 = vunpack.c.h.b16 %v23
  %v115 = vunpack.c.l.b16 %v24
  %v116 = vunpack.c.h.b16 %v24
  %v117 = vpack.c.b16 %v105, %v101
  %v118 = vpack.c.b16 %v106, %v102
  %v119 = vpack.c.b16 %v107, %v103
  %v120 = vpack.c.b16 %v108, %v104
  %v121 = vpack.c.b16 %v113, %v109
  %v122 = vpack.c.b16 %v114, %v110
  %v123 = vpack.c.b16 %v115, %v111
  %v124 = vpack.c.b16 %v116, %v112
  %v197 = vunpack.c.l.b16 %v25
  %v198 = vunpack.c.l.b16 %v26
  %v199 = vunpack.c.l.b16 %v27
  %v200 = vunpack.c.l.b16 %v28
  %v201 = vunpack.c.l.b16 %v29
  %v202 = vunpack.c.l.b16 %v30
  %v203 = vunpack.c.l.b16 %v31
  %v204 = vunpack.c.l.b16 %v32
  %v205 = vunpack.c.l.b16 %v33
  %v206 = vunpack.c.l.b16 %v34
  %v207 = vunpack.c.l.b16 %v35
  %v208 = vunpack.c.l.b16 %v36
  %v209 = vunpack.c.l.b16 %v37
  %v210 = vunpack.c.l.b16 %v38
  %v211 = vunpack.c.l.b16 %v39
  %v212 = vunpack.c.l.b16 %v40
  %v213 = vunpack.c.l.b16 %v41
  %v214 = vunpack.c.l.b16 %v42
  %v215 = vunpack.c.l.b16 %v43
  %v216 = vunpack.c.l.b16 %v44
  %v217 = vunpack.c.l.b16 %v45
  %v218 = vunpack.c.l.b16 %v46
  %v219 = vunpack.c.l.b16 %v47
  %v220 = vunpack.c.l.b16 %v48
  %v221 = vunpack.c.l.b16 %v49
  %v222 = vunpack.c.l.b16 %v50
  %v223 = vunpack.c.l.b16 %v51
  %v224 = vunpack.c.l.b16 %v52
  %v225 = vunpack.c.l.b16 %v53
  %v226 = vunpack.c.l.b16 %v54
  %v227 = vunpack.c.l.b16 %v55
  %v228 = vunpack.c.l.b16 %v56
  %v229 = vunpack.c.l.b16 %v57
  %v230 = vunpack.c.l.b16 %v58
  %v231 = vunpack.c.l.b16 %v59
  %v232 = vunpack.c.l.b16 %v60
  %v233 = vunpack.c.l.b16 %v61
  %v234 = vunpack.c.l.b16 %v62
  %v235 = vunpack.c.l.b16 %v63
  %v236 = vunpack.c.l.b16 %v64
  %v237 = vunpack.c.l.b16 %v65
  %v238 = vunpack.c.l.b16 %v66
  %v239 = vunpack.c.l.b16 %v67
  %v240 = vunpack.c.l.b16 %v68
  %v241 = vunpack.c.l.b16 %v69
  %v242 = vunpack.c.l.b16 %v70
  %v243 = vunpack.c.l.b16 %v71
  %v244 = vunpack.c.l.b16 %v72
  %v245 = vunpack.c.l.b16 %v73
  %v246 = vunpack.c.l.b16 %v74
  %v247 = vunpack.c.l.b16 %v75
  %v248 = vunpack.c.l.b16 %v76
  %v249 = vunpack.c.l.b16 %v77
  %v250 = vunpack.c.l.b16 %v78
  %v251 = vunpack.c.l.b16 %v79
  %v252 = vunpack.c.l.b16 %v80
  %v253 = vunpack.c.l.b16 %v81
  %v254 = vunpack.c.l.b16 %v82
  %v255 = vunpack.c.l.b16 %v83
  %v256 = vunpack.c.l.b16 %v84
  %v257 = vunpack.c.l.b16 %v85
  %v258 = vunpack.c.l.b16 %v86
  %v259 = vunpack.c.l.b16 %v87
  %v260 = vunpack.c.l.b16 %v88
  %v261 = vpack.c.b16 %v198, %v197
  %v262 = vpack.c.b16 %v200, %v199
  %v263 = vpack.c.b16 %v202, %v201
  %v264 = vpack.c.b16 %v204, %v203
  %v265 = vpack.c.b16 %v206, %v205
  %v266 = vpack.c.b16 %v208, %v207
  %v267 = vpack.c.b16 %v210, %v209
  %v268 = vpack.c.b16 %v212, %v211
  %v269 = vpack.c.b16 %v214, %v213
  %v270 = vpack.c.b16 %v216, %v215
  %v271 = vpack.c.b16 %v218, %v217
  %v272 = vpack.c.b16 %v220, %v219
  %v273 = vpack.c.b16 %v222, %v221
  %v274 = vpack.c.b16 %v224, %v223
  %v275 = vpack.c.b16 %v226, %v225
  %v276 = vpack.c.b16 %v228, %v227
  %v277 = vpack.c.b16 %v230, %v229
  %v278 = vpack.c.b16 %v232, %v231
  %v279 = vpack.c.b16 %v234, %v233
  %v280 = vpack.c.b16 %v236, %v235
  %v281 = vpack.c.b16 %v238, %v237
  %v282 = vpack.c.b16 %v240, %v239
  %v283 = vpack.c.b16 %v242, %v241
  %v284 = vpack.c.b16 %v244, %v243
  %v285 = vpack.c.b16 %v246, %v245
  %v286 = vpack.c.b16 %v248, %v247
  %v287 = vpack.c.b16 %v250, %v249
  %v288 = vpack.c.b16 %v252, %v251
  %v289 = vpack.c.b16 %v254, %v253
  %v290 = vpack.c.b16 %v256, %v255
  %v291 = vpack.c.b16 %v258, %v257
  %v292 = vpack.c.b16 %v260, %v259
  %325 = vmatpush.bf16.msra.mxu0 %v268
  %326 = vmatpush.bf16.msra.mxu0 %v267
  %327 = vmatpush.bf16.msra.mxu0 %v266
  %328 = vmatpush.bf16.msra.mxu0 %v265
  %329 = vmatpush.bf16.msra.mxu0 %v264
  %330 = vmatpush.bf16.msra.mxu0 %v263
  %331 = vmatpush.bf16.msra.mxu0 %v262
  %332 = vmatpush.bf16.msra.mxu0 %v261
  %333 = vmatmul.bf16.gmra.mxu0 %v117
  %v334 = vpop.f32.mrf.mxu0
  %v335 = vadd.f32 %v91, %v334
  %v336 = vpop.f32.mrf.mxu0
  %v337 = vadd.f32 %v91, %v336
  %338 = vmatmul.bf16.gmra.mxu0 %v121
  %v339 = vpop.f32.mrf.mxu0
  %v340 = vadd.f32 %v91, %v339
  %v341 = vpop.f32.mrf.mxu0
  %v342 = vadd.f32 %v91, %v341
  %343 = vdwg.mxu0
  %344 = vmatpush.bf16.msra.mxu0 %v276
  %345 = vmatpush.bf16.msra.mxu0 %v275
  %346 = vmatpush.bf16.msra.mxu0 %v274
  %347 = vmatpush.bf16.msra.mxu0 %v273
  %348 = vmatpush.bf16.msra.mxu0 %v272
  %349 = vmatpush.bf16.msra.mxu0 %v271
  %350 = vmatpush.bf16.msra.mxu0 %v270
  %351 = vmatpush.bf16.msra.mxu0 %v269
  %352 = vmatmul.bf16.gmra.mxu0 %v118
  %v353 = vpop.f32.mrf.mxu0
  %v354 = vadd.f32 %v335, %v353
  %v355 = vpop.f32.mrf.mxu0
  %v356 = vadd.f32 %v337, %v355
  %357 = vmatmul.bf16.gmra.mxu0 %v122
  %v358 = vpop.f32.mrf.mxu0
  %v359 = vadd.f32 %v340, %v358
  %v360 = vpop.f32.mrf.mxu0
  %v361 = vadd.f32 %v342, %v360
  %362 = vdwg.mxu0
  %363 = vmatpush.bf16.msra.mxu0 %v284
  %364 = vmatpush.bf16.msra.mxu0 %v283
  %365 = vmatpush.bf16.msra.mxu0 %v282
  %366 = vmatpush.bf16.msra.mxu0 %v281
  %367 = vmatpush.bf16.msra.mxu0 %v280
  %368 = vmatpush.bf16.msra.mxu0 %v279
  %369 = vmatpush.bf16.msra.mxu0 %v278
  %370 = vmatpush.bf16.msra.mxu0 %v277
  %371 = vmatmul.bf16.gmra.mxu0 %v119
  %v372 = vpop.f32.mrf.mxu0
  %v373 = vadd.f32 %v354, %v372
  %v374 = vpop.f32.mrf.mxu0
  %v375 = vadd.f32 %v356, %v374
  %376 = vmatmul.bf16.gmra.mxu0 %v123
  %v377 = vpop.f32.mrf.mxu0
  %v378 = vadd.f32 %v359, %v377
  %v379 = vpop.f32.mrf.mxu0
  %v380 = vadd.f32 %v361, %v379
  %381 = vdwg.mxu0
  %382 = vmatpush.bf16.msra.mxu0 %v292
  %383 = vmatpush.bf16.msra.mxu0 %v291
  %384 = vmatpush.bf16.msra.mxu0 %v290
  %385 = vmatpush.bf16.msra.mxu0 %v289
  %386 = vmatpush.bf16.msra.mxu0 %v288
  %387 = vmatpush.bf16.msra.mxu0 %v287
  %388 = vmatpush.bf16.msra.mxu0 %v286
  %389 = vmatpush.bf16.msra.mxu0 %v285
  %390 = vmatmul.bf16.gmra.mxu0 %v120
  %v391 = vpop.f32.mrf.mxu0
  %v392 = vadd.f32 %v373, %v391
  %v393 = vpop.f32.mrf.mxu0
  %v394 = vadd.f32 %v375, %v393
  %395 = vmatmul.bf16.gmra.mxu0 %v124
  %v396 = vpop.f32.mrf.mxu0
  %v397 = vadd.f32 %v378, %v396
  %v398 = vpop.f32.mrf.mxu0
  %v399 = vadd.f32 %v380, %v398
  %400 = vdwg.mxu0
  %v401 = vmul.f32 %v392, 0.2
  %v402 = vmul.f32 %v394, 0.2
  %v403 = vmul.f32 %v397, 0.2
  %v404 = vmul.f32 %v399, 0.2
  %v405 = vmax.f32 %v392, %v401
  %v406 = vmax.f32 %v394, %v402
  %v407 = vmax.f32 %v397, %v403
  %v408 = vmax.f32 %v399, %v404
  %v409 = vld [vmem:[%s3] sm:$0xff]
  %v410 = vld [vmem:[%s3 + $0x8] sm:$0xff]
  %v411 = vld [vmem:[%s3 + $0x10] sm:$0xff]
  %v412 = vld [vmem:[%s3 + $0x18] sm:$0xff]
  %v413 = vmul.f32 %v405, %v409
  %v414 = vmul.f32 %v406, %v410
  %v415 = vmul.f32 %v407, %v411
  %v416 = vmul.f32 %v408, %v412
  %v417 = vlaneseq
  %v418 = vand.u32 %v417, 127
  %v419 = vlaneseq
  %v420 = vshrl.u32 %v419, 7
  %v421 = vmul.u32 %v420, 16
  %vm422 = vcmp.ge.s32.totalorder %v418, %v421
  %v423 = vadd.s32 %v421, 16
  %vm424 = vcmp.lt.s32.totalorder %v418, %v423
  %vm425 = vmand %vm422, %vm424
  %v426 = vsel %vm425, 1, 0
  %v427 = vcvt.s32.f32 %v426
  %vm428 = vcmask 261120
  %v430 = vsel %vm428, %v427, 0
  %432 = vmatpush.msra.mxu0 0.0
  %433 = vmatpush.msra.mxu0 0.0
  %434 = vmatpush.msra.mxu0 0.0
  %435 = vmatpush.msra.mxu0 0.0
  %436 = vmatpush.msra.mxu0 0.0
  %437 = vmatpush.msra.mxu0 0.0
  %438 = vmatpush.msra.mxu0 0.0
  %439 = vmatpush.msra.mxu0 0.0
  %440 = vmatpush.msra.mxu0 0.0
  %441 = vmatpush.msra.mxu0 0.0
  %442 = vmatpush.msra.mxu0 0.0
  %443 = vmatpush.msra.mxu0 0.0
  %444 = vmatpush.msra.mxu0 %v416
  %445 = vmatpush.msra.mxu0 %v415
  %446 = vmatpush.msra.mxu0 %v414
  %447 = vmatpush.msra.mxu0 %v413
  %448 = vmatmul.f32.gmra.mxu0 %v430
  %v449 = vpop.f32.mrf.mxu0
  %v450 = vadd.f32 0.0, %v449
  %451 = vdwg.mxu0
  %vm452 = vcmask 1041408
  %v453 = vsel %vm452, %v450, 0.0
  %454 = vadd.xlane.f32.xlu0 %v453
  %v455 = vpop.xlane.xlu0 %454
  %v456 = vsub.f32 0.0, %v455
  %v457 = vmul.f32 %v456, 1.442695
  %v458 = vpow.pop %v457
  %v459 = vadd.f32 %v458, 1.0
  %v460 = vrcp.pop %v459
  %vm461 = vcmask 1024
  %462 = vst.msk [vmem:[%s4] sm:$0x3] %vm461, %v460
  // Predicated region
  $region18: #{netd_forward.7} parent=0 // pred_check
    _
  $region19: #{netd_forward.7} parent=0 // pred_check_branch
    %464 = sbr.rel (0) target = $region21
  $region20: #{netd_forward.7} parent=0 // pred_region
    _
  $region21: #{netd_forward.7} parent=0 // pred_fallthru
    _
  // Predicated region
  $region22: #{netd_forward.7} parent=0 // pred_check
    _
  $region23: #{netd_forward.7} parent=0 // pred_check_branch
    %466 = sbr.rel (0) target = $region25
  $region24: #{netd_forward.7} parent=0 // pred_region
    _
  $region25: #{netd_forward.7} parent=0 // pred_fallthru
    _

</llo_original>
